<compile_context>
chip_gen: v7x
topology: tpu7x:2x2x1
jax: 0.10.0
libtpu: 0.0.40
codegen_flags: <defaults>
</compile_context>

<pallas_src>
import functools
import math

import jax
import jax.numpy as jnp
from jax import lax
from jax.experimental import pallas as pl
from jax.experimental.pallas import tpu as pltpu

_NEG_INF = -1e9


# ---------------------------------------------------------------------------
# helpers traced inside the kernels
# ---------------------------------------------------------------------------
def _layernorm(x, g, b, eps=1e-5):
    mu = jnp.mean(x, axis=-1, keepdims=True)
    xc = x - mu
    var = jnp.mean(xc * xc, axis=-1, keepdims=True)
    return xc * lax.rsqrt(var + eps) * g + b


def _mm(x, w, b=None):
    # bf16 MXU operands, f32 accumulation.
    y = jnp.dot(x.astype(jnp.bfloat16), w.astype(jnp.bfloat16),
                preferred_element_type=jnp.float32)
    return y if b is None else y + b


def _split_heads(t, rows, num_heads):
    # (rows*seq, D) -> (num_heads*rows, seq, head_dim).
    # Head packing uses static lane slices (unavoidable data movement when
    # head_dim < 128); the matmuls themselves are a single batched einsum.
    rs, d = t.shape
    seq = rs // rows
    hd = d // num_heads
    t3 = t.reshape(rows, seq, d)
    parts = [t3[:, :, h * hd:(h + 1) * hd] for h in range(num_heads)]
    return jnp.stack(parts, axis=0).reshape(num_heads * rows, seq, hd)


def _merge_heads(o, rows, num_heads):
    # (num_heads*rows, seq, head_dim) -> (rows*seq, D)
    _, seq, hd = o.shape
    o4 = o.reshape(num_heads, rows, seq, hd)
    cat = jnp.concatenate([o4[h] for h in range(num_heads)], axis=-1)
    return cat.reshape(rows * seq, num_heads * hd)


def _attention(q, k, v, rows, num_heads, key_bias=None):
    # q: (rows*sq, D), k/v: (rows*sk, D).  One batched QK^T einsum and one
    # batched PV einsum over the merged (head, row) batch dim.
    hd = q.shape[-1] // num_heads
    scale = 1.0 / math.sqrt(hd)
    qh = _split_heads(q, rows, num_heads)
    kh = _split_heads(k, rows, num_heads)
    vh = _split_heads(v, rows, num_heads)
    s = jnp.einsum("bqd,bkd->bqk", qh.astype(jnp.bfloat16), kh.astype(jnp.bfloat16),
                   preferred_element_type=jnp.float32) * scale
    if key_bias is not None:
        s = s + key_bias                      # additive key-padding bias
    s = s - jnp.max(s, axis=-1, keepdims=True)
    p = jnp.exp(s)
    p = p * pl.reciprocal(jnp.sum(p, axis=-1, keepdims=True), approx=True)
    o = jnp.einsum("bqk,bkd->bqd", p.astype(jnp.bfloat16), vh.astype(jnp.bfloat16),
                   preferred_element_type=jnp.float32)
    return _merge_heads(o, rows, num_heads)


# ---------------------------------------------------------------------------
# kernel A: self-to-self attention over `num`, batched over `pad`
# ---------------------------------------------------------------------------
def _self_over_num_kernel(x_ref, rbias_ref, g1_ref, b1_ref, wqkv_ref, bqkv_ref,
                          wo_ref, bo_ref, o_ref, *, num_heads):
    xt = x_ref[0]                                    # (pad, num, D)
    P, N, D = xt.shape
    rb = rbias_ref[0].reshape(1, 1, N)               # key-padding bias over `num`

    a = _layernorm(xt, g1_ref[...], b1_ref[...])
    a2 = a.reshape(P * N, D)
    qkv = _mm(a2, wqkv_ref[...], bqkv_ref[...])      # fused QKV projection
    q, k, v = qkv[:, :D], qkv[:, D:2 * D], qkv[:, 2 * D:]
    attn = _attention(q, k, v, rows=P, num_heads=num_heads, key_bias=rb)
    attn = _mm(attn, wo_ref[...], bo_ref[...])
    o_ref[0] = (xt + attn.reshape(P, N, D)).astype(o_ref.dtype)


# ---------------------------------------------------------------------------
# kernel B: local attention + cross attention + FFN + score head
# ---------------------------------------------------------------------------
def _local_cross_ffn_kernel(y_ref, valid_ref, env_ref, ebias_ref, pos_ref,
                            g2_ref, b2_ref, wqk2_ref, bqk2_ref, wv2_ref, bv2_ref,
                            wo2_ref, bo2_ref,
                            g3_ref, b3_ref, wq3_ref, bq3_ref, wkv3_ref, bkv3_ref,
                            wo3_ref, bo3_ref,
                            g4_ref, b4_ref, wf1_ref, bf1_ref, wf2_ref, bf2_ref,
                            ws1_ref, bs1_ref, ws2_ref, bs2_ref,
                            out_ref, score_ref, *, num_heads):
    y = y_ref[0]                                     # (num, pad, D)
    N, P, D = y.shape
    NP = N * P
    valid = valid_ref[0]                             # (num, 1): 1 keep, 0 masked row
    env = env_ref[0]                                 # (M, D)
    M = env.shape[0]
    eb = ebias_ref[0].reshape(1, 1, M)
    pos = pos_ref[...]                               # (pad, D)

    # -- local-to-local attention over `pad`, batched over `num` --
    vt = _layernorm(y, g2_ref[...], b2_ref[...])
    vt2 = vt.reshape(NP, D)
    qk = _mm((vt + pos).reshape(NP, D), wqk2_ref[...], bqk2_ref[...])  # fused Q/K
    q2, k2 = qk[:, :D], qk[:, D:]
    v2 = _mm(vt2, wv2_ref[...], bv2_ref[...])
    attn2 = _attention(q2, k2, v2, rows=N, num_heads=num_heads)
    attn2 = _mm(attn2, wo2_ref[...], bo2_ref[...])
    vt2 = vt2 + attn2
    # dense equivalent of torch's boolean-index scatter: masked rows -> zeros
    z = (vt2.reshape(N, P, D) * valid[:, :, None]).reshape(NP, D)

    # -- cross attention of the (num*pad) sequence against env --
    zc = _layernorm(z, g3_ref[...], b3_ref[...])
    q3 = _mm(zc, wq3_ref[...], bq3_ref[...])
    kv = _mm(env, wkv3_ref[...], bkv3_ref[...])      # fused K/V from env
    k3, v3 = kv[:, :D], kv[:, D:]
    attn3 = _attention(q3, k3, v3, rows=1, num_heads=num_heads, key_bias=eb)
    attn3 = _mm(attn3, wo3_ref[...], bo3_ref[...])
    zc = zc + attn3

    # -- norm4 + FFN (Linear -> ReLU -> Linear); x + dropout3(x) == 2x in eval --
    h4 = _layernorm(zc, g4_ref[...], b4_ref[...])
    f = _mm(h4, wf1_ref[...], bf1_ref[...])
    f = jnp.maximum(f, 0.0)
    f = _mm(f, wf2_ref[...], bf2_ref[...])
    out2d = f + f
    out_ref[0] = out2d.astype(out_ref.dtype)

    # -- score head: Linear(D, 64) -> ELU -> Linear(64, 1) --
    hs = _mm(out2d, ws1_ref[...], bs1_ref[...])
    hs = jnp.where(hs > 0.0, hs, jnp.exp(jnp.minimum(hs, 0.0)) - 1.0)   # ELU
    sc = jnp.sum(hs * ws2_ref[...], axis=-1, keepdims=True) + bs2_ref[...]
    score_ref[0] = sc.astype(score_ref.dtype)


# ---------------------------------------------------------------------------
# wrapper
# ---------------------------------------------------------------------------
def _batch_spec(a):
    nd = a.ndim
    return pl.BlockSpec((1,) + a.shape[1:], lambda b, _n=nd: (b,) + (0,) * (_n - 1))


def _const_spec(a):
    nd = a.ndim
    return pl.BlockSpec(a.shape, lambda b, _n=nd: (0,) * _n)


_KA_WEIGHTS = ("ln1_g", "ln1_b", "w_qkv1", "b_qkv1", "w_o1", "b_o1")
_KB_WEIGHTS = ("ln2_g", "ln2_b", "w_qk2", "b_qk2", "w_v2", "b_v2", "w_o2", "b_o2",
               "ln3_g", "ln3_b", "w_q3", "b_q3", "w_kv3", "b_kv3", "w_o3", "b_o3",
               "ln4_g", "ln4_b", "w_f1", "b_f1", "w_f2", "b_f2",
               "w_s1", "b_s1", "w_s2", "b_s2")


def decoder_layer_forward(x, env, ref_mask, env_mask, memory_position, params, num_heads):
    B, N, P, D = x.shape
    M = env.shape[1]
    NP = N * P
    assert D % num_heads == 0

    cparams = pltpu.CompilerParams(dimension_semantics=("parallel",),
                                   vmem_limit_bytes=32 * 1024 * 1024)

    # key_padding_mask -> additive bias / row multiplier (computed once in XLA).
    # ref_mask is applied per batch row to every pad replica (intended
    # semantics of the torch `ref_mask.repeat(pad, 1)` call).
    ref_bias = jnp.where(ref_mask, _NEG_INF, 0.0).astype(jnp.float32).reshape(B, 1, N)
    env_bias = jnp.where(env_mask, _NEG_INF, 0.0).astype(jnp.float32).reshape(B, 1, M)
    valid_mul = jnp.where(ref_mask, 0.0, 1.0).astype(jnp.float32).reshape(B, N, 1)

    # stage-1 layout: (batch, pad, num, D); the transpose is free XLA plumbing.
    x_t = jnp.transpose(x, (0, 2, 1, 3))

    ka_inputs = (x_t, ref_bias) + tuple(params[n] for n in _KA_WEIGHTS)
    ka_specs = [_batch_spec(x_t), _batch_spec(ref_bias)] + \
               [_const_spec(params[n]) for n in _KA_WEIGHTS]
    y1_t = pl.pallas_call(
        functools.partial(_self_over_num_kernel, num_heads=num_heads),
        out_shape=jax.ShapeDtypeStruct((B, P, N, D), jnp.float32),
        grid_spec=pltpu.PrefetchScalarGridSpec(
            num_scalar_prefetch=0, grid=(B,), in_specs=ka_specs,
            out_specs=pl.BlockSpec((1, P, N, D), lambda b: (b, 0, 0, 0))),
        compiler_params=cparams,
    )(*ka_inputs)

    y1 = jnp.transpose(y1_t, (0, 2, 1, 3))          # back to (batch, num, pad, D)

    kb_inputs = (y1, valid_mul, env, env_bias, memory_position) + \
                tuple(params[n] for n in _KB_WEIGHTS)
    kb_specs = [_batch_spec(y1), _batch_spec(valid_mul), _batch_spec(env),
                _batch_spec(env_bias), _const_spec(memory_position)] + \
               [_const_spec(params[n]) for n in _KB_WEIGHTS]
    out_flat, score_flat = pl.pallas_call(
        functools.partial(_local_cross_ffn_kernel, num_heads=num_heads),
        out_shape=(jax.ShapeDtypeStruct((B, NP, D), jnp.float32),
                   jax.ShapeDtypeStruct((B, NP, 1), jnp.float32)),
        grid_spec=pltpu.PrefetchScalarGridSpec(
            num_scalar_prefetch=0, grid=(B,), in_specs=kb_specs,
            out_specs=[pl.BlockSpec((1, NP, D), lambda b: (b, 0, 0)),
                       pl.BlockSpec((1, NP, 1), lambda b: (b, 0, 0))]),
        compiler_params=cparams,
    )(*kb_inputs)

    return out_flat.reshape(B, N, P, D), score_flat.reshape(B, N, P, 1)


# ---------------------------------------------------------------------------
# pure-JAX reference (same bf16 matmul operands, exact softmax division)
# ---------------------------------------------------------------------------
def reference_decoder_layer(x, env, ref_mask, env_mask, memory_position, params, num_heads):
    B, N, P, D = x.shape
    H = num_heads
    hd = D // H
    scale = 1.0 / math.sqrt(hd)
    bf16, f32 = jnp.bfloat16, jnp.float32

    def mm(a, w, b=None):
        y = jnp.einsum("...d,de->...e", a.astype(bf16), w.astype(bf16),
                       preferred_element_type=f32)
        return y if b is None else y + b

    def ln(a, g, b):
        mu = jnp.mean(a, -1, keepdims=True)
        c = a - mu
        var = jnp.mean(c * c, -1, keepdims=True)
        return c * lax.rsqrt(var + 1e-5) * g + b

    def attend(q, k, v, bias=None):
        lead = q.shape[:-2]
        sq, sk = q.shape[-2], k.shape[-2]
        qh = q.reshape(*lead, sq, H, hd)
        kh = k.reshape(*lead, sk, H, hd)
        vh = v.reshape(*lead, sk, H, hd)
        s = jnp.einsum("...qhd,...khd->...hqk", qh.astype(bf16), kh.astype(bf16),
                       preferred_element_type=f32) * scale
        if bias is not None:
            s = s + bias
        s = s - jnp.max(s, -1, keepdims=True)
        p = jnp.exp(s)
        p = p / jnp.sum(p, -1, keepdims=True)
        o = jnp.einsum("...hqk,...khd->...qhd", p.astype(bf16), vh.astype(bf16),
                       preferred_element_type=f32)
        return o.reshape(*lead, sq, D)

    # stage 1
    x_t = jnp.transpose(x, (0, 2, 1, 3))
    a_in = ln(x_t, params["ln1_g"], params["ln1_b"])
    qkv = mm(a_in, params["w_qkv1"], params["b_qkv1"])
    q, k, v = qkv[..., :D], qkv[..., D:2 * D], qkv[..., 2 * D:]
    kbias = jnp.where(ref_mask, _NEG_INF, 0.0)[:, None, None, None, :]
    a1 = mm(attend(q, k, v, bias=kbias), params["w_o1"], params["b_o1"])
    y1 = jnp.transpose(x_t + a1, (0, 2, 1, 3))

    # stage 2
    vt = ln(y1, params["ln2_g"], params["ln2_b"])
    qk = mm(vt + memory_position, params["w_qk2"], params["b_qk2"])
    q2, k2 = qk[..., :D], qk[..., D:]
    v2 = mm(vt, params["w_v2"], params["b_v2"])
    a2 = mm(attend(q2, k2, v2), params["w_o2"], params["b_o2"])
    vt = vt + a2
    valid = jnp.where(ref_mask, 0.0, 1.0)[:, :, None, None]
    z = (vt * valid).reshape(B, N * P, D)

    # stage 3
    zc = ln(z, params["ln3_g"], params["ln3_b"])
    q3 = mm(zc, params["w_q3"], params["b_q3"])
    kv = mm(env, params["w_kv3"], params["b_kv3"])
    k3, v3 = kv[..., :D], kv[..., D:]
    ebias = jnp.where(env_mask, _NEG_INF, 0.0)[:, None, None, :]
    a3 = mm(attend(q3, k3, v3, bias=ebias), params["w_o3"], params["b_o3"])
    zc = zc + a3

    # stage 4 + score
    h4 = ln(zc, params["ln4_g"], params["ln4_b"])
    f = mm(h4, params["w_f1"], params["b_f1"])
    f = jnp.maximum(f, 0.0)
    f = mm(f, params["w_f2"], params["b_f2"])
    out = f + f

    hs = mm(out, params["w_s1"], params["b_s1"])
    hs = jnp.where(hs > 0.0, hs, jnp.exp(jnp.minimum(hs, 0.0)) - 1.0)
    sc = jnp.sum(hs * params["w_s2"], -1, keepdims=True) + params["b_s2"]
    return out.reshape(B, N, P, D), sc.reshape(B, N, P, 1)


# ---------------------------------------------------------------------------
# parameters
# ---------------------------------------------------------------------------
def make_params(key, dim, dff, score_hidden):
    kit = iter(jax.random.split(key, 32))
    s = 0.08
    f32 = jnp.float32

    def w(shape):  # matmul weights stored in bf16 (MXU operands)
        return (jax.random.normal(next(kit), shape, f32) * s).astype(jnp.bfloat16)

    def b(shape):
        return jax.random.normal(next(kit), shape, f32) * s

    def ln():
        return jnp.ones((1, dim), f32), jnp.zeros((1, dim), f32)

    g1, be1 = ln(); g2, be2 = ln(); g3, be3 = ln(); g4, be4 = ln()
    return {
        "ln1_g": g1, "ln1_b": be1,
        "w_qkv1": w((dim, 3 * dim)), "b_qkv1": b((1, 3 * dim)),
        "w_o1": w((dim, dim)), "b_o1": b((1, dim)),
        "ln2_g": g2, "ln2_b": be2,
        "w_qk2": w((dim, 2 * dim)), "b_qk2": b((1, 2 * dim)),
        "w_v2": w((dim, dim)), "b_v2": b((1, dim)),
        "w_o2": w((dim, dim)), "b_o2": b((1, dim)),
        "ln3_g": g3, "ln3_b": be3,
        "w_q3": w((dim, dim)), "b_q3": b((1, dim)),
        "w_kv3": w((dim, 2 * dim)), "b_kv3": b((1, 2 * dim)),
        "w_o3": w((dim, dim)), "b_o3": b((1, dim)),
        "ln4_g": g4, "ln4_b": be4,
        "w_f1": w((dim, dff)), "b_f1": b((1, dff)),
        "w_f2": w((dff, dim)), "b_f2": b((1, dim)),
        "w_s1": w((dim, score_hidden)), "b_s1": b((1, score_hidden)),
        "w_s2": jax.random.normal(next(kit), (1, score_hidden), f32) * s,
        "b_s2": jnp.zeros((1, 1), f32),
    }


if __name__ == "__main__":
    # Small shapes consistent with the module:
    # batch=2, num=8 reference paths, pad=8, embedding_dim=32, heads=4, memory=8.
    B, NUM, PAD, D, H, M = 2, 8, 8, 32, 4, 8
    DFF, SCORE_HIDDEN = 4 * D, 64

    key = jax.random.PRNGKey(0)
    kx, ke, kp, kw = jax.random.split(key, 4)
    x = jax.random.normal(kx, (B, NUM, PAD, D), jnp.float32)
    env = jax.random.normal(ke, (B, M, D), jnp.float32)
    memory_position = jax.random.normal(kp, (PAD, D), jnp.float32) * 0.1
    # key-padding masks (True = ignore); each row keeps at least one valid key
    ref_mask = jnp.stack([jnp.arange(NUM) >= 6, jnp.arange(NUM) >= 5])   # (B, NUM)
    env_mask = jnp.stack([jnp.arange(M) >= 7, jnp.arange(M) >= 6])       # (B, M)

    params = make_params(kw, D, DFF, SCORE_HIDDEN)

    out, score = decoder_layer_forward(x, env, ref_mask, env_mask,
                                       memory_position, params, num_heads=H)
    out = out.block_until_ready()
    score = score.block_until_ready()

    ref_out, ref_score = reference_decoder_layer(x, env, ref_mask, env_mask,
                                                 memory_position, params, num_heads=H)

    assert out.shape == (B, NUM, PAD, D) and score.shape == (B, NUM, PAD, 1)
    assert bool(jnp.isfinite(out).all()) and bool(jnp.isfinite(score).all())
    assert jnp.allclose(out, ref_out, atol=3e-2, rtol=3e-2), \
        f"out mismatch, max|diff|={float(jnp.max(jnp.abs(out - ref_out)))}"
    assert jnp.allclose(score, ref_score, atol=3e-2, rtol=3e-2), \
        f"score mismatch, max|diff|={float(jnp.max(jnp.abs(score - ref_score)))}"

    print("KERNEL_OK")
</pallas_src>

<mosaic_0001>
module attributes {stable_mosaic.version = 11 : i64} {
  func.func @_self_over_num_kernel(%arg0: i32, %arg1: memref<1x8x8x32xf32, #tpu.memory_space<vmem>>, %arg2: memref<1x1x8xf32, #tpu.memory_space<vmem>>, %arg3: memref<1x32xf32, #tpu.memory_space<vmem>>, %arg4: memref<1x32xf32, #tpu.memory_space<vmem>>, %arg5: memref<32x96xbf16, #tpu.memory_space<vmem>>, %arg6: memref<1x96xf32, #tpu.memory_space<vmem>>, %arg7: memref<32x32xbf16, #tpu.memory_space<vmem>>, %arg8: memref<1x32xf32, #tpu.memory_space<vmem>>, %arg9: memref<1x8x8x32xf32, #tpu.memory_space<vmem>>) attributes {dimension_semantics = [#tpu.dimension_semantics<parallel>], iteration_bounds = array<i64: 2>, scalar_prefetch = 0 : i64, scratch_operands = 0 : i64, tpu.core_type = #tpu.core_type<tc>, window_params = [{transform_indices = @transform_0, window_bounds = array<i64: 1, 8, 8, 32>}, {transform_indices = @transform_1, window_bounds = array<i64: 1, 1, 8>}, {pipeline_mode = #tpu.pipeline_mode<synchronous>, transform_indices = @transform_2, window_bounds = array<i64: 1, 32>}, {pipeline_mode = #tpu.pipeline_mode<synchronous>, transform_indices = @transform_3, window_bounds = array<i64: 1, 32>}, {pipeline_mode = #tpu.pipeline_mode<synchronous>, transform_indices = @transform_4, window_bounds = array<i64: 32, 96>}, {pipeline_mode = #tpu.pipeline_mode<synchronous>, transform_indices = @transform_5, window_bounds = array<i64: 1, 96>}, {pipeline_mode = #tpu.pipeline_mode<synchronous>, transform_indices = @transform_6, window_bounds = array<i64: 32, 32>}, {pipeline_mode = #tpu.pipeline_mode<synchronous>, transform_indices = @transform_7, window_bounds = array<i64: 1, 32>}, {transform_indices = @transform_8, window_bounds = array<i64: 1, 8, 8, 32>}]} {
    %c0 = arith.constant 0 : index
    %c0_0 = arith.constant 0 : index
    %c0_1 = arith.constant 0 : index
    %c0_2 = arith.constant 0 : index
    %0 = vector.load %arg1[%c0, %c0_0, %c0_1, %c0_2] : memref<1x8x8x32xf32, #tpu.memory_space<vmem>>, vector<1x8x8x32xf32>
    %1 = vector.shape_cast %0 : vector<1x8x8x32xf32> to vector<8x8x32xf32>
    %c0_3 = arith.constant 0 : index
    %c0_4 = arith.constant 0 : index
    %c0_5 = arith.constant 0 : index
    %2 = vector.load %arg2[%c0_3, %c0_4, %c0_5] : memref<1x1x8xf32, #tpu.memory_space<vmem>>, vector<1x1x8xf32>
    %3 = vector.shape_cast %2 : vector<1x1x8xf32> to vector<1x8xf32>
    %4 = vector.shape_cast %3 : vector<1x8xf32> to vector<1x1x8xf32>
    %c0_6 = arith.constant 0 : index
    %c0_7 = arith.constant 0 : index
    %5 = vector.load %arg3[%c0_6, %c0_7] : memref<1x32xf32, #tpu.memory_space<vmem>>, vector<1x32xf32>
    %c0_8 = arith.constant 0 : index
    %c0_9 = arith.constant 0 : index
    %6 = vector.load %arg4[%c0_8, %c0_9] : memref<1x32xf32, #tpu.memory_space<vmem>>, vector<1x32xf32>
    %cst = arith.constant dense<0.000000e+00> : vector<8x8xf32>
    %7 = vector.multi_reduction <add>, %1, %cst [2] : vector<8x8x32xf32> to vector<8x8xf32>
    %8 = vector.shape_cast %7 : vector<8x8xf32> to vector<8x8x1xf32>
    %cst_10 = arith.constant 3.200000e+01 : f32
    %9 = vector.broadcast %cst_10 : f32 to vector<8x8x1xf32>
    %10 = arith.divf %8, %9 : vector<8x8x1xf32>
    %11 = vector.broadcast %10 : vector<8x8x1xf32> to vector<8x8x32xf32>
    %12 = arith.subf %1, %11 : vector<8x8x32xf32>
    %13 = arith.mulf %12, %12 : vector<8x8x32xf32>
    %cst_11 = arith.constant dense<0.000000e+00> : vector<8x8xf32>
    %14 = vector.multi_reduction <add>, %13, %cst_11 [2] : vector<8x8x32xf32> to vector<8x8xf32>
    %15 = vector.shape_cast %14 : vector<8x8xf32> to vector<8x8x1xf32>
    %cst_12 = arith.constant 3.200000e+01 : f32
    %16 = vector.broadcast %cst_12 : f32 to vector<8x8x1xf32>
    %17 = arith.divf %15, %16 : vector<8x8x1xf32>
    %cst_13 = arith.constant 9.99999974E-6 : f32
    %18 = vector.broadcast %cst_13 : f32 to vector<8x8x1xf32>
    %19 = arith.addf %17, %18 : vector<8x8x1xf32>
    %20 = math.rsqrt %19 : vector<8x8x1xf32>
    %21 = vector.broadcast %20 : vector<8x8x1xf32> to vector<8x8x32xf32>
    %22 = arith.mulf %12, %21 : vector<8x8x32xf32>
    %23 = vector.shape_cast %5 : vector<1x32xf32> to vector<1x1x32xf32>
    %24 = vector.broadcast %23 : vector<1x1x32xf32> to vector<8x8x32xf32>
    %25 = arith.mulf %22, %24 : vector<8x8x32xf32>
    %26 = vector.shape_cast %6 : vector<1x32xf32> to vector<1x1x32xf32>
    %27 = vector.broadcast %26 : vector<1x1x32xf32> to vector<8x8x32xf32>
    %28 = arith.addf %25, %27 : vector<8x8x32xf32>
    %29 = vector.shape_cast %28 : vector<8x8x32xf32> to vector<64x32xf32>
    %c0_14 = arith.constant 0 : index
    %c0_15 = arith.constant 0 : index
    %30 = vector.load %arg5[%c0_14, %c0_15] : memref<32x96xbf16, #tpu.memory_space<vmem>>, vector<32x96xbf16>
    %c0_16 = arith.constant 0 : index
    %c0_17 = arith.constant 0 : index
    %31 = vector.load %arg6[%c0_16, %c0_17] : memref<1x96xf32, #tpu.memory_space<vmem>>, vector<1x96xf32>
    %32 = arith.truncf %29 : vector<64x32xf32> to vector<64x32xbf16>
    %cst_18 = arith.constant dense<0.000000e+00> : vector<64x96xf32>
    %33 = tpu.matmul %32, %30, %cst_18 {dimension_numbers = #tpu.dot_dimension_numbers<[1], [0], [0], [1], [0, 0, 1, 1], [], []>} : vector<64x32xbf16>, vector<32x96xbf16>, vector<64x96xf32> -> vector<64x96xf32>
    %34 = vector.broadcast %31 : vector<1x96xf32> to vector<64x96xf32>
    %35 = arith.addf %33, %34 : vector<64x96xf32>
    %36 = vector.extract_strided_slice %35 {offsets = [0, 0], sizes = [64, 32], strides = [1, 1]} : vector<64x96xf32> to vector<64x32xf32>
    %37 = vector.extract_strided_slice %35 {offsets = [0, 32], sizes = [64, 32], strides = [1, 1]} : vector<64x96xf32> to vector<64x32xf32>
    %38 = vector.extract_strided_slice %35 {offsets = [0, 64], sizes = [64, 32], strides = [1, 1]} : vector<64x96xf32> to vector<64x32xf32>
    %39 = vector.shape_cast %36 : vector<64x32xf32> to vector<8x8x32xf32>
    %40 = vector.extract_strided_slice %39 {offsets = [0, 0, 0], sizes = [8, 8, 8], strides = [1, 1, 1]} : vector<8x8x32xf32> to vector<8x8x8xf32>
    %41 = vector.extract_strided_slice %39 {offsets = [0, 0, 8], sizes = [8, 8, 8], strides = [1, 1, 1]} : vector<8x8x32xf32> to vector<8x8x8xf32>
    %42 = vector.extract_strided_slice %39 {offsets = [0, 0, 16], sizes = [8, 8, 8], strides = [1, 1, 1]} : vector<8x8x32xf32> to vector<8x8x8xf32>
    %43 = vector.extract_strided_slice %39 {offsets = [0, 0, 24], sizes = [8, 8, 8], strides = [1, 1, 1]} : vector<8x8x32xf32> to vector<8x8x8xf32>
    %44 = vector.shape_cast %40 : vector<8x8x8xf32> to vector<1x8x8x8xf32>
    %45 = vector.shape_cast %41 : vector<8x8x8xf32> to vector<1x8x8x8xf32>
    %46 = vector.shape_cast %42 : vector<8x8x8xf32> to vector<1x8x8x8xf32>
    %47 = vector.shape_cast %43 : vector<8x8x8xf32> to vector<1x8x8x8xf32>
    %48 = tpu.concatenate %44, %45, %46, %47 in 0 : vector<1x8x8x8xf32>, vector<1x8x8x8xf32>, vector<1x8x8x8xf32>, vector<1x8x8x8xf32> -> vector<4x8x8x8xf32>
    %49 = vector.shape_cast %48 : vector<4x8x8x8xf32> to vector<32x8x8xf32>
    %50 = vector.shape_cast %37 : vector<64x32xf32> to vector<8x8x32xf32>
    %51 = vector.extract_strided_slice %50 {offsets = [0, 0, 0], sizes = [8, 8, 8], strides = [1, 1, 1]} : vector<8x8x32xf32> to vector<8x8x8xf32>
    %52 = vector.extract_strided_slice %50 {offsets = [0, 0, 8], sizes = [8, 8, 8], strides = [1, 1, 1]} : vector<8x8x32xf32> to vector<8x8x8xf32>
    %53 = vector.extract_strided_slice %50 {offsets = [0, 0, 16], sizes = [8, 8, 8], strides = [1, 1, 1]} : vector<8x8x32xf32> to vector<8x8x8xf32>
    %54 = vector.extract_strided_slice %50 {offsets = [0, 0, 24], sizes = [8, 8, 8], strides = [1, 1, 1]} : vector<8x8x32xf32> to vector<8x8x8xf32>
    %55 = vector.shape_cast %51 : vector<8x8x8xf32> to vector<1x8x8x8xf32>
    %56 = vector.shape_cast %52 : vector<8x8x8xf32> to vector<1x8x8x8xf32>
    %57 = vector.shape_cast %53 : vector<8x8x8xf32> to vector<1x8x8x8xf32>
    %58 = vector.shape_cast %54 : vector<8x8x8xf32> to vector<1x8x8x8xf32>
    %59 = tpu.concatenate %55, %56, %57, %58 in 0 : vector<1x8x8x8xf32>, vector<1x8x8x8xf32>, vector<1x8x8x8xf32>, vector<1x8x8x8xf32> -> vector<4x8x8x8xf32>
    %60 = vector.shape_cast %59 : vector<4x8x8x8xf32> to vector<32x8x8xf32>
    %61 = vector.shape_cast %38 : vector<64x32xf32> to vector<8x8x32xf32>
    %62 = vector.extract_strided_slice %61 {offsets = [0, 0, 0], sizes = [8, 8, 8], strides = [1, 1, 1]} : vector<8x8x32xf32> to vector<8x8x8xf32>
    %63 = vector.extract_strided_slice %61 {offsets = [0, 0, 8], sizes = [8, 8, 8], strides = [1, 1, 1]} : vector<8x8x32xf32> to vector<8x8x8xf32>
    %64 = vector.extract_strided_slice %61 {offsets = [0, 0, 16], sizes = [8, 8, 8], strides = [1, 1, 1]} : vector<8x8x32xf32> to vector<8x8x8xf32>
    %65 = vector.extract_strided_slice %61 {offsets = [0, 0, 24], sizes = [8, 8, 8], strides = [1, 1, 1]} : vector<8x8x32xf32> to vector<8x8x8xf32>
    %66 = vector.shape_cast %62 : vector<8x8x8xf32> to vector<1x8x8x8xf32>
    %67 = vector.shape_cast %63 : vector<8x8x8xf32> to vector<1x8x8x8xf32>
    %68 = vector.shape_cast %64 : vector<8x8x8xf32> to vector<1x8x8x8xf32>
    %69 = vector.shape_cast %65 : vector<8x8x8xf32> to vector<1x8x8x8xf32>
    %70 = tpu.concatenate %66, %67, %68, %69 in 0 : vector<1x8x8x8xf32>, vector<1x8x8x8xf32>, vector<1x8x8x8xf32>, vector<1x8x8x8xf32> -> vector<4x8x8x8xf32>
    %71 = vector.shape_cast %70 : vector<4x8x8x8xf32> to vector<32x8x8xf32>
    %72 = arith.truncf %49 : vector<32x8x8xf32> to vector<32x8x8xbf16>
    %73 = arith.truncf %60 : vector<32x8x8xf32> to vector<32x8x8xbf16>
    "tpu.trace_start"() <{level = 10 : i32, message = "bqd,bkd->bqk"}> : () -> ()
    %cst_19 = arith.constant dense<0.000000e+00> : vector<32x8x8xf32>
    %74 = tpu.matmul %72, %73, %cst_19 {dimension_numbers = #tpu.dot_dimension_numbers<[2], [2], [1], [1], [0, 0, 0, 1, 1, 1], [0], [0]>} : vector<32x8x8xbf16>, vector<32x8x8xbf16>, vector<32x8x8xf32> -> vector<32x8x8xf32>
    "tpu.trace_stop"() : () -> ()
    %cst_20 = arith.constant 0.353553385 : f32
    %75 = vector.broadcast %cst_20 : f32 to vector<32x8x8xf32>
    %76 = arith.mulf %74, %75 : vector<32x8x8xf32>
    %77 = vector.broadcast %4 : vector<1x1x8xf32> to vector<32x8x8xf32>
    %78 = arith.addf %76, %77 : vector<32x8x8xf32>
    %cst_21 = arith.constant dense<0xFF800000> : vector<32x8xf32>
    %79 = vector.multi_reduction <maximumf>, %78, %cst_21 [2] : vector<32x8x8xf32> to vector<32x8xf32>
    %80 = vector.shape_cast %79 : vector<32x8xf32> to vector<32x8x1xf32>
    %81 = vector.broadcast %80 : vector<32x8x1xf32> to vector<32x8x8xf32>
    %82 = arith.subf %78, %81 : vector<32x8x8xf32>
    %83 = math.exp %82 : vector<32x8x8xf32>
    %cst_22 = arith.constant dense<0.000000e+00> : vector<32x8xf32>
    %84 = vector.multi_reduction <add>, %83, %cst_22 [2] : vector<32x8x8xf32> to vector<32x8xf32>
    %85 = vector.shape_cast %84 : vector<32x8xf32> to vector<32x8x1xf32>
    %86 = tpu.reciprocal %85 {approx = true} : vector<32x8x1xf32> -> vector<32x8x1xf32>
    %87 = vector.broadcast %86 : vector<32x8x1xf32> to vector<32x8x8xf32>
    %88 = arith.mulf %83, %87 : vector<32x8x8xf32>
    %89 = arith.truncf %88 : vector<32x8x8xf32> to vector<32x8x8xbf16>
    %90 = arith.truncf %71 : vector<32x8x8xf32> to vector<32x8x8xbf16>
    "tpu.trace_start"() <{level = 10 : i32, message = "bqk,bkd->bqd"}> : () -> ()
    %cst_23 = arith.constant dense<0.000000e+00> : vector<32x8x8xf32>
    %91 = tpu.matmul %89, %90, %cst_23 {dimension_numbers = #tpu.dot_dimension_numbers<[2], [1], [1], [2], [0, 0, 0, 1, 1, 2], [0], [0]>} : vector<32x8x8xbf16>, vector<32x8x8xbf16>, vector<32x8x8xf32> -> vector<32x8x8xf32>
    "tpu.trace_stop"() : () -> ()
    %92 = vector.shape_cast %91 : vector<32x8x8xf32> to vector<4x8x8x8xf32>
    %93 = vector.extract_strided_slice %92 {offsets = [0, 0, 0, 0], sizes = [1, 8, 8, 8], strides = [1, 1, 1, 1]} : vector<4x8x8x8xf32> to vector<1x8x8x8xf32>
    %94 = vector.shape_cast %93 : vector<1x8x8x8xf32> to vector<8x8x8xf32>
    %95 = vector.extract_strided_slice %92 {offsets = [1, 0, 0, 0], sizes = [1, 8, 8, 8], strides = [1, 1, 1, 1]} : vector<4x8x8x8xf32> to vector<1x8x8x8xf32>
    %96 = vector.shape_cast %95 : vector<1x8x8x8xf32> to vector<8x8x8xf32>
    %97 = vector.extract_strided_slice %92 {offsets = [2, 0, 0, 0], sizes = [1, 8, 8, 8], strides = [1, 1, 1, 1]} : vector<4x8x8x8xf32> to vector<1x8x8x8xf32>
    %98 = vector.shape_cast %97 : vector<1x8x8x8xf32> to vector<8x8x8xf32>
    %99 = vector.extract_strided_slice %92 {offsets = [3, 0, 0, 0], sizes = [1, 8, 8, 8], strides = [1, 1, 1, 1]} : vector<4x8x8x8xf32> to vector<1x8x8x8xf32>
    %100 = vector.shape_cast %99 : vector<1x8x8x8xf32> to vector<8x8x8xf32>
    %101 = tpu.concatenate %94, %96, %98, %100 in 2 : vector<8x8x8xf32>, vector<8x8x8xf32>, vector<8x8x8xf32>, vector<8x8x8xf32> -> vector<8x8x32xf32>
    %102 = vector.shape_cast %101 : vector<8x8x32xf32> to vector<64x32xf32>
    %c0_24 = arith.constant 0 : index
    %c0_25 = arith.constant 0 : index
    %103 = vector.load %arg7[%c0_24, %c0_25] : memref<32x32xbf16, #tpu.memory_space<vmem>>, vector<32x32xbf16>
    %c0_26 = arith.constant 0 : index
    %c0_27 = arith.constant 0 : index
    %104 = vector.load %arg8[%c0_26, %c0_27] : memref<1x32xf32, #tpu.memory_space<vmem>>, vector<1x32xf32>
    %105 = arith.truncf %102 : vector<64x32xf32> to vector<64x32xbf16>
    %cst_28 = arith.constant dense<0.000000e+00> : vector<64x32xf32>
    %106 = tpu.matmul %105, %103, %cst_28 {dimension_numbers = #tpu.dot_dimension_numbers<[1], [0], [0], [1], [0, 0, 1, 1], [], []>} : vector<64x32xbf16>, vector<32x32xbf16>, vector<64x32xf32> -> vector<64x32xf32>
    %107 = vector.broadcast %104 : vector<1x32xf32> to vector<64x32xf32>
    %108 = arith.addf %106, %107 : vector<64x32xf32>
    %109 = vector.shape_cast %108 : vector<64x32xf32> to vector<8x8x32xf32>
    %110 = arith.addf %1, %109 : vector<8x8x32xf32>
    %c0_29 = arith.constant 0 : index
    %c0_30 = arith.constant 0 : index
    %c0_31 = arith.constant 0 : index
    %c0_32 = arith.constant 0 : index
    %111 = vector.load %arg9[%c0_29, %c0_30, %c0_31, %c0_32] : memref<1x8x8x32xf32, #tpu.memory_space<vmem>>, vector<1x8x8x32xf32>
    %112 = vector.shape_cast %111 : vector<1x8x8x32xf32> to vector<8x8x32xf32>
    %113 = vector.shape_cast %110 : vector<8x8x32xf32> to vector<1x8x8x32xf32>
    tpu.vector_store %arg9[%c0_29, %c0_30, %c0_31, %c0_32], %113 {strides = array<i32>} : memref<1x8x8x32xf32, #tpu.memory_space<vmem>>, vector<1x8x8x32xf32>,
    return
  }
  func.func @transform_0(%arg0: i32) -> (i32, i32, i32, i32) {
    %c0_i32 = arith.constant 0 : i32
    %c0_i32_0 = arith.constant 0 : i32
    %c0_i32_1 = arith.constant 0 : i32
    %c0_i32_2 = arith.constant 0 : i32
    return %arg0, %c0_i32, %c0_i32_0, %c0_i32_1 : i32, i32, i32, i32
  }
  func.func @transform_1(%arg0: i32) -> (i32, i32, i32) {
    %c0_i32 = arith.constant 0 : i32
    %c0_i32_0 = arith.constant 0 : i32
    %c0_i32_1 = arith.constant 0 : i32
    return %arg0, %c0_i32, %c0_i32_0 : i32, i32, i32
  }
  func.func @transform_2(%arg0: i32) -> (i32, i32) {
    %c0_i32 = arith.constant 0 : i32
    %c0_i32_0 = arith.constant 0 : i32
    %c0_i32_1 = arith.constant 0 : i32
    return %c0_i32, %c0_i32_0 : i32, i32
  }
  func.func @transform_3(%arg0: i32) -> (i32, i32) {
    %c0_i32 = arith.constant 0 : i32
    %c0_i32_0 = arith.constant 0 : i32
    %c0_i32_1 = arith.constant 0 : i32
    return %c0_i32, %c0_i32_0 : i32, i32
  }
  func.func @transform_4(%arg0: i32) -> (i32, i32) {
    %c0_i32 = arith.constant 0 : i32
    %c0_i32_0 = arith.constant 0 : i32
    %c0_i32_1 = arith.constant 0 : i32
    return %c0_i32, %c0_i32_0 : i32, i32
  }
  func.func @transform_5(%arg0: i32) -> (i32, i32) {
    %c0_i32 = arith.constant 0 : i32
    %c0_i32_0 = arith.constant 0 : i32
    %c0_i32_1 = arith.constant 0 : i32
    return %c0_i32, %c0_i32_0 : i32, i32
  }
  func.func @transform_6(%arg0: i32) -> (i32, i32) {
    %c0_i32 = arith.constant 0 : i32
    %c0_i32_0 = arith.constant 0 : i32
    %c0_i32_1 = arith.constant 0 : i32
    return %c0_i32, %c0_i32_0 : i32, i32
  }
  func.func @transform_7(%arg0: i32) -> (i32, i32) {
    %c0_i32 = arith.constant 0 : i32
    %c0_i32_0 = arith.constant 0 : i32
    %c0_i32_1 = arith.constant 0 : i32
    return %c0_i32, %c0_i32_0 : i32, i32
  }
  func.func @transform_8(%arg0: i32) -> (i32, i32, i32, i32) {
    %c0_i32 = arith.constant 0 : i32
    %c0_i32_0 = arith.constant 0 : i32
    %c0_i32_1 = arith.constant 0 : i32
    %c0_i32_2 = arith.constant 0 : i32
    return %arg0, %c0_i32, %c0_i32_0, %c0_i32_1 : i32, i32, i32, i32
  }
}

</mosaic_0001>

<llo_original>
// kernel: tpu_custom_call.1
$region0: #{tpu_custom_call.1}
  #allocation0 [shape = 'u32[]', space=smem, size = 0x4, offset = 0x4, fixed_abs, tag = 'smem constant byte address 0x4 - core index']
  #allocation1 [shape = 'u32[144,128]{1,0:T(1,128)}', space=vmem, size = 0x12000, scoped, tag = 'internal scratch']
  %s0 = inlined_call_operand.hbm [shape: f32[2,8,8,32], index: 0, kind: input, shape index: {}]
  %s1 = inlined_call_operand.vmem [shape: f32[2,1,8], index: 1, kind: input, shape index: {}]
  %s2 = inlined_call_operand.vmem [shape: f32[1,32], index: 2, kind: input, shape index: {}]
  %s3 = inlined_call_operand.vmem [shape: f32[1,32], index: 3, kind: input, shape index: {}]
  %s4 = inlined_call_operand.hbm [shape: bf16[32,96], index: 4, kind: input, shape index: {}]
  %s5 = inlined_call_operand.vmem [shape: f32[1,96], index: 5, kind: input, shape index: {}]
  %s6 = inlined_call_operand.vmem [shape: bf16[32,32], index: 6, kind: input, shape index: {}]
  %s7 = inlined_call_operand.vmem [shape: f32[1,32], index: 7, kind: input, shape index: {}]
  %s8 = inlined_call_operand.hbm [shape: f32[2,8,8,32], index: 8, kind: output, shape index: {}]
  %s9 = sld [smem:[#allocation0]]
  $region73: #{tpu_custom_call.1} parent=0
    _
  %s11 = ssub.s32 1, %s9
  %s12 = scalar_select 0, %s11, %s9
  $region1: #{tpu_custom_call.1} parent=0
    #allocation2 [shape = 'u8[65536]{0}', space=vmem, size = 0x10000, scoped, tag = 'input window, operand 0']
    #allocation3 [shape = 's32[2]{0}', space=sflag, size = 0x8, scoped, tag = 'scoped memory for tpu_custom_call.1']
    #allocation4 [shape = 's32[2]{0}', space=sflag, size = 0x8, scoped, tag = 'scoped memory for tpu_custom_call.1']
    #allocation5 [shape = 'u8[8192]{0}', space=vmem, size = 0x2000, scoped, tag = 'input window, operand 4, single buffered']
    #allocation6 [shape = 's32[1]{0}', space=sflag, size = 0x4, scoped, tag = 'scoped memory for tpu_custom_call.1']
    #allocation7 [shape = 'u8[65536]{0}', space=vmem, size = 0x10000, scoped, tag = 'output window, operand 0']
    %13 = vsyncpa [#allocation3], 0
    %s14 = scalar_lea.sflag [#allocation3], 1
    %15 = vsyncpa %s14, 0
    %16 = vsyncpa [#allocation6], 0
    %17 = vsyncpa [#allocation4], 0
    %s18 = scalar_lea.sflag [#allocation4], 1
    %19 = vsyncpa %s18, 0
    loop: start=0, step=1, limit=4
    $region2: #{tpu_custom_call.1} parent=1 // loop_pre_header
      _
    $region3: #{tpu_custom_call.1} parent=1 // loop_header
      %s21 = sphi 0, %s25
      %p22 = scmp.ge.s32.totalorder %s21, 4
      %s31 = sphi 0, %s33
      %s34 = sphi 0, %s31
      %s35 = sphi 0, %s34
      %s51 = sphi 0, %s35
      %s57 = sphi 0, %s59
      %s60 = sphi 0, %s57
      %s61 = sphi 0, %s60
      %s77 = sphi 0, %s61
      %s81 = sphi 0, %s81
      %s83 = sphi 0, %s81
      %s84 = sphi 0, %s83
      %s98 = sphi 0, %s84
      %s102 = sphi 0, %s102
      %s104 = sphi 0, %s102
      %s105 = sphi 0, %s104
      %s119 = sphi 0, %s105
      %s123 = sphi 0, %s123
      %s125 = sphi 0, %s123
      %s126 = sphi 0, %s125
      %s140 = sphi 0, %s126
      %s144 = sphi 0, %s144
      %s146 = sphi 0, %s144
      %s147 = sphi 0, %s146
      %s161 = sphi 0, %s147
      %s165 = sphi 0, %s165
      %s167 = sphi 0, %s165
      %s168 = sphi 0, %s167
      %s182 = sphi 0, %s168
      %s186 = sphi 0, %s186
      %s188 = sphi 0, %s186
      %s189 = sphi 0, %s188
      %s203 = sphi 0, %s189
      %s209 = sphi 0, %s211
      %s212 = sphi 0, %s209
      %s213 = sphi 0, %s212
      %s229 = sphi 0, %s213
    $region4: #{tpu_custom_call.1} parent=1 // loop_header_branch
      %24 = sbr.rel (%p22) target = $region8
    $region5: #{tpu_custom_call.1} parent=1 // loop_body
      %s26 = ssub.s32 %s21, 1
      %s27 = ssub.s32 %s21, 2
      %s28 = sadd.s32 %s21, 1
      %s29 = ssub.s32 %s21, %s28
      %p30 = scmp.eq.s32.totalorder %s29, 0
      %s32 = sadd.s32 %s31, 1
      %s33 = scalar_select %p30, %s31, %s32
      %p36 = pneg %p30
      %p37 = scmp.eq.s32.totalorder %s21, 1
      %p38 = por %p36, %p37
      %p39 = scmp.ne.s32.totalorder %s31, %s34
      %p40 = scmp.eq.s32.totalorder %s21, 0
      %p41 = por %p39, %p40
      %p42 = scmp.ne.s32.totalorder %s31, %s34
      %p43 = scmp.eq.s32.totalorder %s26, 1
      %p44 = por %p42, %p43
      %p45 = scmp.ne.s32.totalorder %s34, %s35
      %p46 = scmp.eq.s32.totalorder %s26, 0
      %p47 = por %p45, %p46
      %p48 = scmp.ne.s32.totalorder %s34, %s35
      %p49 = scmp.eq.s32.totalorder %s27, 1
      %p50 = por %p48, %p49
      %p52 = scmp.ne.s32.totalorder %s35, %s51
      %p53 = scmp.eq.s32.totalorder %s27, 0
      %p54 = por %p52, %p53
      %s55 = ssub.s32 %s21, %s28
      %p56 = scmp.eq.s32.totalorder %s55, 0
      %s58 = sadd.s32 %s57, 1
      %s59 = scalar_select %p56, %s57, %s58
      %p62 = pneg %p56
      %p63 = scmp.eq.s32.totalorder %s21, 1
      %p64 = por %p62, %p63
      %p65 = scmp.ne.s32.totalorder %s57, %s60
      %p66 = scmp.eq.s32.totalorder %s21, 0
      %p67 = por %p65, %p66
      %p68 = scmp.ne.s32.totalorder %s57, %s60
      %p69 = scmp.eq.s32.totalorder %s26, 1
      %p70 = por %p68, %p69
      %p71 = scmp.ne.s32.totalorder %s60, %s61
      %p72 = scmp.eq.s32.totalorder %s26, 0
      %p73 = por %p71, %p72
      %p74 = scmp.ne.s32.totalorder %s60, %s61
      %p75 = scmp.eq.s32.totalorder %s27, 1
      %p76 = por %p74, %p75
      %p78 = scmp.ne.s32.totalorder %s61, %s77
      %p79 = scmp.eq.s32.totalorder %s27, 0
      %p80 = por %p78, %p79
      %s82 = sadd.s32 %s81, 1
      %p85 = scmp.eq.s32.totalorder %s21, 1
      %p86 = scmp.ne.s32.totalorder %s81, %s83
      %p87 = scmp.eq.s32.totalorder %s21, 0
      %p88 = por %p86, %p87
      %p89 = scmp.ne.s32.totalorder %s81, %s83
      %p90 = scmp.eq.s32.totalorder %s26, 1
      %p91 = por %p89, %p90
      %p92 = scmp.ne.s32.totalorder %s83, %s84
      %p93 = scmp.eq.s32.totalorder %s26, 0
      %p94 = por %p92, %p93
      %p95 = scmp.ne.s32.totalorder %s83, %s84
      %p96 = scmp.eq.s32.totalorder %s27, 1
      %p97 = por %p95, %p96
      %p99 = scmp.ne.s32.totalorder %s84, %s98
      %p100 = scmp.eq.s32.totalorder %s27, 0
      %p101 = por %p99, %p100
      %s103 = sadd.s32 %s102, 1
      %p106 = scmp.eq.s32.totalorder %s21, 1
      %p107 = scmp.ne.s32.totalorder %s102, %s104
      %p108 = scmp.eq.s32.totalorder %s21, 0
      %p109 = por %p107, %p108
      %p110 = scmp.ne.s32.totalorder %s102, %s104
      %p111 = scmp.eq.s32.totalorder %s26, 1
      %p112 = por %p110, %p111
      %p113 = scmp.ne.s32.totalorder %s104, %s105
      %p114 = scmp.eq.s32.totalorder %s26, 0
      %p115 = por %p113, %p114
      %p116 = scmp.ne.s32.totalorder %s104, %s105
      %p117 = scmp.eq.s32.totalorder %s27, 1
      %p118 = por %p116, %p117
      %p120 = scmp.ne.s32.totalorder %s105, %s119
      %p121 = scmp.eq.s32.totalorder %s27, 0
      %p122 = por %p120, %p121
      %s124 = sadd.s32 %s123, 1
      %p127 = scmp.eq.s32.totalorder %s21, 1
      %p128 = scmp.ne.s32.totalorder %s123, %s125
      %p129 = scmp.eq.s32.totalorder %s21, 0
      %p130 = por %p128, %p129
      %p131 = scmp.ne.s32.totalorder %s123, %s125
      %p132 = scmp.eq.s32.totalorder %s26, 1
      %p133 = por %p131, %p132
      %p134 = scmp.ne.s32.totalorder %s125, %s126
      %p135 = scmp.eq.s32.totalorder %s26, 0
      %p136 = por %p134, %p135
      %p137 = scmp.ne.s32.totalorder %s125, %s126
      %p138 = scmp.eq.s32.totalorder %s27, 1
      %p139 = por %p137, %p138
      %p141 = scmp.ne.s32.totalorder %s126, %s140
      %p142 = scmp.eq.s32.totalorder %s27, 0
      %p143 = por %p141, %p142
      %s145 = sadd.s32 %s144, 1
      %p148 = scmp.eq.s32.totalorder %s21, 1
      %p149 = scmp.ne.s32.totalorder %s144, %s146
      %p150 = scmp.eq.s32.totalorder %s21, 0
      %p151 = por %p149, %p150
      %p152 = scmp.ne.s32.totalorder %s144, %s146
      %p153 = scmp.eq.s32.totalorder %s26, 1
      %p154 = por %p152, %p153
      %p155 = scmp.ne.s32.totalorder %s146, %s147
      %p156 = scmp.eq.s32.totalorder %s26, 0
      %p157 = por %p155, %p156
      %p158 = scmp.ne.s32.totalorder %s146, %s147
      %p159 = scmp.eq.s32.totalorder %s27, 1
      %p160 = por %p158, %p159
      %p162 = scmp.ne.s32.totalorder %s147, %s161
      %p163 = scmp.eq.s32.totalorder %s27, 0
      %p164 = por %p162, %p163
      %s166 = sadd.s32 %s165, 1
      %p169 = scmp.eq.s32.totalorder %s21, 1
      %p170 = scmp.ne.s32.totalorder %s165, %s167
      %p171 = scmp.eq.s32.totalorder %s21, 0
      %p172 = por %p170, %p171
      %p173 = scmp.ne.s32.totalorder %s165, %s167
      %p174 = scmp.eq.s32.totalorder %s26, 1
      %p175 = por %p173, %p174
      %p176 = scmp.ne.s32.totalorder %s167, %s168
      %p177 = scmp.eq.s32.totalorder %s26, 0
      %p178 = por %p176, %p177
      %p179 = scmp.ne.s32.totalorder %s167, %s168
      %p180 = scmp.eq.s32.totalorder %s27, 1
      %p181 = por %p179, %p180
      %p183 = scmp.ne.s32.totalorder %s168, %s182
      %p184 = scmp.eq.s32.totalorder %s27, 0
      %p185 = por %p183, %p184
      %s187 = sadd.s32 %s186, 1
      %p190 = scmp.eq.s32.totalorder %s21, 1
      %p191 = scmp.ne.s32.totalorder %s186, %s188
      %p192 = scmp.eq.s32.totalorder %s21, 0
      %p193 = por %p191, %p192
      %p194 = scmp.ne.s32.totalorder %s186, %s188
      %p195 = scmp.eq.s32.totalorder %s26, 1
      %p196 = por %p194, %p195
      %p197 = scmp.ne.s32.totalorder %s188, %s189
      %p198 = scmp.eq.s32.totalorder %s26, 0
      %p199 = por %p197, %p198
      %p200 = scmp.ne.s32.totalorder %s188, %s189
      %p201 = scmp.eq.s32.totalorder %s27, 1
      %p202 = por %p200, %p201
      %p204 = scmp.ne.s32.totalorder %s189, %s203
      %p205 = scmp.eq.s32.totalorder %s27, 0
      %p206 = por %p204, %p205
      %s207 = ssub.s32 %s21, %s28
      %p208 = scmp.eq.s32.totalorder %s207, 0
      %s210 = sadd.s32 %s209, 1
      %s211 = scalar_select %p208, %s209, %s210
      %p214 = pneg %p208
      %p215 = scmp.eq.s32.totalorder %s21, 1
      %p216 = por %p214, %p215
      %p217 = scmp.ne.s32.totalorder %s209, %s212
      %p218 = scmp.eq.s32.totalorder %s21, 0
      %p219 = por %p217, %p218
      %p220 = scmp.ne.s32.totalorder %s209, %s212
      %p221 = scmp.eq.s32.totalorder %s26, 1
      %p222 = por %p220, %p221
      %p223 = scmp.ne.s32.totalorder %s212, %s213
      %p224 = scmp.eq.s32.totalorder %s26, 0
      %p225 = por %p223, %p224
      %p226 = scmp.ne.s32.totalorder %s212, %s213
      %p227 = scmp.eq.s32.totalorder %s27, 1
      %p228 = por %p226, %p227
      %p230 = scmp.ne.s32.totalorder %s213, %s229
      %p231 = scmp.eq.s32.totalorder %s27, 0
      %p232 = por %p230, %p231
      %p233 = scmp.le.s32.totalorder 1, %s21
      %p234 = scmp.lt.s32.totalorder %s21, 3
      %p235 = pnand %p233, %p234
      %p236 = pneg %p235
      // Predicated region
      $region9: #{tpu_custom_call.1} parent=5 // pred_check
        _
      $region10: #{tpu_custom_call.1} parent=5 // pred_check_branch
        %238 = sbr.rel (%p235) target = $region12
      $region11: #{tpu_custom_call.1} parent=5 // pred_region
        %s239 = ssub.s32 %s21, 1
        // Predicated region
        $region13: #{tpu_custom_call.1} parent=11 // pred_check
          %p240 = pneg %p94
        $region14: #{tpu_custom_call.1} parent=11 // pred_check_branch
          %242 = sbr.rel (%p240) target = $region16
        $region15: #{tpu_custom_call.1} parent=11 // pred_region
          _
        $region16: #{tpu_custom_call.1} parent=11 // pred_fallthru
          _
        // Predicated region
        $region17: #{tpu_custom_call.1} parent=11 // pred_check
          %p243 = pneg %p115
        $region18: #{tpu_custom_call.1} parent=11 // pred_check_branch
          %245 = sbr.rel (%p243) target = $region20
        $region19: #{tpu_custom_call.1} parent=11 // pred_region
          _
        $region20: #{tpu_custom_call.1} parent=11 // pred_fallthru
          _
        // Predicated region
        $region21: #{tpu_custom_call.1} parent=11 // pred_check
          %p246 = pneg %p136
        $region22: #{tpu_custom_call.1} parent=11 // pred_check_branch
          %248 = sbr.rel (%p246) target = $region24
        $region23: #{tpu_custom_call.1} parent=11 // pred_region
          %s250 = ssub.s32 256, 256
          %251 = vsyncadd [#allocation6], %s250
          %s252 = sshll.u32 [#allocation5], 4
          %s253 = int_to_ptr.vmem [resolvable:$true] %s252
          %258 = dma.hbm_to_vmem [thread:$0]  %s4, 256, %s253, [#allocation6], 64, 64, 4
        $region24: #{tpu_custom_call.1} parent=11 // pred_fallthru
          _
        // Predicated region
        $region25: #{tpu_custom_call.1} parent=11 // pred_check
          %p259 = pneg %p157
        $region26: #{tpu_custom_call.1} parent=11 // pred_check_branch
          %261 = sbr.rel (%p259) target = $region28
        $region27: #{tpu_custom_call.1} parent=11 // pred_region
          _
        $region28: #{tpu_custom_call.1} parent=11 // pred_fallthru
          _
        // Predicated region
        $region29: #{tpu_custom_call.1} parent=11 // pred_check
          %p262 = pneg %p178
        $region30: #{tpu_custom_call.1} parent=11 // pred_check_branch
          %264 = sbr.rel (%p262) target = $region32
        $region31: #{tpu_custom_call.1} parent=11 // pred_region
          _
        $region32: #{tpu_custom_call.1} parent=11 // pred_fallthru
          _
        // Predicated region
        $region33: #{tpu_custom_call.1} parent=11 // pred_check
          %p265 = pneg %p199
        $region34: #{tpu_custom_call.1} parent=11 // pred_check_branch
          %267 = sbr.rel (%p265) target = $region36
        $region35: #{tpu_custom_call.1} parent=11 // pred_region
          _
        $region36: #{tpu_custom_call.1} parent=11 // pred_fallthru
          _
      $region12: #{tpu_custom_call.1} parent=5 // pred_fallthru
        _
      %p268 = scmp.lt.s32.totalorder %s21, 2
      // Predicated region
      $region37: #{tpu_custom_call.1} parent=5 // pred_check
        %p269 = pneg %p268
      $region38: #{tpu_custom_call.1} parent=5 // pred_check_branch
        %271 = sbr.rel (%p269) target = $region40
      $region39: #{tpu_custom_call.1} parent=5 // pred_region
        // Predicated region
        $region41: #{tpu_custom_call.1} parent=39 // pred_check
          %p272 = pneg %p41
        $region42: #{tpu_custom_call.1} parent=39 // pred_check_branch
          %274 = sbr.rel (%p272) target = $region44
        $region43: #{tpu_custom_call.1} parent=39 // pred_region
          %s275 = sand.u32 %s31, 1
          %s276 = scalar_lea.sflag [#allocation3], %s275
          %s277 = sand.u32 %s31, 1
          %s278 = smul.addr %s277, 64
          %s279 = scalar_lea.vmem [#allocation2], %s278
          %s281 = ssub.s32 1024, 1024
          %282 = vsyncadd %s276, %s281
          %s283 = smul.addr %s21, 8
          %s284 = smul.addr %s283, 128
          %s285 = scalar_lea.hbm %s0, %s284
          %s286 = sshll.u32 %s279, 4
          %s287 = int_to_ptr.vmem [resolvable:$true] %s286
          %292 = dma.hbm_to_vmem [thread:$0]  %s285, 1024, %s287, %s276, 128, 128, 8
        $region44: #{tpu_custom_call.1} parent=39 // pred_fallthru
          _
        // Predicated region
        $region45: #{tpu_custom_call.1} parent=39 // pred_check
          %p293 = pneg %p67
        $region46: #{tpu_custom_call.1} parent=39 // pred_check_branch
          %295 = sbr.rel (%p293) target = $region48
        $region47: #{tpu_custom_call.1} parent=39 // pred_region
          %p296 = scmp.lt.s32.totalorder %s21, 1
          %s297 = scalar_select %p296, %s21, 1
          %s298 = scalar_lea.vmem %s1, %s297
        $region48: #{tpu_custom_call.1} parent=39 // pred_fallthru
          _
      $region40: #{tpu_custom_call.1} parent=5 // pred_fallthru
        _
      %p299 = scmp.le.s32.totalorder 1, %s21
      %p300 = scmp.lt.s32.totalorder %s21, 3
      %p301 = pnand %p299, %p300
      %p302 = pneg %p301
      // Predicated region
      $region49: #{tpu_custom_call.1} parent=5 // pred_check
        _
      $region50: #{tpu_custom_call.1} parent=5 // pred_check_branch
        %304 = sbr.rel (%p301) target = $region52
      $region51: #{tpu_custom_call.1} parent=5 // pred_region
        %s305 = ssub.s32 %s21, 1
        %s306 = sand.u32 %s34, 1
        %s307 = scalar_lea.sflag [#allocation3], %s306
        %s308 = sand.u32 %s34, 1
        %s309 = smul.addr %s308, 64
        %s310 = scalar_lea.vmem [#allocation2], %s309
        // Predicated region
        $region53: #{tpu_custom_call.1} parent=51 // pred_check
          %p311 = pneg %p47
        $region54: #{tpu_custom_call.1} parent=51 // pred_check_branch
          %313 = sbr.rel (%p311) target = $region56
        $region55: #{tpu_custom_call.1} parent=51 // pred_region
          %314 = dma.done %s307, 1024
        $region56: #{tpu_custom_call.1} parent=51 // pred_fallthru
          _
        // Predicated region
        $region57: #{tpu_custom_call.1} parent=51 // pred_check
          %p315 = pneg %p136
        $region58: #{tpu_custom_call.1} parent=51 // pred_check_branch
          %317 = sbr.rel (%p315) target = $region60
        $region59: #{tpu_custom_call.1} parent=51 // pred_region
          %318 = dma.done [#allocation6], 256
        $region60: #{tpu_custom_call.1} parent=51 // pred_fallthru
          _
        %s319 = sand.u32 %s34, 1
        %s320 = scalar_lea.sflag [#allocation3], %s319
        %s321 = sand.u32 %s34, 1
        %s322 = smul.addr %s321, 64
        %s323 = scalar_lea.vmem [#allocation2], %s322
        %p324 = pneg %p47
        %p325 = pneg %p44
        %p326 = scmp.lt.s32.totalorder %s26, 1
        %s327 = scalar_select %p326, %s26, 1
        %s328 = scalar_lea.vmem %s1, %s327
        %p329 = pneg %p73
        %p330 = pneg %p70
        %p331 = pneg %p94
        %p332 = pneg %p91
        %p333 = pneg %p115
        %p334 = pneg %p112
        %p335 = pneg %p136
        %p336 = pneg %p133
        %p337 = pneg %p157
        %p338 = pneg %p154
        %p339 = pneg %p178
        %p340 = pneg %p175
        %p341 = pneg %p199
        %p342 = pneg %p196
        %p343 = pneg %p225
        %p344 = pneg %p222
        %s345 = sand.u32 %s212, 1
        %s346 = scalar_lea.sflag [#allocation4], %s345
        %s347 = sand.u32 %s212, 1
        %s348 = smul.addr %s347, 64
        %s349 = scalar_lea.vmem [#allocation7], %s348
        %p350 = scmp.lt.s32.totalorder %s26, 1
        %s351 = scalar_select %p350, %s26, 1
        %s352 = scalar_lea.vmem %s1, %s351
        %v354 = vld [vmem:[%s310] sm:$0xff]
        %v355 = vld [vmem:[%s310 + $0x8] sm:$0xff]
        %v356 = vld [vmem:[%s310 + $0x10] sm:$0xff]
        %v357 = vld [vmem:[%s310 + $0x18] sm:$0xff]
        %v358 = vld [vmem:[%s310 + $0x20] sm:$0xff]
        %v359 = vld [vmem:[%s310 + $0x28] sm:$0xff]
        %v360 = vld [vmem:[%s310 + $0x30] sm:$0xff]
        %v361 = vld [vmem:[%s310 + $0x38] sm:$0xff]
        %v362 = vld [vmem:[%s352] sm:$0x1]
        %v363 = vld [vmem:[%s2] sm:$0x1]
        %v364 = vld [vmem:[%s3] sm:$0x1]
        %vm365 = vcmask 261120
        %v366 = vsel %vm365, %v354, 0.0
        %367 = vadd.xlane.f32.xlu0 %v366
        %v368 = vpop.xlane.xlu0 %367
        %v369 = vsel %vm365, %v355, 0.0
        %370 = vadd.xlane.f32.xlu0 %v369
        %v371 = vpop.xlane.xlu0 %370
        %v372 = vsel %vm365, %v356, 0.0
        %373 = vadd.xlane.f32.xlu0 %v372
        %v374 = vpop.xlane.xlu0 %373
        %v375 = vsel %vm365, %v357, 0.0
        %376 = vadd.xlane.f32.xlu0 %v375
        %v377 = vpop.xlane.xlu0 %376
        %v378 = vsel %vm365, %v358, 0.0
        %379 = vadd.xlane.f32.xlu0 %v378
        %v380 = vpop.xlane.xlu0 %379
        %v381 = vsel %vm365, %v359, 0.0
        %382 = vadd.xlane.f32.xlu0 %v381
        %v383 = vpop.xlane.xlu0 %382
        %v384 = vsel %vm365, %v360, 0.0
        %385 = vadd.xlane.f32.xlu0 %v384
        %v386 = vpop.xlane.xlu0 %385
        %v387 = vsel %vm365, %v361, 0.0
        %388 = vadd.xlane.f32.xlu0 %v387
        %v389 = vpop.xlane.xlu0 %388
        %v390 = vrcp.pop 32.0
        %v391 = vmul.f32 %v368, %v390
        %v392 = vmul.f32 %v371, %v390
        %v393 = vmul.f32 %v374, %v390
        %v394 = vmul.f32 %v377, %v390
        %v395 = vmul.f32 %v380, %v390
        %v396 = vmul.f32 %v383, %v390
        %v397 = vmul.f32 %v386, %v390
        %v398 = vmul.f32 %v389, %v390
        %v399 = vsub.f32 %v354, %v391
        %v400 = vsub.f32 %v355, %v392
        %v401 = vsub.f32 %v356, %v393
        %v402 = vsub.f32 %v357, %v394
        %v403 = vsub.f32 %v358, %v395
        %v404 = vsub.f32 %v359, %v396
        %v405 = vsub.f32 %v360, %v397
        %v406 = vsub.f32 %v361, %v398
        %v407 = vmul.f32 %v399, %v399
        %v408 = vmul.f32 %v400, %v400
        %v409 = vmul.f32 %v401, %v401
        %v410 = vmul.f32 %v402, %v402
        %v411 = vmul.f32 %v403, %v403
        %v412 = vmul.f32 %v404, %v404
        %v413 = vmul.f32 %v405, %v405
        %v414 = vmul.f32 %v406, %v406
        %v415 = vsel %vm365, %v407, 0.0
        %416 = vadd.xlane.f32.xlu0 %v415
        %v417 = vpop.xlane.xlu0 %416
        %v418 = vsel %vm365, %v408, 0.0
        %419 = vadd.xlane.f32.xlu0 %v418
        %v420 = vpop.xlane.xlu0 %419
        %v421 = vsel %vm365, %v409, 0.0
        %422 = vadd.xlane.f32.xlu0 %v421
        %v423 = vpop.xlane.xlu0 %422
        %v424 = vsel %vm365, %v410, 0.0
        %425 = vadd.xlane.f32.xlu0 %v424
        %v426 = vpop.xlane.xlu0 %425
        %v427 = vsel %vm365, %v411, 0.0
        %428 = vadd.xlane.f32.xlu0 %v427
        %v429 = vpop.xlane.xlu0 %428
        %v430 = vsel %vm365, %v412, 0.0
        %431 = vadd.xlane.f32.xlu0 %v430
        %v432 = vpop.xlane.xlu0 %431
        %v433 = vsel %vm365, %v413, 0.0
        %434 = vadd.xlane.f32.xlu0 %v433
        %v435 = vpop.xlane.xlu0 %434
        %v436 = vsel %vm365, %v414, 0.0
        %437 = vadd.xlane.f32.xlu0 %v436
        %v438 = vpop.xlane.xlu0 %437
        %v439 = vmul.f32 %v417, %v390
        %v440 = vmul.f32 %v420, %v390
        %v441 = vmul.f32 %v423, %v390
        %v442 = vmul.f32 %v426, %v390
        %v443 = vmul.f32 %v429, %v390
        %v444 = vmul.f32 %v432, %v390
        %v445 = vmul.f32 %v435, %v390
        %v446 = vmul.f32 %v438, %v390
        %v447 = vadd.f32 %v439, 1e-05
        %v448 = vadd.f32 %v440, 1e-05
        %v449 = vadd.f32 %v441, 1e-05
        %v450 = vadd.f32 %v442, 1e-05
        %v451 = vadd.f32 %v443, 1e-05
        %v452 = vadd.f32 %v444, 1e-05
        %v453 = vadd.f32 %v445, 1e-05
        %v454 = vadd.f32 %v446, 1e-05
        %v455 = vrsqrt.pop %v447
        %v456 = vrsqrt.pop %v448
        %v457 = vrsqrt.pop %v449
        %v458 = vrsqrt.pop %v450
        %v459 = vrsqrt.pop %v451
        %v460 = vrsqrt.pop %v452
        %v461 = vrsqrt.pop %v453
        %v462 = vrsqrt.pop %v454
        %v463 = vmul.f32 %v399, %v455
        %v464 = vmul.f32 %v400, %v456
        %v465 = vmul.f32 %v401, %v457
        %v466 = vmul.f32 %v402, %v458
        %v467 = vmul.f32 %v403, %v459
        %v468 = vmul.f32 %v404, %v460
        %v469 = vmul.f32 %v405, %v461
        %v470 = vmul.f32 %v406, %v462
        %v472 = vlaneseq
        %v473 = vshrl.u32 %v472, 7
        %v474 = vsub.s32 0, %v473
        %v475 = vrot.slane %v363, %v474
        %v477 = vmul.f32 %v463, %v475
        %v478 = vmul.f32 %v464, %v475
        %v479 = vmul.f32 %v465, %v475
        %v480 = vmul.f32 %v466, %v475
        %v481 = vmul.f32 %v467, %v475
        %v482 = vmul.f32 %v468, %v475
        %v483 = vmul.f32 %v469, %v475
        %v484 = vmul.f32 %v470, %v475
        %v486 = vlaneseq
        %v487 = vshrl.u32 %v486, 7
        %v488 = vsub.s32 0, %v487
        %v489 = vrot.slane %v364, %v488
        %v491 = vadd.f32 %v477, %v489
        %v492 = vadd.f32 %v478, %v489
        %v493 = vadd.f32 %v479, %v489
        %v494 = vadd.f32 %v480, %v489
        %v495 = vadd.f32 %v481, %v489
        %v496 = vadd.f32 %v482, %v489
        %v497 = vadd.f32 %v483, %v489
        %v498 = vadd.f32 %v484, %v489
        %v499 = vld [vmem:[#allocation5] sm:$0xf]
        %v500 = vld [vmem:[#allocation5 + $0x4] sm:$0xf]
        %v501 = vld [vmem:[#allocation5 + $0x8] sm:$0xf]
        %v502 = vld [vmem:[#allocation5 + $0xc] sm:$0xf]
        %v503 = vld [vmem:[%s5] sm:$0x1]
        %v504 = vpack.c.bf16 %v492, %v491
        %v505 = vpack.c.bf16 %v494, %v493
        %v506 = vpack.c.bf16 %v496, %v495
        %v507 = vpack.c.bf16 %v498, %v497
        %v509 = vlaneseq
        %v510 = vshrl.u32 %v509, 7
        %v511 = vsub.s32 0, %v510
        %v512 = vrot.slane %v503, %v511
        %v518 = vunpack.c.l.b16 %v499
        %v519 = vunpack.c.l.b16 %v500
        %v520 = vunpack.c.l.b16 %v501
        %v521 = vunpack.c.l.b16 %v502
        %v522 = vpack.c.b16 %v519, %v518
        %v523 = vpack.c.b16 %v521, %v520
        %v527 = vsel %vm365, %v504, 0
        %v530 = vsel %vm365, %v505, 0
        %v533 = vsel %vm365, %v506, 0
        %v536 = vsel %vm365, %v507, 0
        %538 = vmatprep.subr.bf16.mxu0 0
        %539 = vmatpush1.bf16.msra.mxu0 %v522
        %540 = vmatprep.subr.bf16.mxu0 0
        %541 = vmatpush1.bf16.msra.mxu0 %v523
        %542 = vmatprep.subr.bf16.mxu0 0
        %543 = vmatpush1.bf16.msra.mxu0 0
        %544 = vmatprep.subr.bf16.mxu0 0
        %545 = vmatpush1.bf16.msra.mxu0 0
        %546 = vmatprep.subr.bf16.mxu0 0
        %547 = vmatpush1.bf16.msra.mxu0 0
        %548 = vmatprep.subr.bf16.mxu0 0
        %549 = vmatpush1.bf16.msra.mxu0 0
        %550 = vmatprep.subr.bf16.mxu0 0
        %551 = vmatpush1.bf16.msra.mxu0 0
        %552 = vmatprep.subr.bf16.mxu0 0
        %553 = vmatpush1.bf16.msra.mxu0 0
        %554 = vmatprep.subr.bf16.mxu0 0
        %555 = vmatpush1.bf16.msra.mxu0 0
        %556 = vmatprep.subr.bf16.mxu0 0
        %557 = vmatpush1.bf16.msra.mxu0 0
        %558 = vmatprep.subr.bf16.mxu0 0
        %559 = vmatpush1.bf16.msra.mxu0 0
        %560 = vmatprep.subr.bf16.mxu0 0
        %561 = vmatpush1.bf16.msra.mxu0 0
        %562 = vmatprep.subr.bf16.mxu0 0
        %563 = vmatpush1.bf16.msra.mxu0 0
        %564 = vmatprep.subr.bf16.mxu0 0
        %565 = vmatpush1.bf16.msra.mxu0 0
        %566 = vmatprep.subr.bf16.mxu0 0
        %567 = vmatpush1.bf16.msra.mxu0 0
        %568 = vmatprep.subr.bf16.mxu0 0
        %569 = vmatpush1.bf16.msra.mxu0 0
        %570 = vmatprep.mubr.bf16.mxu0 0
        %571 = vmatmul.mubr.bf16.gmra.mrb[0].mxu0 %v527
        %v572 = vpop.f32.mrb[0].mxu0
        %v573 = vadd.f32 %v512, %v572
        %v574 = vpop.f32.mrb[0].mxu0
        %v575 = vpop.f32.mrb[0].mxu0
        %v576 = vadd.f32 %v512, %v575
        %v577 = vpop.f32.mrb[0].mxu0
        %578 = vmatprep.mubr.bf16.mxu0 0
        %579 = vmatmul.mubr.bf16.gmra.mrb[0].mxu0 %v530
        %v580 = vpop.f32.mrb[0].mxu0
        %v581 = vadd.f32 %v512, %v580
        %v582 = vpop.f32.mrb[0].mxu0
        %v583 = vpop.f32.mrb[0].mxu0
        %v584 = vadd.f32 %v512, %v583
        %v585 = vpop.f32.mrb[0].mxu0
        %586 = vmatprep.mubr.bf16.mxu0 0
        %587 = vmatmul.mubr.bf16.gmra.mrb[0].mxu0 %v533
        %v588 = vpop.f32.mrb[0].mxu0
        %v589 = vadd.f32 %v512, %v588
        %v590 = vpop.f32.mrb[0].mxu0
        %v591 = vpop.f32.mrb[0].mxu0
        %v592 = vadd.f32 %v512, %v591
        %v593 = vpop.f32.mrb[0].mxu0
        %594 = vmatprep.mubr.bf16.mxu0 0
        %595 = vmatmul.mubr.bf16.gmra.mrb[0].mxu0 %v536
        %v596 = vpop.f32.mrb[0].mxu0
        %v597 = vadd.f32 %v512, %v596
        %v598 = vpop.f32.mrb[0].mxu0
        %v599 = vpop.f32.mrb[0].mxu0
        %v600 = vadd.f32 %v512, %v599
        %v601 = vpop.f32.mrb[0].mxu0
        %602 = vdwg.mxu0
        %611 = vrot.lane.b32.xlu0 %v573, 120
        %v612 = vpop.permute.xlu0 %611
        %613 = vrot.lane.b32.xlu0 %v576, 120
        %v614 = vpop.permute.xlu0 %613
        %615 = vrot.lane.b32.xlu0 %v581, 120
        %v616 = vpop.permute.xlu0 %615
        %617 = vrot.lane.b32.xlu0 %v584, 120
        %v618 = vpop.permute.xlu0 %617
        %619 = vrot.lane.b32.xlu0 %v589, 120
        %v620 = vpop.permute.xlu0 %619
        %621 = vrot.lane.b32.xlu0 %v592, 120
        %v622 = vpop.permute.xlu0 %621
        %623 = vrot.lane.b32.xlu0 %v597, 120
        %v624 = vpop.permute.xlu0 %623
        %625 = vrot.lane.b32.xlu0 %v600, 120
        %v626 = vpop.permute.xlu0 %625
        %635 = vrot.lane.b32.xlu0 %v573, 112
        %v636 = vpop.permute.xlu0 %635
        %637 = vrot.lane.b32.xlu0 %v576, 112
        %v638 = vpop.permute.xlu0 %637
        %639 = vrot.lane.b32.xlu0 %v581, 112
        %v640 = vpop.permute.xlu0 %639
        %641 = vrot.lane.b32.xlu0 %v584, 112
        %v642 = vpop.permute.xlu0 %641
        %643 = vrot.lane.b32.xlu0 %v589, 112
        %v644 = vpop.permute.xlu0 %643
        %645 = vrot.lane.b32.xlu0 %v592, 112
        %v646 = vpop.permute.xlu0 %645
        %647 = vrot.lane.b32.xlu0 %v597, 112
        %v648 = vpop.permute.xlu0 %647
        %649 = vrot.lane.b32.xlu0 %v600, 112
        %v650 = vpop.permute.xlu0 %649
        %659 = vrot.lane.b32.xlu0 %v573, 104
        %v660 = vpop.permute.xlu0 %659
        %661 = vrot.lane.b32.xlu0 %v576, 104
        %v662 = vpop.permute.xlu0 %661
        %663 = vrot.lane.b32.xlu0 %v581, 104
        %v664 = vpop.permute.xlu0 %663
        %665 = vrot.lane.b32.xlu0 %v584, 104
        %v666 = vpop.permute.xlu0 %665
        %667 = vrot.lane.b32.xlu0 %v589, 104
        %v668 = vpop.permute.xlu0 %667
        %669 = vrot.lane.b32.xlu0 %v592, 104
        %v670 = vpop.permute.xlu0 %669
        %671 = vrot.lane.b32.xlu0 %v597, 104
        %v672 = vpop.permute.xlu0 %671
        %673 = vrot.lane.b32.xlu0 %v600, 104
        %v674 = vpop.permute.xlu0 %673
        %v683 = vpack.c.bf16 %v573, %v573
        %v684 = vpack.c.bf16 %v576, %v576
        %v685 = vpack.c.bf16 %v581, %v581
        %v686 = vpack.c.bf16 %v584, %v584
        %v687 = vpack.c.bf16 %v589, %v589
        %v688 = vpack.c.bf16 %v592, %v592
        %v689 = vpack.c.bf16 %v597, %v597
        %v690 = vpack.c.bf16 %v600, %v600
        %v691 = vpack.c.bf16 %v612, %v612
        %v692 = vpack.c.bf16 %v614, %v614
        %v693 = vpack.c.bf16 %v616, %v616
        %v694 = vpack.c.bf16 %v618, %v618
        %v695 = vpack.c.bf16 %v620, %v620
        %v696 = vpack.c.bf16 %v622, %v622
        %v697 = vpack.c.bf16 %v624, %v624
        %v698 = vpack.c.bf16 %v626, %v626
        %v699 = vpack.c.bf16 %v636, %v636
        %v700 = vpack.c.bf16 %v638, %v638
        %v701 = vpack.c.bf16 %v640, %v640
        %v702 = vpack.c.bf16 %v642, %v642
        %v703 = vpack.c.bf16 %v644, %v644
        %v704 = vpack.c.bf16 %v646, %v646
        %v705 = vpack.c.bf16 %v648, %v648
        %v706 = vpack.c.bf16 %v650, %v650
        %v707 = vpack.c.bf16 %v660, %v660
        %v708 = vpack.c.bf16 %v662, %v662
        %v709 = vpack.c.bf16 %v664, %v664
        %v710 = vpack.c.bf16 %v666, %v666
        %v711 = vpack.c.bf16 %v668, %v668
        %v712 = vpack.c.bf16 %v670, %v670
        %v713 = vpack.c.bf16 %v672, %v672
        %v714 = vpack.c.bf16 %v674, %v674
        %716 = vrot.lane.b32.xlu0 %v683, 96
        %v717 = vpop.permute.xlu0 %716
        %vm718 = vcmask 64512
        %v720 = vsel %vm718, %v683, 0
        %v723 = vsel %vm718, %v717, 0
        %725 = vmatprep.subr.bf16.mxu0 0
        %726 = vmatpush1.bf16.xpose.msra.mxu0 %v723
        %727 = vmatprep.subr.bf16.mxu0 0
        %728 = vmatpush1.bf16.xpose.msra.mxu0 0
        %729 = vmatprep.subr.bf16.mxu0 0
        %730 = vmatpush1.bf16.xpose.msra.mxu0 0
        %731 = vmatprep.subr.bf16.mxu0 0
        %732 = vmatpush1.bf16.xpose.msra.mxu0 0
        %733 = vmatprep.subr.bf16.mxu0 0
        %734 = vmatpush1.bf16.xpose.msra.mxu0 0
        %735 = vmatprep.subr.bf16.mxu0 0
        %736 = vmatpush1.bf16.xpose.msra.mxu0 0
        %737 = vmatprep.subr.bf16.mxu0 0
        %738 = vmatpush1.bf16.xpose.msra.mxu0 0
        %739 = vmatprep.subr.bf16.mxu0 0
        %740 = vmatpush1.bf16.xpose.msra.mxu0 0
        %741 = vmatprep.subr.bf16.mxu0 0
        %742 = vmatpush1.bf16.xpose.msra.mxu0 0
        %743 = vmatprep.subr.bf16.mxu0 0
        %744 = vmatpush1.bf16.xpose.msra.mxu0 0
        %745 = vmatprep.subr.bf16.mxu0 0
        %746 = vmatpush1.bf16.xpose.msra.mxu0 0
        %747 = vmatprep.subr.bf16.mxu0 0
        %748 = vmatpush1.bf16.xpose.msra.mxu0 0
        %749 = vmatprep.subr.bf16.mxu0 0
        %750 = vmatpush1.bf16.xpose.msra.mxu0 0
        %751 = vmatprep.subr.bf16.mxu0 0
        %752 = vmatpush1.bf16.xpose.msra.mxu0 0
        %753 = vmatprep.subr.bf16.mxu0 0
        %754 = vmatpush1.bf16.xpose.msra.mxu0 0
        %755 = vmatprep.subr.bf16.mxu0 0
        %756 = vmatpush1.bf16.xpose.msra.mxu0 0
        %757 = vmatprep.mubr.bf16.mxu0 0
        %758 = vmatmul.mubr.bf16.gmra.mrb[0].mxu0 %v720
        %v759 = vpop.f32.mrb[0].mxu0
        %v760 = vadd.f32 0.0, %v759
        %v761 = vpop.f32.mrb[0].mxu0
        %v762 = vpop.f32.mrb[0].mxu0
        %v763 = vpop.f32.mrb[0].mxu0
        %764 = vdwg.mxu0
        %766 = vrot.lane.b32.xlu0 %v684, 96
        %v767 = vpop.permute.xlu0 %766
        %v769 = vsel %vm718, %v684, 0
        %v772 = vsel %vm718, %v767, 0
        %774 = vmatprep.subr.bf16.mxu0 0
        %775 = vmatpush1.bf16.xpose.msra.mxu0 %v772
        %776 = vmatprep.subr.bf16.mxu0 0
        %777 = vmatpush1.bf16.xpose.msra.mxu0 0
        %778 = vmatprep.subr.bf16.mxu0 0
        %779 = vmatpush1.bf16.xpose.msra.mxu0 0
        %780 = vmatprep.subr.bf16.mxu0 0
        %781 = vmatpush1.bf16.xpose.msra.mxu0 0
        %782 = vmatprep.subr.bf16.mxu0 0
        %783 = vmatpush1.bf16.xpose.msra.mxu0 0
        %784 = vmatprep.subr.bf16.mxu0 0
        %785 = vmatpush1.bf16.xpose.msra.mxu0 0
        %786 = vmatprep.subr.bf16.mxu0 0
        %787 = vmatpush1.bf16.xpose.msra.mxu0 0
        %788 = vmatprep.subr.bf16.mxu0 0
        %789 = vmatpush1.bf16.xpose.msra.mxu0 0
        %790 = vmatprep.subr.bf16.mxu0 0
        %791 = vmatpush1.bf16.xpose.msra.mxu0 0
        %792 = vmatprep.subr.bf16.mxu0 0
        %793 = vmatpush1.bf16.xpose.msra.mxu0 0
        %794 = vmatprep.subr.bf16.mxu0 0
        %795 = vmatpush1.bf16.xpose.msra.mxu0 0
        %796 = vmatprep.subr.bf16.mxu0 0
        %797 = vmatpush1.bf16.xpose.msra.mxu0 0
        %798 = vmatprep.subr.bf16.mxu0 0
        %799 = vmatpush1.bf16.xpose.msra.mxu0 0
        %800 = vmatprep.subr.bf16.mxu0 0
        %801 = vmatpush1.bf16.xpose.msra.mxu0 0
        %802 = vmatprep.subr.bf16.mxu0 0
        %803 = vmatpush1.bf16.xpose.msra.mxu0 0
        %804 = vmatprep.subr.bf16.mxu0 0
        %805 = vmatpush1.bf16.xpose.msra.mxu0 0
        %806 = vmatprep.mubr.bf16.mxu0 0
        %807 = vmatmul.mubr.bf16.gmra.mrb[0].mxu0 %v769
        %v808 = vpop.f32.mrb[0].mxu0
        %v809 = vadd.f32 0.0, %v808
        %v810 = vpop.f32.mrb[0].mxu0
        %v811 = vpop.f32.mrb[0].mxu0
        %v812 = vpop.f32.mrb[0].mxu0
        %813 = vdwg.mxu0
        %815 = vrot.lane.b32.xlu0 %v685, 96
        %v816 = vpop.permute.xlu0 %815
        %v818 = vsel %vm718, %v685, 0
        %v821 = vsel %vm718, %v816, 0
        %823 = vmatprep.subr.bf16.mxu0 0
        %824 = vmatpush1.bf16.xpose.msra.mxu0 %v821
        %825 = vmatprep.subr.bf16.mxu0 0
        %826 = vmatpush1.bf16.xpose.msra.mxu0 0
        %827 = vmatprep.subr.bf16.mxu0 0
        %828 = vmatpush1.bf16.xpose.msra.mxu0 0
        %829 = vmatprep.subr.bf16.mxu0 0
        %830 = vmatpush1.bf16.xpose.msra.mxu0 0
        %831 = vmatprep.subr.bf16.mxu0 0
        %832 = vmatpush1.bf16.xpose.msra.mxu0 0
        %833 = vmatprep.subr.bf16.mxu0 0
        %834 = vmatpush1.bf16.xpose.msra.mxu0 0
        %835 = vmatprep.subr.bf16.mxu0 0
        %836 = vmatpush1.bf16.xpose.msra.mxu0 0
        %837 = vmatprep.subr.bf16.mxu0 0
        %838 = vmatpush1.bf16.xpose.msra.mxu0 0
        %839 = vmatprep.subr.bf16.mxu0 0
        %840 = vmatpush1.bf16.xpose.msra.mxu0 0
        %841 = vmatprep.subr.bf16.mxu0 0
        %842 = vmatpush1.bf16.xpose.msra.mxu0 0
        %843 = vmatprep.subr.bf16.mxu0 0
        %844 = vmatpush1.bf16.xpose.msra.mxu0 0
        %845 = vmatprep.subr.bf16.mxu0 0
        %846 = vmatpush1.bf16.xpose.msra.mxu0 0
        %847 = vmatprep.subr.bf16.mxu0 0
        %848 = vmatpush1.bf16.xpose.msra.mxu0 0
        %849 = vmatprep.subr.bf16.mxu0 0
        %850 = vmatpush1.bf16.xpose.msra.mxu0 0
        %851 = vmatprep.subr.bf16.mxu0 0
        %852 = vmatpush1.bf16.xpose.msra.mxu0 0
        %853 = vmatprep.subr.bf16.mxu0 0
        %854 = vmatpush1.bf16.xpose.msra.mxu0 0
        %855 = vmatprep.mubr.bf16.mxu0 0
        %856 = vmatmul.mubr.bf16.gmra.mrb[0].mxu0 %v818
        %v857 = vpop.f32.mrb[0].mxu0
        %v858 = vadd.f32 0.0, %v857
        %v859 = vpop.f32.mrb[0].mxu0
        %v860 = vpop.f32.mrb[0].mxu0
        %v861 = vpop.f32.mrb[0].mxu0
        %862 = vdwg.mxu0
        %864 = vrot.lane.b32.xlu0 %v686, 96
        %v865 = vpop.permute.xlu0 %864
        %v867 = vsel %vm718, %v686, 0
        %v870 = vsel %vm718, %v865, 0
        %872 = vmatprep.subr.bf16.mxu0 0
        %873 = vmatpush1.bf16.xpose.msra.mxu0 %v870
        %874 = vmatprep.subr.bf16.mxu0 0
        %875 = vmatpush1.bf16.xpose.msra.mxu0 0
        %876 = vmatprep.subr.bf16.mxu0 0
        %877 = vmatpush1.bf16.xpose.msra.mxu0 0
        %878 = vmatprep.subr.bf16.mxu0 0
        %879 = vmatpush1.bf16.xpose.msra.mxu0 0
        %880 = vmatprep.subr.bf16.mxu0 0
        %881 = vmatpush1.bf16.xpose.msra.mxu0 0
        %882 = vmatprep.subr.bf16.mxu0 0
        %883 = vmatpush1.bf16.xpose.msra.mxu0 0
        %884 = vmatprep.subr.bf16.mxu0 0
        %885 = vmatpush1.bf16.xpose.msra.mxu0 0
        %886 = vmatprep.subr.bf16.mxu0 0
        %887 = vmatpush1.bf16.xpose.msra.mxu0 0
        %888 = vmatprep.subr.bf16.mxu0 0
        %889 = vmatpush1.bf16.xpose.msra.mxu0 0
        %890 = vmatprep.subr.bf16.mxu0 0
        %891 = vmatpush1.bf16.xpose.msra.mxu0 0
        %892 = vmatprep.subr.bf16.mxu0 0
        %893 = vmatpush1.bf16.xpose.msra.mxu0 0
        %894 = vmatprep.subr.bf16.mxu0 0
        %895 = vmatpush1.bf16.xpose.msra.mxu0 0
        %896 = vmatprep.subr.bf16.mxu0 0
        %897 = vmatpush1.bf16.xpose.msra.mxu0 0
        %898 = vmatprep.subr.bf16.mxu0 0
        %899 = vmatpush1.bf16.xpose.msra.mxu0 0
        %900 = vmatprep.subr.bf16.mxu0 0
        %901 = vmatpush1.bf16.xpose.msra.mxu0 0
        %902 = vmatprep.subr.bf16.mxu0 0
        %903 = vmatpush1.bf16.xpose.msra.mxu0 0
        %904 = vmatprep.mubr.bf16.mxu0 0
        %905 = vmatmul.mubr.bf16.gmra.mrb[0].mxu0 %v867
        %v906 = vpop.f32.mrb[0].mxu0
        %v907 = vadd.f32 0.0, %v906
        %v908 = vpop.f32.mrb[0].mxu0
        %v909 = vpop.f32.mrb[0].mxu0
        %v910 = vpop.f32.mrb[0].mxu0
        %911 = vdwg.mxu0
        %913 = vrot.lane.b32.xlu0 %v687, 96
        %v914 = vpop.permute.xlu0 %913
        %v916 = vsel %vm718, %v687, 0
        %v919 = vsel %vm718, %v914, 0
        %921 = vmatprep.subr.bf16.mxu0 0
        %922 = vmatpush1.bf16.xpose.msra.mxu0 %v919
        %923 = vmatprep.subr.bf16.mxu0 0
        %924 = vmatpush1.bf16.xpose.msra.mxu0 0
        %925 = vmatprep.subr.bf16.mxu0 0
        %926 = vmatpush1.bf16.xpose.msra.mxu0 0
        %927 = vmatprep.subr.bf16.mxu0 0
        %928 = vmatpush1.bf16.xpose.msra.mxu0 0
        %929 = vmatprep.subr.bf16.mxu0 0
        %930 = vmatpush1.bf16.xpose.msra.mxu0 0
        %931 = vmatprep.subr.bf16.mxu0 0
        %932 = vmatpush1.bf16.xpose.msra.mxu0 0
        %933 = vmatprep.subr.bf16.mxu0 0
        %934 = vmatpush1.bf16.xpose.msra.mxu0 0
        %935 = vmatprep.subr.bf16.mxu0 0
        %936 = vmatpush1.bf16.xpose.msra.mxu0 0
        %937 = vmatprep.subr.bf16.mxu0 0
        %938 = vmatpush1.bf16.xpose.msra.mxu0 0
        %939 = vmatprep.subr.bf16.mxu0 0
        %940 = vmatpush1.bf16.xpose.msra.mxu0 0
        %941 = vmatprep.subr.bf16.mxu0 0
        %942 = vmatpush1.bf16.xpose.msra.mxu0 0
        %943 = vmatprep.subr.bf16.mxu0 0
        %944 = vmatpush1.bf16.xpose.msra.mxu0 0
        %945 = vmatprep.subr.bf16.mxu0 0
        %946 = vmatpush1.bf16.xpose.msra.mxu0 0
        %947 = vmatprep.subr.bf16.mxu0 0
        %948 = vmatpush1.bf16.xpose.msra.mxu0 0
        %949 = vmatprep.subr.bf16.mxu0 0
        %950 = vmatpush1.bf16.xpose.msra.mxu0 0
        %951 = vmatprep.subr.bf16.mxu0 0
        %952 = vmatpush1.bf16.xpose.msra.mxu0 0
        %953 = vmatprep.mubr.bf16.mxu0 0
        %954 = vmatmul.mubr.bf16.gmra.mrb[0].mxu0 %v916
        %v955 = vpop.f32.mrb[0].mxu0
        %v956 = vadd.f32 0.0, %v955
        %v957 = vpop.f32.mrb[0].mxu0
        %v958 = vpop.f32.mrb[0].mxu0
        %v959 = vpop.f32.mrb[0].mxu0
        %960 = vdwg.mxu0
        %962 = vrot.lane.b32.xlu0 %v688, 96
        %v963 = vpop.permute.xlu0 %962
        %v965 = vsel %vm718, %v688, 0
        %v968 = vsel %vm718, %v963, 0
        %970 = vmatprep.subr.bf16.mxu0 0
        %971 = vmatpush1.bf16.xpose.msra.mxu0 %v968
        %972 = vmatprep.subr.bf16.mxu0 0
        %973 = vmatpush1.bf16.xpose.msra.mxu0 0
        %974 = vmatprep.subr.bf16.mxu0 0
        %975 = vmatpush1.bf16.xpose.msra.mxu0 0
        %976 = vmatprep.subr.bf16.mxu0 0
        %977 = vmatpush1.bf16.xpose.msra.mxu0 0
        %978 = vmatprep.subr.bf16.mxu0 0
        %979 = vmatpush1.bf16.xpose.msra.mxu0 0
        %980 = vmatprep.subr.bf16.mxu0 0
        %981 = vmatpush1.bf16.xpose.msra.mxu0 0
        %982 = vmatprep.subr.bf16.mxu0 0
        %983 = vmatpush1.bf16.xpose.msra.mxu0 0
        %984 = vmatprep.subr.bf16.mxu0 0
        %985 = vmatpush1.bf16.xpose.msra.mxu0 0
        %986 = vmatprep.subr.bf16.mxu0 0
        %987 = vmatpush1.bf16.xpose.msra.mxu0 0
        %988 = vmatprep.subr.bf16.mxu0 0
        %989 = vmatpush1.bf16.xpose.msra.mxu0 0
        %990 = vmatprep.subr.bf16.mxu0 0
        %991 = vmatpush1.bf16.xpose.msra.mxu0 0
        %992 = vmatprep.subr.bf16.mxu0 0
        %993 = vmatpush1.bf16.xpose.msra.mxu0 0
        %994 = vmatprep.subr.bf16.mxu0 0
        %995 = vmatpush1.bf16.xpose.msra.mxu0 0
        %996 = vmatprep.subr.bf16.mxu0 0
        %997 = vmatpush1.bf16.xpose.msra.mxu0 0
        %998 = vmatprep.subr.bf16.mxu0 0
        %999 = vmatpush1.bf16.xpose.msra.mxu0 0
        %1000 = vmatprep.subr.bf16.mxu0 0
        %1001 = vmatpush1.bf16.xpose.msra.mxu0 0
        %1002 = vmatprep.mubr.bf16.mxu0 0
        %1003 = vmatmul.mubr.bf16.gmra.mrb[0].mxu0 %v965
        %v1004 = vpop.f32.mrb[0].mxu0
        %v1005 = vadd.f32 0.0, %v1004
        %v1006 = vpop.f32.mrb[0].mxu0
        %v1007 = vpop.f32.mrb[0].mxu0
        %v1008 = vpop.f32.mrb[0].mxu0
        %1009 = vdwg.mxu0
        %1011 = vrot.lane.b32.xlu0 %v689, 96
        %v1012 = vpop.permute.xlu0 %1011
        %v1014 = vsel %vm718, %v689, 0
        %v1017 = vsel %vm718, %v1012, 0
        %1019 = vmatprep.subr.bf16.mxu0 0
        %1020 = vmatpush1.bf16.xpose.msra.mxu0 %v1017
        %1021 = vmatprep.subr.bf16.mxu0 0
        %1022 = vmatpush1.bf16.xpose.msra.mxu0 0
        %1023 = vmatprep.subr.bf16.mxu0 0
        %1024 = vmatpush1.bf16.xpose.msra.mxu0 0
        %1025 = vmatprep.subr.bf16.mxu0 0
        %1026 = vmatpush1.bf16.xpose.msra.mxu0 0
        %1027 = vmatprep.subr.bf16.mxu0 0
        %1028 = vmatpush1.bf16.xpose.msra.mxu0 0
        %1029 = vmatprep.subr.bf16.mxu0 0
        %1030 = vmatpush1.bf16.xpose.msra.mxu0 0
        %1031 = vmatprep.subr.bf16.mxu0 0
        %1032 = vmatpush1.bf16.xpose.msra.mxu0 0
        %1033 = vmatprep.subr.bf16.mxu0 0
        %1034 = vmatpush1.bf16.xpose.msra.mxu0 0
        %1035 = vmatprep.subr.bf16.mxu0 0
        %1036 = vmatpush1.bf16.xpose.msra.mxu0 0
        %1037 = vmatprep.subr.bf16.mxu0 0
        %1038 = vmatpush1.bf16.xpose.msra.mxu0 0
        %1039 = vmatprep.subr.bf16.mxu0 0
        %1040 = vmatpush1.bf16.xpose.msra.mxu0 0
        %1041 = vmatprep.subr.bf16.mxu0 0
        %1042 = vmatpush1.bf16.xpose.msra.mxu0 0
        %1043 = vmatprep.subr.bf16.mxu0 0
        %1044 = vmatpush1.bf16.xpose.msra.mxu0 0
        %1045 = vmatprep.subr.bf16.mxu0 0
        %1046 = vmatpush1.bf16.xpose.msra.mxu0 0
        %1047 = vmatprep.subr.bf16.mxu0 0
        %1048 = vmatpush1.bf16.xpose.msra.mxu0 0
        %1049 = vmatprep.subr.bf16.mxu0 0
        %1050 = vmatpush1.bf16.xpose.msra.mxu0 0
        %1051 = vmatprep.mubr.bf16.mxu0 0
        %1052 = vmatmul.mubr.bf16.gmra.mrb[0].mxu0 %v1014
        %v1053 = vpop.f32.mrb[0].mxu0
        %v1054 = vadd.f32 0.0, %v1053
        %v1055 = vpop.f32.mrb[0].mxu0
        %v1056 = vpop.f32.mrb[0].mxu0
        %v1057 = vpop.f32.mrb[0].mxu0
        %1058 = vdwg.mxu0
        %1060 = vrot.lane.b32.xlu0 %v690, 96
        %v1061 = vpop.permute.xlu0 %1060
        %v1063 = vsel %vm718, %v690, 0
        %v1066 = vsel %vm718, %v1061, 0
        %1068 = vmatprep.subr.bf16.mxu0 0
        %1069 = vmatpush1.bf16.xpose.msra.mxu0 %v1066
        %1070 = vmatprep.subr.bf16.mxu0 0
        %1071 = vmatpush1.bf16.xpose.msra.mxu0 0
        %1072 = vmatprep.subr.bf16.mxu0 0
        %1073 = vmatpush1.bf16.xpose.msra.mxu0 0
        %1074 = vmatprep.subr.bf16.mxu0 0
        %1075 = vmatpush1.bf16.xpose.msra.mxu0 0
        %1076 = vmatprep.subr.bf16.mxu0 0
        %1077 = vmatpush1.bf16.xpose.msra.mxu0 0
        %1078 = vmatprep.subr.bf16.mxu0 0
        %1079 = vmatpush1.bf16.xpose.msra.mxu0 0
        %1080 = vmatprep.subr.bf16.mxu0 0
        %1081 = vmatpush1.bf16.xpose.msra.mxu0 0
        %1082 = vmatprep.subr.bf16.mxu0 0
        %1083 = vmatpush1.bf16.xpose.msra.mxu0 0
        %1084 = vmatprep.subr.bf16.mxu0 0
        %1085 = vmatpush1.bf16.xpose.msra.mxu0 0
        %1086 = vmatprep.subr.bf16.mxu0 0
        %1087 = vmatpush1.bf16.xpose.msra.mxu0 0
        %1088 = vmatprep.subr.bf16.mxu0 0
        %1089 = vmatpush1.bf16.xpose.msra.mxu0 0
        %1090 = vmatprep.subr.bf16.mxu0 0
        %1091 = vmatpush1.bf16.xpose.msra.mxu0 0
        %1092 = vmatprep.subr.bf16.mxu0 0
        %1093 = vmatpush1.bf16.xpose.msra.mxu0 0
        %1094 = vmatprep.subr.bf16.mxu0 0
        %1095 = vmatpush1.bf16.xpose.msra.mxu0 0
        %1096 = vmatprep.subr.bf16.mxu0 0
        %1097 = vmatpush1.bf16.xpose.msra.mxu0 0
        %1098 = vmatprep.subr.bf16.mxu0 0
        %1099 = vmatpush1.bf16.xpose.msra.mxu0 0
        %1100 = vmatprep.mubr.bf16.mxu0 0
        %1101 = vmatmul.mubr.bf16.gmra.mrb[0].mxu0 %v1063
        %v1102 = vpop.f32.mrb[0].mxu0
        %v1103 = vadd.f32 0.0, %v1102
        %v1104 = vpop.f32.mrb[0].mxu0
        %v1105 = vpop.f32.mrb[0].mxu0
        %v1106 = vpop.f32.mrb[0].mxu0
        %1107 = vdwg.mxu0
        %1109 = vrot.lane.b32.xlu0 %v691, 96
        %v1110 = vpop.permute.xlu0 %1109
        %v1112 = vsel %vm718, %v691, 0
        %v1115 = vsel %vm718, %v1110, 0
        %1117 = vmatprep.subr.bf16.mxu0 0
        %1118 = vmatpush1.bf16.xpose.msra.mxu0 %v1115
        %1119 = vmatprep.subr.bf16.mxu0 0
        %1120 = vmatpush1.bf16.xpose.msra.mxu0 0
        %1121 = vmatprep.subr.bf16.mxu0 0
        %1122 = vmatpush1.bf16.xpose.msra.mxu0 0
        %1123 = vmatprep.subr.bf16.mxu0 0
        %1124 = vmatpush1.bf16.xpose.msra.mxu0 0
        %1125 = vmatprep.subr.bf16.mxu0 0
        %1126 = vmatpush1.bf16.xpose.msra.mxu0 0
        %1127 = vmatprep.subr.bf16.mxu0 0
        %1128 = vmatpush1.bf16.xpose.msra.mxu0 0
        %1129 = vmatprep.subr.bf16.mxu0 0
        %1130 = vmatpush1.bf16.xpose.msra.mxu0 0
        %1131 = vmatprep.subr.bf16.mxu0 0
        %1132 = vmatpush1.bf16.xpose.msra.mxu0 0
        %1133 = vmatprep.subr.bf16.mxu0 0
        %1134 = vmatpush1.bf16.xpose.msra.mxu0 0
        %1135 = vmatprep.subr.bf16.mxu0 0
        %1136 = vmatpush1.bf16.xpose.msra.mxu0 0
        %1137 = vmatprep.subr.bf16.mxu0 0
        %1138 = vmatpush1.bf16.xpose.msra.mxu0 0
        %1139 = vmatprep.subr.bf16.mxu0 0
        %1140 = vmatpush1.bf16.xpose.msra.mxu0 0
        %1141 = vmatprep.subr.bf16.mxu0 0
        %1142 = vmatpush1.bf16.xpose.msra.mxu0 0
        %1143 = vmatprep.subr.bf16.mxu0 0
        %1144 = vmatpush1.bf16.xpose.msra.mxu0 0
        %1145 = vmatprep.subr.bf16.mxu0 0
        %1146 = vmatpush1.bf16.xpose.msra.mxu0 0
        %1147 = vmatprep.subr.bf16.mxu0 0
        %1148 = vmatpush1.bf16.xpose.msra.mxu0 0
        %1149 = vmatprep.mubr.bf16.mxu0 0
        %1150 = vmatmul.mubr.bf16.gmra.mrb[0].mxu0 %v1112
        %v1151 = vpop.f32.mrb[0].mxu0
        %v1152 = vadd.f32 0.0, %v1151
        %v1153 = vpop.f32.mrb[0].mxu0
        %v1154 = vpop.f32.mrb[0].mxu0
        %v1155 = vpop.f32.mrb[0].mxu0
        %1156 = vdwg.mxu0
        %1158 = vrot.lane.b32.xlu0 %v692, 96
        %v1159 = vpop.permute.xlu0 %1158
        %v1161 = vsel %vm718, %v692, 0
        %v1164 = vsel %vm718, %v1159, 0
        %1166 = vmatprep.subr.bf16.mxu0 0
        %1167 = vmatpush1.bf16.xpose.msra.mxu0 %v1164
        %1168 = vmatprep.subr.bf16.mxu0 0
        %1169 = vmatpush1.bf16.xpose.msra.mxu0 0
        %1170 = vmatprep.subr.bf16.mxu0 0
        %1171 = vmatpush1.bf16.xpose.msra.mxu0 0
        %1172 = vmatprep.subr.bf16.mxu0 0
        %1173 = vmatpush1.bf16.xpose.msra.mxu0 0
        %1174 = vmatprep.subr.bf16.mxu0 0
        %1175 = vmatpush1.bf16.xpose.msra.mxu0 0
        %1176 = vmatprep.subr.bf16.mxu0 0
        %1177 = vmatpush1.bf16.xpose.msra.mxu0 0
        %1178 = vmatprep.subr.bf16.mxu0 0
        %1179 = vmatpush1.bf16.xpose.msra.mxu0 0
        %1180 = vmatprep.subr.bf16.mxu0 0
        %1181 = vmatpush1.bf16.xpose.msra.mxu0 0
        %1182 = vmatprep.subr.bf16.mxu0 0
        %1183 = vmatpush1.bf16.xpose.msra.mxu0 0
        %1184 = vmatprep.subr.bf16.mxu0 0
        %1185 = vmatpush1.bf16.xpose.msra.mxu0 0
        %1186 = vmatprep.subr.bf16.mxu0 0
        %1187 = vmatpush1.bf16.xpose.msra.mxu0 0
        %1188 = vmatprep.subr.bf16.mxu0 0
        %1189 = vmatpush1.bf16.xpose.msra.mxu0 0
        %1190 = vmatprep.subr.bf16.mxu0 0
        %1191 = vmatpush1.bf16.xpose.msra.mxu0 0
        %1192 = vmatprep.subr.bf16.mxu0 0
        %1193 = vmatpush1.bf16.xpose.msra.mxu0 0
        %1194 = vmatprep.subr.bf16.mxu0 0
        %1195 = vmatpush1.bf16.xpose.msra.mxu0 0
        %1196 = vmatprep.subr.bf16.mxu0 0
        %1197 = vmatpush1.bf16.xpose.msra.mxu0 0
        %1198 = vmatprep.mubr.bf16.mxu0 0
        %1199 = vmatmul.mubr.bf16.gmra.mrb[0].mxu0 %v1161
        %v1200 = vpop.f32.mrb[0].mxu0
        %v1201 = vadd.f32 0.0, %v1200
        %v1202 = vpop.f32.mrb[0].mxu0
        %v1203 = vpop.f32.mrb[0].mxu0
        %v1204 = vpop.f32.mrb[0].mxu0
        %1205 = vdwg.mxu0
        %1207 = vrot.lane.b32.xlu0 %v693, 96
        %v1208 = vpop.permute.xlu0 %1207
        %v1210 = vsel %vm718, %v693, 0
        %v1213 = vsel %vm718, %v1208, 0
        %1215 = vmatprep.subr.bf16.mxu0 0
        %1216 = vmatpush1.bf16.xpose.msra.mxu0 %v1213
        %1217 = vmatprep.subr.bf16.mxu0 0
        %1218 = vmatpush1.bf16.xpose.msra.mxu0 0
        %1219 = vmatprep.subr.bf16.mxu0 0
        %1220 = vmatpush1.bf16.xpose.msra.mxu0 0
        %1221 = vmatprep.subr.bf16.mxu0 0
        %1222 = vmatpush1.bf16.xpose.msra.mxu0 0
        %1223 = vmatprep.subr.bf16.mxu0 0
        %1224 = vmatpush1.bf16.xpose.msra.mxu0 0
        %1225 = vmatprep.subr.bf16.mxu0 0
        %1226 = vmatpush1.bf16.xpose.msra.mxu0 0
        %1227 = vmatprep.subr.bf16.mxu0 0
        %1228 = vmatpush1.bf16.xpose.msra.mxu0 0
        %1229 = vmatprep.subr.bf16.mxu0 0
        %1230 = vmatpush1.bf16.xpose.msra.mxu0 0
        %1231 = vmatprep.subr.bf16.mxu0 0
        %1232 = vmatpush1.bf16.xpose.msra.mxu0 0
        %1233 = vmatprep.subr.bf16.mxu0 0
        %1234 = vmatpush1.bf16.xpose.msra.mxu0 0
        %1235 = vmatprep.subr.bf16.mxu0 0
        %1236 = vmatpush1.bf16.xpose.msra.mxu0 0
        %1237 = vmatprep.subr.bf16.mxu0 0
        %1238 = vmatpush1.bf16.xpose.msra.mxu0 0
        %1239 = vmatprep.subr.bf16.mxu0 0
        %1240 = vmatpush1.bf16.xpose.msra.mxu0 0
        %1241 = vmatprep.subr.bf16.mxu0 0
        %1242 = vmatpush1.bf16.xpose.msra.mxu0 0
        %1243 = vmatprep.subr.bf16.mxu0 0
        %1244 = vmatpush1.bf16.xpose.msra.mxu0 0
        %1245 = vmatprep.subr.bf16.mxu0 0
        %1246 = vmatpush1.bf16.xpose.msra.mxu0 0
        %1247 = vmatprep.mubr.bf16.mxu0 0
        %1248 = vmatmul.mubr.bf16.gmra.mrb[0].mxu0 %v1210
        %v1249 = vpop.f32.mrb[0].mxu0
        %v1250 = vadd.f32 0.0, %v1249
        %v1251 = vpop.f32.mrb[0].mxu0
        %v1252 = vpop.f32.mrb[0].mxu0
        %v1253 = vpop.f32.mrb[0].mxu0
        %1254 = vdwg.mxu0
        %1256 = vrot.lane.b32.xlu0 %v694, 96
        %v1257 = vpop.permute.xlu0 %1256
        %v1259 = vsel %vm718, %v694, 0
        %v1262 = vsel %vm718, %v1257, 0
        %1264 = vmatprep.subr.bf16.mxu0 0
        %1265 = vmatpush1.bf16.xpose.msra.mxu0 %v1262
        %1266 = vmatprep.subr.bf16.mxu0 0
        %1267 = vmatpush1.bf16.xpose.msra.mxu0 0
        %1268 = vmatprep.subr.bf16.mxu0 0
        %1269 = vmatpush1.bf16.xpose.msra.mxu0 0
        %1270 = vmatprep.subr.bf16.mxu0 0
        %1271 = vmatpush1.bf16.xpose.msra.mxu0 0
        %1272 = vmatprep.subr.bf16.mxu0 0
        %1273 = vmatpush1.bf16.xpose.msra.mxu0 0
        %1274 = vmatprep.subr.bf16.mxu0 0
        %1275 = vmatpush1.bf16.xpose.msra.mxu0 0
        %1276 = vmatprep.subr.bf16.mxu0 0
        %1277 = vmatpush1.bf16.xpose.msra.mxu0 0
        %1278 = vmatprep.subr.bf16.mxu0 0
        %1279 = vmatpush1.bf16.xpose.msra.mxu0 0
        %1280 = vmatprep.subr.bf16.mxu0 0
        %1281 = vmatpush1.bf16.xpose.msra.mxu0 0
        %1282 = vmatprep.subr.bf16.mxu0 0
        %1283 = vmatpush1.bf16.xpose.msra.mxu0 0
        %1284 = vmatprep.subr.bf16.mxu0 0
        %1285 = vmatpush1.bf16.xpose.msra.mxu0 0
        %1286 = vmatprep.subr.bf16.mxu0 0
        %1287 = vmatpush1.bf16.xpose.msra.mxu0 0
        %1288 = vmatprep.subr.bf16.mxu0 0
        %1289 = vmatpush1.bf16.xpose.msra.mxu0 0
        %1290 = vmatprep.subr.bf16.mxu0 0
        %1291 = vmatpush1.bf16.xpose.msra.mxu0 0
        %1292 = vmatprep.subr.bf16.mxu0 0
        %1293 = vmatpush1.bf16.xpose.msra.mxu0 0
        %1294 = vmatprep.subr.bf16.mxu0 0
        %1295 = vmatpush1.bf16.xpose.msra.mxu0 0
        %1296 = vmatprep.mubr.bf16.mxu0 0
        %1297 = vmatmul.mubr.bf16.gmra.mrb[0].mxu0 %v1259
        %v1298 = vpop.f32.mrb[0].mxu0
        %v1299 = vadd.f32 0.0, %v1298
        %v1300 = vpop.f32.mrb[0].mxu0
        %v1301 = vpop.f32.mrb[0].mxu0
        %v1302 = vpop.f32.mrb[0].mxu0
        %1303 = vdwg.mxu0
        %1305 = vrot.lane.b32.xlu0 %v695, 96
        %v1306 = vpop.permute.xlu0 %1305
        %v1308 = vsel %vm718, %v695, 0
        %v1311 = vsel %vm718, %v1306, 0
        %1313 = vmatprep.subr.bf16.mxu0 0
        %1314 = vmatpush1.bf16.xpose.msra.mxu0 %v1311
        %1315 = vmatprep.subr.bf16.mxu0 0
        %1316 = vmatpush1.bf16.xpose.msra.mxu0 0
        %1317 = vmatprep.subr.bf16.mxu0 0
        %1318 = vmatpush1.bf16.xpose.msra.mxu0 0
        %1319 = vmatprep.subr.bf16.mxu0 0
        %1320 = vmatpush1.bf16.xpose.msra.mxu0 0
        %1321 = vmatprep.subr.bf16.mxu0 0
        %1322 = vmatpush1.bf16.xpose.msra.mxu0 0
        %1323 = vmatprep.subr.bf16.mxu0 0
        %1324 = vmatpush1.bf16.xpose.msra.mxu0 0
        %1325 = vmatprep.subr.bf16.mxu0 0
        %1326 = vmatpush1.bf16.xpose.msra.mxu0 0
        %1327 = vmatprep.subr.bf16.mxu0 0
        %1328 = vmatpush1.bf16.xpose.msra.mxu0 0
        %1329 = vmatprep.subr.bf16.mxu0 0
        %1330 = vmatpush1.bf16.xpose.msra.mxu0 0
        %1331 = vmatprep.subr.bf16.mxu0 0
        %1332 = vmatpush1.bf16.xpose.msra.mxu0 0
        %1333 = vmatprep.subr.bf16.mxu0 0
        %1334 = vmatpush1.bf16.xpose.msra.mxu0 0
        %1335 = vmatprep.subr.bf16.mxu0 0
        %1336 = vmatpush1.bf16.xpose.msra.mxu0 0
        %1337 = vmatprep.subr.bf16.mxu0 0
        %1338 = vmatpush1.bf16.xpose.msra.mxu0 0
        %1339 = vmatprep.subr.bf16.mxu0 0
        %1340 = vmatpush1.bf16.xpose.msra.mxu0 0
        %1341 = vmatprep.subr.bf16.mxu0 0
        %1342 = vmatpush1.bf16.xpose.msra.mxu0 0
        %1343 = vmatprep.subr.bf16.mxu0 0
        %1344 = vmatpush1.bf16.xpose.msra.mxu0 0
        %1345 = vmatprep.mubr.bf16.mxu0 0
        %1346 = vmatmul.mubr.bf16.gmra.mrb[0].mxu0 %v1308
        %v1347 = vpop.f32.mrb[0].mxu0
        %v1348 = vadd.f32 0.0, %v1347
        %v1349 = vpop.f32.mrb[0].mxu0
        %v1350 = vpop.f32.mrb[0].mxu0
        %v1351 = vpop.f32.mrb[0].mxu0
        %1352 = vdwg.mxu0
        %1354 = vrot.lane.b32.xlu0 %v696, 96
        %v1355 = vpop.permute.xlu0 %1354
        %v1357 = vsel %vm718, %v696, 0
        %v1360 = vsel %vm718, %v1355, 0
        %1362 = vmatprep.subr.bf16.mxu0 0
        %1363 = vmatpush1.bf16.xpose.msra.mxu0 %v1360
        %1364 = vmatprep.subr.bf16.mxu0 0
        %1365 = vmatpush1.bf16.xpose.msra.mxu0 0
        %1366 = vmatprep.subr.bf16.mxu0 0
        %1367 = vmatpush1.bf16.xpose.msra.mxu0 0
        %1368 = vmatprep.subr.bf16.mxu0 0
        %1369 = vmatpush1.bf16.xpose.msra.mxu0 0
        %1370 = vmatprep.subr.bf16.mxu0 0
        %1371 = vmatpush1.bf16.xpose.msra.mxu0 0
        %1372 = vmatprep.subr.bf16.mxu0 0
        %1373 = vmatpush1.bf16.xpose.msra.mxu0 0
        %1374 = vmatprep.subr.bf16.mxu0 0
        %1375 = vmatpush1.bf16.xpose.msra.mxu0 0
        %1376 = vmatprep.subr.bf16.mxu0 0
        %1377 = vmatpush1.bf16.xpose.msra.mxu0 0
        %1378 = vmatprep.subr.bf16.mxu0 0
        %1379 = vmatpush1.bf16.xpose.msra.mxu0 0
        %1380 = vmatprep.subr.bf16.mxu0 0
        %1381 = vmatpush1.bf16.xpose.msra.mxu0 0
        %1382 = vmatprep.subr.bf16.mxu0 0
        %1383 = vmatpush1.bf16.xpose.msra.mxu0 0
        %1384 = vmatprep.subr.bf16.mxu0 0
        %1385 = vmatpush1.bf16.xpose.msra.mxu0 0
        %1386 = vmatprep.subr.bf16.mxu0 0
        %1387 = vmatpush1.bf16.xpose.msra.mxu0 0
        %1388 = vmatprep.subr.bf16.mxu0 0
        %1389 = vmatpush1.bf16.xpose.msra.mxu0 0
        %1390 = vmatprep.subr.bf16.mxu0 0
        %1391 = vmatpush1.bf16.xpose.msra.mxu0 0
        %1392 = vmatprep.subr.bf16.mxu0 0
        %1393 = vmatpush1.bf16.xpose.msra.mxu0 0
        %1394 = vmatprep.mubr.bf16.mxu0 0
        %1395 = vmatmul.mubr.bf16.gmra.mrb[0].mxu0 %v1357
        %v1396 = vpop.f32.mrb[0].mxu0
        %v1397 = vadd.f32 0.0, %v1396
        %v1398 = vpop.f32.mrb[0].mxu0
        %v1399 = vpop.f32.mrb[0].mxu0
        %v1400 = vpop.f32.mrb[0].mxu0
        %1401 = vdwg.mxu0
        %1403 = vrot.lane.b32.xlu0 %v697, 96
        %v1404 = vpop.permute.xlu0 %1403
        %v1406 = vsel %vm718, %v697, 0
        %v1409 = vsel %vm718, %v1404, 0
        %1411 = vmatprep.subr.bf16.mxu0 0
        %1412 = vmatpush1.bf16.xpose.msra.mxu0 %v1409
        %1413 = vmatprep.subr.bf16.mxu0 0
        %1414 = vmatpush1.bf16.xpose.msra.mxu0 0
        %1415 = vmatprep.subr.bf16.mxu0 0
        %1416 = vmatpush1.bf16.xpose.msra.mxu0 0
        %1417 = vmatprep.subr.bf16.mxu0 0
        %1418 = vmatpush1.bf16.xpose.msra.mxu0 0
        %1419 = vmatprep.subr.bf16.mxu0 0
        %1420 = vmatpush1.bf16.xpose.msra.mxu0 0
        %1421 = vmatprep.subr.bf16.mxu0 0
        %1422 = vmatpush1.bf16.xpose.msra.mxu0 0
        %1423 = vmatprep.subr.bf16.mxu0 0
        %1424 = vmatpush1.bf16.xpose.msra.mxu0 0
        %1425 = vmatprep.subr.bf16.mxu0 0
        %1426 = vmatpush1.bf16.xpose.msra.mxu0 0
        %1427 = vmatprep.subr.bf16.mxu0 0
        %1428 = vmatpush1.bf16.xpose.msra.mxu0 0
        %1429 = vmatprep.subr.bf16.mxu0 0
        %1430 = vmatpush1.bf16.xpose.msra.mxu0 0
        %1431 = vmatprep.subr.bf16.mxu0 0
        %1432 = vmatpush1.bf16.xpose.msra.mxu0 0
        %1433 = vmatprep.subr.bf16.mxu0 0
        %1434 = vmatpush1.bf16.xpose.msra.mxu0 0
        %1435 = vmatprep.subr.bf16.mxu0 0
        %1436 = vmatpush1.bf16.xpose.msra.mxu0 0
        %1437 = vmatprep.subr.bf16.mxu0 0
        %1438 = vmatpush1.bf16.xpose.msra.mxu0 0
        %1439 = vmatprep.subr.bf16.mxu0 0
        %1440 = vmatpush1.bf16.xpose.msra.mxu0 0
        %1441 = vmatprep.subr.bf16.mxu0 0
        %1442 = vmatpush1.bf16.xpose.msra.mxu0 0
        %1443 = vmatprep.mubr.bf16.mxu0 0
        %1444 = vmatmul.mubr.bf16.gmra.mrb[0].mxu0 %v1406
        %v1445 = vpop.f32.mrb[0].mxu0
        %v1446 = vadd.f32 0.0, %v1445
        %v1447 = vpop.f32.mrb[0].mxu0
        %v1448 = vpop.f32.mrb[0].mxu0
        %v1449 = vpop.f32.mrb[0].mxu0
        %1450 = vdwg.mxu0
        %1452 = vrot.lane.b32.xlu0 %v698, 96
        %v1453 = vpop.permute.xlu0 %1452
        %v1455 = vsel %vm718, %v698, 0
        %v1458 = vsel %vm718, %v1453, 0
        %1460 = vmatprep.subr.bf16.mxu0 0
        %1461 = vmatpush1.bf16.xpose.msra.mxu0 %v1458
        %1462 = vmatprep.subr.bf16.mxu0 0
        %1463 = vmatpush1.bf16.xpose.msra.mxu0 0
        %1464 = vmatprep.subr.bf16.mxu0 0
        %1465 = vmatpush1.bf16.xpose.msra.mxu0 0
        %1466 = vmatprep.subr.bf16.mxu0 0
        %1467 = vmatpush1.bf16.xpose.msra.mxu0 0
        %1468 = vmatprep.subr.bf16.mxu0 0
        %1469 = vmatpush1.bf16.xpose.msra.mxu0 0
        %1470 = vmatprep.subr.bf16.mxu0 0
        %1471 = vmatpush1.bf16.xpose.msra.mxu0 0
        %1472 = vmatprep.subr.bf16.mxu0 0
        %1473 = vmatpush1.bf16.xpose.msra.mxu0 0
        %1474 = vmatprep.subr.bf16.mxu0 0
        %1475 = vmatpush1.bf16.xpose.msra.mxu0 0
        %1476 = vmatprep.subr.bf16.mxu0 0
        %1477 = vmatpush1.bf16.xpose.msra.mxu0 0
        %1478 = vmatprep.subr.bf16.mxu0 0
        %1479 = vmatpush1.bf16.xpose.msra.mxu0 0
        %1480 = vmatprep.subr.bf16.mxu0 0
        %1481 = vmatpush1.bf16.xpose.msra.mxu0 0
        %1482 = vmatprep.subr.bf16.mxu0 0
        %1483 = vmatpush1.bf16.xpose.msra.mxu0 0
        %1484 = vmatprep.subr.bf16.mxu0 0
        %1485 = vmatpush1.bf16.xpose.msra.mxu0 0
        %1486 = vmatprep.subr.bf16.mxu0 0
        %1487 = vmatpush1.bf16.xpose.msra.mxu0 0
        %1488 = vmatprep.subr.bf16.mxu0 0
        %1489 = vmatpush1.bf16.xpose.msra.mxu0 0
        %1490 = vmatprep.subr.bf16.mxu0 0
        %1491 = vmatpush1.bf16.xpose.msra.mxu0 0
        %1492 = vmatprep.mubr.bf16.mxu0 0
        %1493 = vmatmul.mubr.bf16.gmra.mrb[0].mxu0 %v1455
        %v1494 = vpop.f32.mrb[0].mxu0
        %v1495 = vadd.f32 0.0, %v1494
        %v1496 = vpop.f32.mrb[0].mxu0
        %v1497 = vpop.f32.mrb[0].mxu0
        %v1498 = vpop.f32.mrb[0].mxu0
        %1499 = vdwg.mxu0
        %1501 = vrot.lane.b32.xlu0 %v699, 96
        %v1502 = vpop.permute.xlu0 %1501
        %v1504 = vsel %vm718, %v699, 0
        %v1507 = vsel %vm718, %v1502, 0
        %1509 = vmatprep.subr.bf16.mxu0 0
        %1510 = vmatpush1.bf16.xpose.msra.mxu0 %v1507
        %1511 = vmatprep.subr.bf16.mxu0 0
        %1512 = vmatpush1.bf16.xpose.msra.mxu0 0
        %1513 = vmatprep.subr.bf16.mxu0 0
        %1514 = vmatpush1.bf16.xpose.msra.mxu0 0
        %1515 = vmatprep.subr.bf16.mxu0 0
        %1516 = vmatpush1.bf16.xpose.msra.mxu0 0
        %1517 = vmatprep.subr.bf16.mxu0 0
        %1518 = vmatpush1.bf16.xpose.msra.mxu0 0
        %1519 = vmatprep.subr.bf16.mxu0 0
        %1520 = vmatpush1.bf16.xpose.msra.mxu0 0
        %1521 = vmatprep.subr.bf16.mxu0 0
        %1522 = vmatpush1.bf16.xpose.msra.mxu0 0
        %1523 = vmatprep.subr.bf16.mxu0 0
        %1524 = vmatpush1.bf16.xpose.msra.mxu0 0
        %1525 = vmatprep.subr.bf16.mxu0 0
        %1526 = vmatpush1.bf16.xpose.msra.mxu0 0
        %1527 = vmatprep.subr.bf16.mxu0 0
        %1528 = vmatpush1.bf16.xpose.msra.mxu0 0
        %1529 = vmatprep.subr.bf16.mxu0 0
        %1530 = vmatpush1.bf16.xpose.msra.mxu0 0
        %1531 = vmatprep.subr.bf16.mxu0 0
        %1532 = vmatpush1.bf16.xpose.msra.mxu0 0
        %1533 = vmatprep.subr.bf16.mxu0 0
        %1534 = vmatpush1.bf16.xpose.msra.mxu0 0
        %1535 = vmatprep.subr.bf16.mxu0 0
        %1536 = vmatpush1.bf16.xpose.msra.mxu0 0
        %1537 = vmatprep.subr.bf16.mxu0 0
        %1538 = vmatpush1.bf16.xpose.msra.mxu0 0
        %1539 = vmatprep.subr.bf16.mxu0 0
        %1540 = vmatpush1.bf16.xpose.msra.mxu0 0
        %1541 = vmatprep.mubr.bf16.mxu0 0
        %1542 = vmatmul.mubr.bf16.gmra.mrb[0].mxu0 %v1504
        %v1543 = vpop.f32.mrb[0].mxu0
        %v1544 = vadd.f32 0.0, %v1543
        %v1545 = vpop.f32.mrb[0].mxu0
        %v1546 = vpop.f32.mrb[0].mxu0
        %v1547 = vpop.f32.mrb[0].mxu0
        %1548 = vdwg.mxu0
        %1550 = vrot.lane.b32.xlu0 %v700, 96
        %v1551 = vpop.permute.xlu0 %1550
        %v1553 = vsel %vm718, %v700, 0
        %v1556 = vsel %vm718, %v1551, 0
        %1558 = vmatprep.subr.bf16.mxu0 0
        %1559 = vmatpush1.bf16.xpose.msra.mxu0 %v1556
        %1560 = vmatprep.subr.bf16.mxu0 0
        %1561 = vmatpush1.bf16.xpose.msra.mxu0 0
        %1562 = vmatprep.subr.bf16.mxu0 0
        %1563 = vmatpush1.bf16.xpose.msra.mxu0 0
        %1564 = vmatprep.subr.bf16.mxu0 0
        %1565 = vmatpush1.bf16.xpose.msra.mxu0 0
        %1566 = vmatprep.subr.bf16.mxu0 0
        %1567 = vmatpush1.bf16.xpose.msra.mxu0 0
        %1568 = vmatprep.subr.bf16.mxu0 0
        %1569 = vmatpush1.bf16.xpose.msra.mxu0 0
        %1570 = vmatprep.subr.bf16.mxu0 0
        %1571 = vmatpush1.bf16.xpose.msra.mxu0 0
        %1572 = vmatprep.subr.bf16.mxu0 0
        %1573 = vmatpush1.bf16.xpose.msra.mxu0 0
        %1574 = vmatprep.subr.bf16.mxu0 0
        %1575 = vmatpush1.bf16.xpose.msra.mxu0 0
        %1576 = vmatprep.subr.bf16.mxu0 0
        %1577 = vmatpush1.bf16.xpose.msra.mxu0 0
        %1578 = vmatprep.subr.bf16.mxu0 0
        %1579 = vmatpush1.bf16.xpose.msra.mxu0 0
        %1580 = vmatprep.subr.bf16.mxu0 0
        %1581 = vmatpush1.bf16.xpose.msra.mxu0 0
        %1582 = vmatprep.subr.bf16.mxu0 0
        %1583 = vmatpush1.bf16.xpose.msra.mxu0 0
        %1584 = vmatprep.subr.bf16.mxu0 0
        %1585 = vmatpush1.bf16.xpose.msra.mxu0 0
        %1586 = vmatprep.subr.bf16.mxu0 0
        %1587 = vmatpush1.bf16.xpose.msra.mxu0 0
        %1588 = vmatprep.subr.bf16.mxu0 0
        %1589 = vmatpush1.bf16.xpose.msra.mxu0 0
        %1590 = vmatprep.mubr.bf16.mxu0 0
        %1591 = vmatmul.mubr.bf16.gmra.mrb[0].mxu0 %v1553
        %v1592 = vpop.f32.mrb[0].mxu0
        %v1593 = vadd.f32 0.0, %v1592
        %v1594 = vpop.f32.mrb[0].mxu0
        %v1595 = vpop.f32.mrb[0].mxu0
        %v1596 = vpop.f32.mrb[0].mxu0
        %1597 = vdwg.mxu0
        %1599 = vrot.lane.b32.xlu0 %v701, 96
        %v1600 = vpop.permute.xlu0 %1599
        %v1602 = vsel %vm718, %v701, 0
        %v1605 = vsel %vm718, %v1600, 0
        %1607 = vmatprep.subr.bf16.mxu0 0
        %1608 = vmatpush1.bf16.xpose.msra.mxu0 %v1605
        %1609 = vmatprep.subr.bf16.mxu0 0
        %1610 = vmatpush1.bf16.xpose.msra.mxu0 0
        %1611 = vmatprep.subr.bf16.mxu0 0
        %1612 = vmatpush1.bf16.xpose.msra.mxu0 0
        %1613 = vmatprep.subr.bf16.mxu0 0
        %1614 = vmatpush1.bf16.xpose.msra.mxu0 0
        %1615 = vmatprep.subr.bf16.mxu0 0
        %1616 = vmatpush1.bf16.xpose.msra.mxu0 0
        %1617 = vmatprep.subr.bf16.mxu0 0
        %1618 = vmatpush1.bf16.xpose.msra.mxu0 0
        %1619 = vmatprep.subr.bf16.mxu0 0
        %1620 = vmatpush1.bf16.xpose.msra.mxu0 0
        %1621 = vmatprep.subr.bf16.mxu0 0
        %1622 = vmatpush1.bf16.xpose.msra.mxu0 0
        %1623 = vmatprep.subr.bf16.mxu0 0
        %1624 = vmatpush1.bf16.xpose.msra.mxu0 0
        %1625 = vmatprep.subr.bf16.mxu0 0
        %1626 = vmatpush1.bf16.xpose.msra.mxu0 0
        %1627 = vmatprep.subr.bf16.mxu0 0
        %1628 = vmatpush1.bf16.xpose.msra.mxu0 0
        %1629 = vmatprep.subr.bf16.mxu0 0
        %1630 = vmatpush1.bf16.xpose.msra.mxu0 0
        %1631 = vmatprep.subr.bf16.mxu0 0
        %1632 = vmatpush1.bf16.xpose.msra.mxu0 0
        %1633 = vmatprep.subr.bf16.mxu0 0
        %1634 = vmatpush1.bf16.xpose.msra.mxu0 0
        %1635 = vmatprep.subr.bf16.mxu0 0
        %1636 = vmatpush1.bf16.xpose.msra.mxu0 0
        %1637 = vmatprep.subr.bf16.mxu0 0
        %1638 = vmatpush1.bf16.xpose.msra.mxu0 0
        %1639 = vmatprep.mubr.bf16.mxu0 0
        %1640 = vmatmul.mubr.bf16.gmra.mrb[0].mxu0 %v1602
        %v1641 = vpop.f32.mrb[0].mxu0
        %v1642 = vadd.f32 0.0, %v1641
        %v1643 = vpop.f32.mrb[0].mxu0
        %v1644 = vpop.f32.mrb[0].mxu0
        %v1645 = vpop.f32.mrb[0].mxu0
        %1646 = vdwg.mxu0
        %1648 = vrot.lane.b32.xlu0 %v702, 96
        %v1649 = vpop.permute.xlu0 %1648
        %v1651 = vsel %vm718, %v702, 0
        %v1654 = vsel %vm718, %v1649, 0
        %1656 = vmatprep.subr.bf16.mxu0 0
        %1657 = vmatpush1.bf16.xpose.msra.mxu0 %v1654
        %1658 = vmatprep.subr.bf16.mxu0 0
        %1659 = vmatpush1.bf16.xpose.msra.mxu0 0
        %1660 = vmatprep.subr.bf16.mxu0 0
        %1661 = vmatpush1.bf16.xpose.msra.mxu0 0
        %1662 = vmatprep.subr.bf16.mxu0 0
        %1663 = vmatpush1.bf16.xpose.msra.mxu0 0
        %1664 = vmatprep.subr.bf16.mxu0 0
        %1665 = vmatpush1.bf16.xpose.msra.mxu0 0
        %1666 = vmatprep.subr.bf16.mxu0 0
        %1667 = vmatpush1.bf16.xpose.msra.mxu0 0
        %1668 = vmatprep.subr.bf16.mxu0 0
        %1669 = vmatpush1.bf16.xpose.msra.mxu0 0
        %1670 = vmatprep.subr.bf16.mxu0 0
        %1671 = vmatpush1.bf16.xpose.msra.mxu0 0
        %1672 = vmatprep.subr.bf16.mxu0 0
        %1673 = vmatpush1.bf16.xpose.msra.mxu0 0
        %1674 = vmatprep.subr.bf16.mxu0 0
        %1675 = vmatpush1.bf16.xpose.msra.mxu0 0
        %1676 = vmatprep.subr.bf16.mxu0 0
        %1677 = vmatpush1.bf16.xpose.msra.mxu0 0
        %1678 = vmatprep.subr.bf16.mxu0 0
        %1679 = vmatpush1.bf16.xpose.msra.mxu0 0
        %1680 = vmatprep.subr.bf16.mxu0 0
        %1681 = vmatpush1.bf16.xpose.msra.mxu0 0
        %1682 = vmatprep.subr.bf16.mxu0 0
        %1683 = vmatpush1.bf16.xpose.msra.mxu0 0
        %1684 = vmatprep.subr.bf16.mxu0 0
        %1685 = vmatpush1.bf16.xpose.msra.mxu0 0
        %1686 = vmatprep.subr.bf16.mxu0 0
        %1687 = vmatpush1.bf16.xpose.msra.mxu0 0
        %1688 = vmatprep.mubr.bf16.mxu0 0
        %1689 = vmatmul.mubr.bf16.gmra.mrb[0].mxu0 %v1651
        %v1690 = vpop.f32.mrb[0].mxu0
        %v1691 = vadd.f32 0.0, %v1690
        %v1692 = vpop.f32.mrb[0].mxu0
        %v1693 = vpop.f32.mrb[0].mxu0
        %v1694 = vpop.f32.mrb[0].mxu0
        %1695 = vdwg.mxu0
        %1697 = vrot.lane.b32.xlu0 %v703, 96
        %v1698 = vpop.permute.xlu0 %1697
        %v1700 = vsel %vm718, %v703, 0
        %v1703 = vsel %vm718, %v1698, 0
        %1705 = vmatprep.subr.bf16.mxu0 0
        %1706 = vmatpush1.bf16.xpose.msra.mxu0 %v1703
        %1707 = vmatprep.subr.bf16.mxu0 0
        %1708 = vmatpush1.bf16.xpose.msra.mxu0 0
        %1709 = vmatprep.subr.bf16.mxu0 0
        %1710 = vmatpush1.bf16.xpose.msra.mxu0 0
        %1711 = vmatprep.subr.bf16.mxu0 0
        %1712 = vmatpush1.bf16.xpose.msra.mxu0 0
        %1713 = vmatprep.subr.bf16.mxu0 0
        %1714 = vmatpush1.bf16.xpose.msra.mxu0 0
        %1715 = vmatprep.subr.bf16.mxu0 0
        %1716 = vmatpush1.bf16.xpose.msra.mxu0 0
        %1717 = vmatprep.subr.bf16.mxu0 0
        %1718 = vmatpush1.bf16.xpose.msra.mxu0 0
        %1719 = vmatprep.subr.bf16.mxu0 0
        %1720 = vmatpush1.bf16.xpose.msra.mxu0 0
        %1721 = vmatprep.subr.bf16.mxu0 0
        %1722 = vmatpush1.bf16.xpose.msra.mxu0 0
        %1723 = vmatprep.subr.bf16.mxu0 0
        %1724 = vmatpush1.bf16.xpose.msra.mxu0 0
        %1725 = vmatprep.subr.bf16.mxu0 0
        %1726 = vmatpush1.bf16.xpose.msra.mxu0 0
        %1727 = vmatprep.subr.bf16.mxu0 0
        %1728 = vmatpush1.bf16.xpose.msra.mxu0 0
        %1729 = vmatprep.subr.bf16.mxu0 0
        %1730 = vmatpush1.bf16.xpose.msra.mxu0 0
        %1731 = vmatprep.subr.bf16.mxu0 0
        %1732 = vmatpush1.bf16.xpose.msra.mxu0 0
        %1733 = vmatprep.subr.bf16.mxu0 0
        %1734 = vmatpush1.bf16.xpose.msra.mxu0 0
        %1735 = vmatprep.subr.bf16.mxu0 0
        %1736 = vmatpush1.bf16.xpose.msra.mxu0 0
        %1737 = vmatprep.mubr.bf16.mxu0 0
        %1738 = vmatmul.mubr.bf16.gmra.mrb[0].mxu0 %v1700
        %v1739 = vpop.f32.mrb[0].mxu0
        %v1740 = vadd.f32 0.0, %v1739
        %v1741 = vpop.f32.mrb[0].mxu0
        %v1742 = vpop.f32.mrb[0].mxu0
        %v1743 = vpop.f32.mrb[0].mxu0
        %1744 = vdwg.mxu0
        %1746 = vrot.lane.b32.xlu0 %v704, 96
        %v1747 = vpop.permute.xlu0 %1746
        %v1749 = vsel %vm718, %v704, 0
        %v1752 = vsel %vm718, %v1747, 0
        %1754 = vmatprep.subr.bf16.mxu0 0
        %1755 = vmatpush1.bf16.xpose.msra.mxu0 %v1752
        %1756 = vmatprep.subr.bf16.mxu0 0
        %1757 = vmatpush1.bf16.xpose.msra.mxu0 0
        %1758 = vmatprep.subr.bf16.mxu0 0
        %1759 = vmatpush1.bf16.xpose.msra.mxu0 0
        %1760 = vmatprep.subr.bf16.mxu0 0
        %1761 = vmatpush1.bf16.xpose.msra.mxu0 0
        %1762 = vmatprep.subr.bf16.mxu0 0
        %1763 = vmatpush1.bf16.xpose.msra.mxu0 0
        %1764 = vmatprep.subr.bf16.mxu0 0
        %1765 = vmatpush1.bf16.xpose.msra.mxu0 0
        %1766 = vmatprep.subr.bf16.mxu0 0
        %1767 = vmatpush1.bf16.xpose.msra.mxu0 0
        %1768 = vmatprep.subr.bf16.mxu0 0
        %1769 = vmatpush1.bf16.xpose.msra.mxu0 0
        %1770 = vmatprep.subr.bf16.mxu0 0
        %1771 = vmatpush1.bf16.xpose.msra.mxu0 0
        %1772 = vmatprep.subr.bf16.mxu0 0
        %1773 = vmatpush1.bf16.xpose.msra.mxu0 0
        %1774 = vmatprep.subr.bf16.mxu0 0
        %1775 = vmatpush1.bf16.xpose.msra.mxu0 0
        %1776 = vmatprep.subr.bf16.mxu0 0
        %1777 = vmatpush1.bf16.xpose.msra.mxu0 0
        %1778 = vmatprep.subr.bf16.mxu0 0
        %1779 = vmatpush1.bf16.xpose.msra.mxu0 0
        %1780 = vmatprep.subr.bf16.mxu0 0
        %1781 = vmatpush1.bf16.xpose.msra.mxu0 0
        %1782 = vmatprep.subr.bf16.mxu0 0
        %1783 = vmatpush1.bf16.xpose.msra.mxu0 0
        %1784 = vmatprep.subr.bf16.mxu0 0
        %1785 = vmatpush1.bf16.xpose.msra.mxu0 0
        %1786 = vmatprep.mubr.bf16.mxu0 0
        %1787 = vmatmul.mubr.bf16.gmra.mrb[0].mxu0 %v1749
        %v1788 = vpop.f32.mrb[0].mxu0
        %v1789 = vadd.f32 0.0, %v1788
        %v1790 = vpop.f32.mrb[0].mxu0
        %v1791 = vpop.f32.mrb[0].mxu0
        %v1792 = vpop.f32.mrb[0].mxu0
        %1793 = vdwg.mxu0
        %1795 = vrot.lane.b32.xlu0 %v705, 96
        %v1796 = vpop.permute.xlu0 %1795
        %v1798 = vsel %vm718, %v705, 0
        %v1801 = vsel %vm718, %v1796, 0
        %1803 = vmatprep.subr.bf16.mxu0 0
        %1804 = vmatpush1.bf16.xpose.msra.mxu0 %v1801
        %1805 = vmatprep.subr.bf16.mxu0 0
        %1806 = vmatpush1.bf16.xpose.msra.mxu0 0
        %1807 = vmatprep.subr.bf16.mxu0 0
        %1808 = vmatpush1.bf16.xpose.msra.mxu0 0
        %1809 = vmatprep.subr.bf16.mxu0 0
        %1810 = vmatpush1.bf16.xpose.msra.mxu0 0
        %1811 = vmatprep.subr.bf16.mxu0 0
        %1812 = vmatpush1.bf16.xpose.msra.mxu0 0
        %1813 = vmatprep.subr.bf16.mxu0 0
        %1814 = vmatpush1.bf16.xpose.msra.mxu0 0
        %1815 = vmatprep.subr.bf16.mxu0 0
        %1816 = vmatpush1.bf16.xpose.msra.mxu0 0
        %1817 = vmatprep.subr.bf16.mxu0 0
        %1818 = vmatpush1.bf16.xpose.msra.mxu0 0
        %1819 = vmatprep.subr.bf16.mxu0 0
        %1820 = vmatpush1.bf16.xpose.msra.mxu0 0
        %1821 = vmatprep.subr.bf16.mxu0 0
        %1822 = vmatpush1.bf16.xpose.msra.mxu0 0
        %1823 = vmatprep.subr.bf16.mxu0 0
        %1824 = vmatpush1.bf16.xpose.msra.mxu0 0
        %1825 = vmatprep.subr.bf16.mxu0 0
        %1826 = vmatpush1.bf16.xpose.msra.mxu0 0
        %1827 = vmatprep.subr.bf16.mxu0 0
        %1828 = vmatpush1.bf16.xpose.msra.mxu0 0
        %1829 = vmatprep.subr.bf16.mxu0 0
        %1830 = vmatpush1.bf16.xpose.msra.mxu0 0
        %1831 = vmatprep.subr.bf16.mxu0 0
        %1832 = vmatpush1.bf16.xpose.msra.mxu0 0
        %1833 = vmatprep.subr.bf16.mxu0 0
        %1834 = vmatpush1.bf16.xpose.msra.mxu0 0
        %1835 = vmatprep.mubr.bf16.mxu0 0
        %1836 = vmatmul.mubr.bf16.gmra.mrb[0].mxu0 %v1798
        %v1837 = vpop.f32.mrb[0].mxu0
        %v1838 = vadd.f32 0.0, %v1837
        %v1839 = vpop.f32.mrb[0].mxu0
        %v1840 = vpop.f32.mrb[0].mxu0
        %v1841 = vpop.f32.mrb[0].mxu0
        %1842 = vdwg.mxu0
        %1844 = vrot.lane.b32.xlu0 %v706, 96
        %v1845 = vpop.permute.xlu0 %1844
        %v1847 = vsel %vm718, %v706, 0
        %v1850 = vsel %vm718, %v1845, 0
        %1852 = vmatprep.subr.bf16.mxu0 0
        %1853 = vmatpush1.bf16.xpose.msra.mxu0 %v1850
        %1854 = vmatprep.subr.bf16.mxu0 0
        %1855 = vmatpush1.bf16.xpose.msra.mxu0 0
        %1856 = vmatprep.subr.bf16.mxu0 0
        %1857 = vmatpush1.bf16.xpose.msra.mxu0 0
        %1858 = vmatprep.subr.bf16.mxu0 0
        %1859 = vmatpush1.bf16.xpose.msra.mxu0 0
        %1860 = vmatprep.subr.bf16.mxu0 0
        %1861 = vmatpush1.bf16.xpose.msra.mxu0 0
        %1862 = vmatprep.subr.bf16.mxu0 0
        %1863 = vmatpush1.bf16.xpose.msra.mxu0 0
        %1864 = vmatprep.subr.bf16.mxu0 0
        %1865 = vmatpush1.bf16.xpose.msra.mxu0 0
        %1866 = vmatprep.subr.bf16.mxu0 0
        %1867 = vmatpush1.bf16.xpose.msra.mxu0 0
        %1868 = vmatprep.subr.bf16.mxu0 0
        %1869 = vmatpush1.bf16.xpose.msra.mxu0 0
        %1870 = vmatprep.subr.bf16.mxu0 0
        %1871 = vmatpush1.bf16.xpose.msra.mxu0 0
        %1872 = vmatprep.subr.bf16.mxu0 0
        %1873 = vmatpush1.bf16.xpose.msra.mxu0 0
        %1874 = vmatprep.subr.bf16.mxu0 0
        %1875 = vmatpush1.bf16.xpose.msra.mxu0 0
        %1876 = vmatprep.subr.bf16.mxu0 0
        %1877 = vmatpush1.bf16.xpose.msra.mxu0 0
        %1878 = vmatprep.subr.bf16.mxu0 0
        %1879 = vmatpush1.bf16.xpose.msra.mxu0 0
        %1880 = vmatprep.subr.bf16.mxu0 0
        %1881 = vmatpush1.bf16.xpose.msra.mxu0 0
        %1882 = vmatprep.subr.bf16.mxu0 0
        %1883 = vmatpush1.bf16.xpose.msra.mxu0 0
        %1884 = vmatprep.mubr.bf16.mxu0 0
        %1885 = vmatmul.mubr.bf16.gmra.mrb[0].mxu0 %v1847
        %v1886 = vpop.f32.mrb[0].mxu0
        %v1887 = vadd.f32 0.0, %v1886
        %v1888 = vpop.f32.mrb[0].mxu0
        %v1889 = vpop.f32.mrb[0].mxu0
        %v1890 = vpop.f32.mrb[0].mxu0
        %1891 = vdwg.mxu0
        %1893 = vrot.lane.b32.xlu0 %v707, 96
        %v1894 = vpop.permute.xlu0 %1893
        %v1896 = vsel %vm718, %v707, 0
        %v1899 = vsel %vm718, %v1894, 0
        %1901 = vmatprep.subr.bf16.mxu0 0
        %1902 = vmatpush1.bf16.xpose.msra.mxu0 %v1899
        %1903 = vmatprep.subr.bf16.mxu0 0
        %1904 = vmatpush1.bf16.xpose.msra.mxu0 0
        %1905 = vmatprep.subr.bf16.mxu0 0
        %1906 = vmatpush1.bf16.xpose.msra.mxu0 0
        %1907 = vmatprep.subr.bf16.mxu0 0
        %1908 = vmatpush1.bf16.xpose.msra.mxu0 0
        %1909 = vmatprep.subr.bf16.mxu0 0
        %1910 = vmatpush1.bf16.xpose.msra.mxu0 0
        %1911 = vmatprep.subr.bf16.mxu0 0
        %1912 = vmatpush1.bf16.xpose.msra.mxu0 0
        %1913 = vmatprep.subr.bf16.mxu0 0
        %1914 = vmatpush1.bf16.xpose.msra.mxu0 0
        %1915 = vmatprep.subr.bf16.mxu0 0
        %1916 = vmatpush1.bf16.xpose.msra.mxu0 0
        %1917 = vmatprep.subr.bf16.mxu0 0
        %1918 = vmatpush1.bf16.xpose.msra.mxu0 0
        %1919 = vmatprep.subr.bf16.mxu0 0
        %1920 = vmatpush1.bf16.xpose.msra.mxu0 0
        %1921 = vmatprep.subr.bf16.mxu0 0
        %1922 = vmatpush1.bf16.xpose.msra.mxu0 0
        %1923 = vmatprep.subr.bf16.mxu0 0
        %1924 = vmatpush1.bf16.xpose.msra.mxu0 0
        %1925 = vmatprep.subr.bf16.mxu0 0
        %1926 = vmatpush1.bf16.xpose.msra.mxu0 0
        %1927 = vmatprep.subr.bf16.mxu0 0
        %1928 = vmatpush1.bf16.xpose.msra.mxu0 0
        %1929 = vmatprep.subr.bf16.mxu0 0
        %1930 = vmatpush1.bf16.xpose.msra.mxu0 0
        %1931 = vmatprep.subr.bf16.mxu0 0
        %1932 = vmatpush1.bf16.xpose.msra.mxu0 0
        %1933 = vmatprep.mubr.bf16.mxu0 0
        %1934 = vmatmul.mubr.bf16.gmra.mrb[0].mxu0 %v1896
        %v1935 = vpop.f32.mrb[0].mxu0
        %v1936 = vadd.f32 0.0, %v1935
        %v1937 = vpop.f32.mrb[0].mxu0
        %v1938 = vpop.f32.mrb[0].mxu0
        %v1939 = vpop.f32.mrb[0].mxu0
        %1940 = vdwg.mxu0
        %1942 = vrot.lane.b32.xlu0 %v708, 96
        %v1943 = vpop.permute.xlu0 %1942
        %v1945 = vsel %vm718, %v708, 0
        %v1948 = vsel %vm718, %v1943, 0
        %1950 = vmatprep.subr.bf16.mxu0 0
        %1951 = vmatpush1.bf16.xpose.msra.mxu0 %v1948
        %1952 = vmatprep.subr.bf16.mxu0 0
        %1953 = vmatpush1.bf16.xpose.msra.mxu0 0
        %1954 = vmatprep.subr.bf16.mxu0 0
        %1955 = vmatpush1.bf16.xpose.msra.mxu0 0
        %1956 = vmatprep.subr.bf16.mxu0 0
        %1957 = vmatpush1.bf16.xpose.msra.mxu0 0
        %1958 = vmatprep.subr.bf16.mxu0 0
        %1959 = vmatpush1.bf16.xpose.msra.mxu0 0
        %1960 = vmatprep.subr.bf16.mxu0 0
        %1961 = vmatpush1.bf16.xpose.msra.mxu0 0
        %1962 = vmatprep.subr.bf16.mxu0 0
        %1963 = vmatpush1.bf16.xpose.msra.mxu0 0
        %1964 = vmatprep.subr.bf16.mxu0 0
        %1965 = vmatpush1.bf16.xpose.msra.mxu0 0
        %1966 = vmatprep.subr.bf16.mxu0 0
        %1967 = vmatpush1.bf16.xpose.msra.mxu0 0
        %1968 = vmatprep.subr.bf16.mxu0 0
        %1969 = vmatpush1.bf16.xpose.msra.mxu0 0
        %1970 = vmatprep.subr.bf16.mxu0 0
        %1971 = vmatpush1.bf16.xpose.msra.mxu0 0
        %1972 = vmatprep.subr.bf16.mxu0 0
        %1973 = vmatpush1.bf16.xpose.msra.mxu0 0
        %1974 = vmatprep.subr.bf16.mxu0 0
        %1975 = vmatpush1.bf16.xpose.msra.mxu0 0
        %1976 = vmatprep.subr.bf16.mxu0 0
        %1977 = vmatpush1.bf16.xpose.msra.mxu0 0
        %1978 = vmatprep.subr.bf16.mxu0 0
        %1979 = vmatpush1.bf16.xpose.msra.mxu0 0
        %1980 = vmatprep.subr.bf16.mxu0 0
        %1981 = vmatpush1.bf16.xpose.msra.mxu0 0
        %1982 = vmatprep.mubr.bf16.mxu0 0
        %1983 = vmatmul.mubr.bf16.gmra.mrb[0].mxu0 %v1945
        %v1984 = vpop.f32.mrb[0].mxu0
        %v1985 = vadd.f32 0.0, %v1984
        %v1986 = vpop.f32.mrb[0].mxu0
        %v1987 = vpop.f32.mrb[0].mxu0
        %v1988 = vpop.f32.mrb[0].mxu0
        %1989 = vdwg.mxu0
        %1991 = vrot.lane.b32.xlu0 %v709, 96
        %v1992 = vpop.permute.xlu0 %1991
        %v1994 = vsel %vm718, %v709, 0
        %v1997 = vsel %vm718, %v1992, 0
        %1999 = vmatprep.subr.bf16.mxu0 0
        %2000 = vmatpush1.bf16.xpose.msra.mxu0 %v1997
        %2001 = vmatprep.subr.bf16.mxu0 0
        %2002 = vmatpush1.bf16.xpose.msra.mxu0 0
        %2003 = vmatprep.subr.bf16.mxu0 0
        %2004 = vmatpush1.bf16.xpose.msra.mxu0 0
        %2005 = vmatprep.subr.bf16.mxu0 0
        %2006 = vmatpush1.bf16.xpose.msra.mxu0 0
        %2007 = vmatprep.subr.bf16.mxu0 0
        %2008 = vmatpush1.bf16.xpose.msra.mxu0 0
        %2009 = vmatprep.subr.bf16.mxu0 0
        %2010 = vmatpush1.bf16.xpose.msra.mxu0 0
        %2011 = vmatprep.subr.bf16.mxu0 0
        %2012 = vmatpush1.bf16.xpose.msra.mxu0 0
        %2013 = vmatprep.subr.bf16.mxu0 0
        %2014 = vmatpush1.bf16.xpose.msra.mxu0 0
        %2015 = vmatprep.subr.bf16.mxu0 0
        %2016 = vmatpush1.bf16.xpose.msra.mxu0 0
        %2017 = vmatprep.subr.bf16.mxu0 0
        %2018 = vmatpush1.bf16.xpose.msra.mxu0 0
        %2019 = vmatprep.subr.bf16.mxu0 0
        %2020 = vmatpush1.bf16.xpose.msra.mxu0 0
        %2021 = vmatprep.subr.bf16.mxu0 0
        %2022 = vmatpush1.bf16.xpose.msra.mxu0 0
        %2023 = vmatprep.subr.bf16.mxu0 0
        %2024 = vmatpush1.bf16.xpose.msra.mxu0 0
        %2025 = vmatprep.subr.bf16.mxu0 0
        %2026 = vmatpush1.bf16.xpose.msra.mxu0 0
        %2027 = vmatprep.subr.bf16.mxu0 0
        %2028 = vmatpush1.bf16.xpose.msra.mxu0 0
        %2029 = vmatprep.subr.bf16.mxu0 0
        %2030 = vmatpush1.bf16.xpose.msra.mxu0 0
        %2031 = vmatprep.mubr.bf16.mxu0 0
        %2032 = vmatmul.mubr.bf16.gmra.mrb[0].mxu0 %v1994
        %v2033 = vpop.f32.mrb[0].mxu0
        %v2034 = vadd.f32 0.0, %v2033
        %v2035 = vpop.f32.mrb[0].mxu0
        %v2036 = vpop.f32.mrb[0].mxu0
        %v2037 = vpop.f32.mrb[0].mxu0
        %2038 = vdwg.mxu0
        %2040 = vrot.lane.b32.xlu0 %v710, 96
        %v2041 = vpop.permute.xlu0 %2040
        %v2043 = vsel %vm718, %v710, 0
        %v2046 = vsel %vm718, %v2041, 0
        %2048 = vmatprep.subr.bf16.mxu0 0
        %2049 = vmatpush1.bf16.xpose.msra.mxu0 %v2046
        %2050 = vmatprep.subr.bf16.mxu0 0
        %2051 = vmatpush1.bf16.xpose.msra.mxu0 0
        %2052 = vmatprep.subr.bf16.mxu0 0
        %2053 = vmatpush1.bf16.xpose.msra.mxu0 0
        %2054 = vmatprep.subr.bf16.mxu0 0
        %2055 = vmatpush1.bf16.xpose.msra.mxu0 0
        %2056 = vmatprep.subr.bf16.mxu0 0
        %2057 = vmatpush1.bf16.xpose.msra.mxu0 0
        %2058 = vmatprep.subr.bf16.mxu0 0
        %2059 = vmatpush1.bf16.xpose.msra.mxu0 0
        %2060 = vmatprep.subr.bf16.mxu0 0
        %2061 = vmatpush1.bf16.xpose.msra.mxu0 0
        %2062 = vmatprep.subr.bf16.mxu0 0
        %2063 = vmatpush1.bf16.xpose.msra.mxu0 0
        %2064 = vmatprep.subr.bf16.mxu0 0
        %2065 = vmatpush1.bf16.xpose.msra.mxu0 0
        %2066 = vmatprep.subr.bf16.mxu0 0
        %2067 = vmatpush1.bf16.xpose.msra.mxu0 0
        %2068 = vmatprep.subr.bf16.mxu0 0
        %2069 = vmatpush1.bf16.xpose.msra.mxu0 0
        %2070 = vmatprep.subr.bf16.mxu0 0
        %2071 = vmatpush1.bf16.xpose.msra.mxu0 0
        %2072 = vmatprep.subr.bf16.mxu0 0
        %2073 = vmatpush1.bf16.xpose.msra.mxu0 0
        %2074 = vmatprep.subr.bf16.mxu0 0
        %2075 = vmatpush1.bf16.xpose.msra.mxu0 0
        %2076 = vmatprep.subr.bf16.mxu0 0
        %2077 = vmatpush1.bf16.xpose.msra.mxu0 0
        %2078 = vmatprep.subr.bf16.mxu0 0
        %2079 = vmatpush1.bf16.xpose.msra.mxu0 0
        %2080 = vmatprep.mubr.bf16.mxu0 0
        %2081 = vmatmul.mubr.bf16.gmra.mrb[0].mxu0 %v2043
        %v2082 = vpop.f32.mrb[0].mxu0
        %v2083 = vadd.f32 0.0, %v2082
        %v2084 = vpop.f32.mrb[0].mxu0
        %v2085 = vpop.f32.mrb[0].mxu0
        %v2086 = vpop.f32.mrb[0].mxu0
        %2087 = vdwg.mxu0
        %2089 = vrot.lane.b32.xlu0 %v711, 96
        %v2090 = vpop.permute.xlu0 %2089
        %v2092 = vsel %vm718, %v711, 0
        %v2095 = vsel %vm718, %v2090, 0
        %2097 = vmatprep.subr.bf16.mxu0 0
        %2098 = vmatpush1.bf16.xpose.msra.mxu0 %v2095
        %2099 = vmatprep.subr.bf16.mxu0 0
        %2100 = vmatpush1.bf16.xpose.msra.mxu0 0
        %2101 = vmatprep.subr.bf16.mxu0 0
        %2102 = vmatpush1.bf16.xpose.msra.mxu0 0
        %2103 = vmatprep.subr.bf16.mxu0 0
        %2104 = vmatpush1.bf16.xpose.msra.mxu0 0
        %2105 = vmatprep.subr.bf16.mxu0 0
        %2106 = vmatpush1.bf16.xpose.msra.mxu0 0
        %2107 = vmatprep.subr.bf16.mxu0 0
        %2108 = vmatpush1.bf16.xpose.msra.mxu0 0
        %2109 = vmatprep.subr.bf16.mxu0 0
        %2110 = vmatpush1.bf16.xpose.msra.mxu0 0
        %2111 = vmatprep.subr.bf16.mxu0 0
        %2112 = vmatpush1.bf16.xpose.msra.mxu0 0
        %2113 = vmatprep.subr.bf16.mxu0 0
        %2114 = vmatpush1.bf16.xpose.msra.mxu0 0
        %2115 = vmatprep.subr.bf16.mxu0 0
        %2116 = vmatpush1.bf16.xpose.msra.mxu0 0
        %2117 = vmatprep.subr.bf16.mxu0 0
        %2118 = vmatpush1.bf16.xpose.msra.mxu0 0
        %2119 = vmatprep.subr.bf16.mxu0 0
        %2120 = vmatpush1.bf16.xpose.msra.mxu0 0
        %2121 = vmatprep.subr.bf16.mxu0 0
        %2122 = vmatpush1.bf16.xpose.msra.mxu0 0
        %2123 = vmatprep.subr.bf16.mxu0 0
        %2124 = vmatpush1.bf16.xpose.msra.mxu0 0
        %2125 = vmatprep.subr.bf16.mxu0 0
        %2126 = vmatpush1.bf16.xpose.msra.mxu0 0
        %2127 = vmatprep.subr.bf16.mxu0 0
        %2128 = vmatpush1.bf16.xpose.msra.mxu0 0
        %2129 = vmatprep.mubr.bf16.mxu0 0
        %2130 = vmatmul.mubr.bf16.gmra.mrb[0].mxu0 %v2092
        %v2131 = vpop.f32.mrb[0].mxu0
        %v2132 = vadd.f32 0.0, %v2131
        %v2133 = vpop.f32.mrb[0].mxu0
        %v2134 = vpop.f32.mrb[0].mxu0
        %v2135 = vpop.f32.mrb[0].mxu0
        %2136 = vdwg.mxu0
        %2138 = vrot.lane.b32.xlu0 %v712, 96
        %v2139 = vpop.permute.xlu0 %2138
        %v2141 = vsel %vm718, %v712, 0
        %v2144 = vsel %vm718, %v2139, 0
        %2146 = vmatprep.subr.bf16.mxu0 0
        %2147 = vmatpush1.bf16.xpose.msra.mxu0 %v2144
        %2148 = vmatprep.subr.bf16.mxu0 0
        %2149 = vmatpush1.bf16.xpose.msra.mxu0 0
        %2150 = vmatprep.subr.bf16.mxu0 0
        %2151 = vmatpush1.bf16.xpose.msra.mxu0 0
        %2152 = vmatprep.subr.bf16.mxu0 0
        %2153 = vmatpush1.bf16.xpose.msra.mxu0 0
        %2154 = vmatprep.subr.bf16.mxu0 0
        %2155 = vmatpush1.bf16.xpose.msra.mxu0 0
        %2156 = vmatprep.subr.bf16.mxu0 0
        %2157 = vmatpush1.bf16.xpose.msra.mxu0 0
        %2158 = vmatprep.subr.bf16.mxu0 0
        %2159 = vmatpush1.bf16.xpose.msra.mxu0 0
        %2160 = vmatprep.subr.bf16.mxu0 0
        %2161 = vmatpush1.bf16.xpose.msra.mxu0 0
        %2162 = vmatprep.subr.bf16.mxu0 0
        %2163 = vmatpush1.bf16.xpose.msra.mxu0 0
        %2164 = vmatprep.subr.bf16.mxu0 0
        %2165 = vmatpush1.bf16.xpose.msra.mxu0 0
        %2166 = vmatprep.subr.bf16.mxu0 0
        %2167 = vmatpush1.bf16.xpose.msra.mxu0 0
        %2168 = vmatprep.subr.bf16.mxu0 0
        %2169 = vmatpush1.bf16.xpose.msra.mxu0 0
        %2170 = vmatprep.subr.bf16.mxu0 0
        %2171 = vmatpush1.bf16.xpose.msra.mxu0 0
        %2172 = vmatprep.subr.bf16.mxu0 0
        %2173 = vmatpush1.bf16.xpose.msra.mxu0 0
        %2174 = vmatprep.subr.bf16.mxu0 0
        %2175 = vmatpush1.bf16.xpose.msra.mxu0 0
        %2176 = vmatprep.subr.bf16.mxu0 0
        %2177 = vmatpush1.bf16.xpose.msra.mxu0 0
        %2178 = vmatprep.mubr.bf16.mxu0 0
        %2179 = vmatmul.mubr.bf16.gmra.mrb[0].mxu0 %v2141
        %v2180 = vpop.f32.mrb[0].mxu0
        %v2181 = vadd.f32 0.0, %v2180
        %v2182 = vpop.f32.mrb[0].mxu0
        %v2183 = vpop.f32.mrb[0].mxu0
        %v2184 = vpop.f32.mrb[0].mxu0
        %2185 = vdwg.mxu0
        %2187 = vrot.lane.b32.xlu0 %v713, 96
        %v2188 = vpop.permute.xlu0 %2187
        %v2190 = vsel %vm718, %v713, 0
        %v2193 = vsel %vm718, %v2188, 0
        %2195 = vmatprep.subr.bf16.mxu0 0
        %2196 = vmatpush1.bf16.xpose.msra.mxu0 %v2193
        %2197 = vmatprep.subr.bf16.mxu0 0
        %2198 = vmatpush1.bf16.xpose.msra.mxu0 0
        %2199 = vmatprep.subr.bf16.mxu0 0
        %2200 = vmatpush1.bf16.xpose.msra.mxu0 0
        %2201 = vmatprep.subr.bf16.mxu0 0
        %2202 = vmatpush1.bf16.xpose.msra.mxu0 0
        %2203 = vmatprep.subr.bf16.mxu0 0
        %2204 = vmatpush1.bf16.xpose.msra.mxu0 0
        %2205 = vmatprep.subr.bf16.mxu0 0
        %2206 = vmatpush1.bf16.xpose.msra.mxu0 0
        %2207 = vmatprep.subr.bf16.mxu0 0
        %2208 = vmatpush1.bf16.xpose.msra.mxu0 0
        %2209 = vmatprep.subr.bf16.mxu0 0
        %2210 = vmatpush1.bf16.xpose.msra.mxu0 0
        %2211 = vmatprep.subr.bf16.mxu0 0
        %2212 = vmatpush1.bf16.xpose.msra.mxu0 0
        %2213 = vmatprep.subr.bf16.mxu0 0
        %2214 = vmatpush1.bf16.xpose.msra.mxu0 0
        %2215 = vmatprep.subr.bf16.mxu0 0
        %2216 = vmatpush1.bf16.xpose.msra.mxu0 0
        %2217 = vmatprep.subr.bf16.mxu0 0
        %2218 = vmatpush1.bf16.xpose.msra.mxu0 0
        %2219 = vmatprep.subr.bf16.mxu0 0
        %2220 = vmatpush1.bf16.xpose.msra.mxu0 0
        %2221 = vmatprep.subr.bf16.mxu0 0
        %2222 = vmatpush1.bf16.xpose.msra.mxu0 0
        %2223 = vmatprep.subr.bf16.mxu0 0
        %2224 = vmatpush1.bf16.xpose.msra.mxu0 0
        %2225 = vmatprep.subr.bf16.mxu0 0
        %2226 = vmatpush1.bf16.xpose.msra.mxu0 0
        %2227 = vmatprep.mubr.bf16.mxu0 0
        %2228 = vmatmul.mubr.bf16.gmra.mrb[0].mxu0 %v2190
        %v2229 = vpop.f32.mrb[0].mxu0
        %v2230 = vadd.f32 0.0, %v2229
        %v2231 = vpop.f32.mrb[0].mxu0
        %v2232 = vpop.f32.mrb[0].mxu0
        %v2233 = vpop.f32.mrb[0].mxu0
        %2234 = vdwg.mxu0
        %2236 = vrot.lane.b32.xlu0 %v714, 96
        %v2237 = vpop.permute.xlu0 %2236
        %v2239 = vsel %vm718, %v714, 0
        %v2242 = vsel %vm718, %v2237, 0
        %2244 = vmatprep.subr.bf16.mxu0 0
        %2245 = vmatpush1.bf16.xpose.msra.mxu0 %v2242
        %2246 = vmatprep.subr.bf16.mxu0 0
        %2247 = vmatpush1.bf16.xpose.msra.mxu0 0
        %2248 = vmatprep.subr.bf16.mxu0 0
        %2249 = vmatpush1.bf16.xpose.msra.mxu0 0
        %2250 = vmatprep.subr.bf16.mxu0 0
        %2251 = vmatpush1.bf16.xpose.msra.mxu0 0
        %2252 = vmatprep.subr.bf16.mxu0 0
        %2253 = vmatpush1.bf16.xpose.msra.mxu0 0
        %2254 = vmatprep.subr.bf16.mxu0 0
        %2255 = vmatpush1.bf16.xpose.msra.mxu0 0
        %2256 = vmatprep.subr.bf16.mxu0 0
        %2257 = vmatpush1.bf16.xpose.msra.mxu0 0
        %2258 = vmatprep.subr.bf16.mxu0 0
        %2259 = vmatpush1.bf16.xpose.msra.mxu0 0
        %2260 = vmatprep.subr.bf16.mxu0 0
        %2261 = vmatpush1.bf16.xpose.msra.mxu0 0
        %2262 = vmatprep.subr.bf16.mxu0 0
        %2263 = vmatpush1.bf16.xpose.msra.mxu0 0
        %2264 = vmatprep.subr.bf16.mxu0 0
        %2265 = vmatpush1.bf16.xpose.msra.mxu0 0
        %2266 = vmatprep.subr.bf16.mxu0 0
        %2267 = vmatpush1.bf16.xpose.msra.mxu0 0
        %2268 = vmatprep.subr.bf16.mxu0 0
        %2269 = vmatpush1.bf16.xpose.msra.mxu0 0
        %2270 = vmatprep.subr.bf16.mxu0 0
        %2271 = vmatpush1.bf16.xpose.msra.mxu0 0
        %2272 = vmatprep.subr.bf16.mxu0 0
        %2273 = vmatpush1.bf16.xpose.msra.mxu0 0
        %2274 = vmatprep.subr.bf16.mxu0 0
        %2275 = vmatpush1.bf16.xpose.msra.mxu0 0
        %2276 = vmatprep.mubr.bf16.mxu0 0
        %2277 = vmatmul.mubr.bf16.gmra.mrb[0].mxu0 %v2239
        %v2278 = vpop.f32.mrb[0].mxu0
        %v2279 = vadd.f32 0.0, %v2278
        %v2280 = vpop.f32.mrb[0].mxu0
        %v2281 = vpop.f32.mrb[0].mxu0
        %v2282 = vpop.f32.mrb[0].mxu0
        %2283 = vdwg.mxu0
        %v2284 = vmul.f32 %v760, 0.35355338
        %v2285 = vmul.f32 %v809, 0.35355338
        %v2286 = vmul.f32 %v858, 0.35355338
        %v2287 = vmul.f32 %v907, 0.35355338
        %v2288 = vmul.f32 %v956, 0.35355338
        %v2289 = vmul.f32 %v1005, 0.35355338
        %v2290 = vmul.f32 %v1054, 0.35355338
        %v2291 = vmul.f32 %v1103, 0.35355338
        %v2292 = vmul.f32 %v1152, 0.35355338
        %v2293 = vmul.f32 %v1201, 0.35355338
        %v2294 = vmul.f32 %v1250, 0.35355338
        %v2295 = vmul.f32 %v1299, 0.35355338
        %v2296 = vmul.f32 %v1348, 0.35355338
        %v2297 = vmul.f32 %v1397, 0.35355338
        %v2298 = vmul.f32 %v1446, 0.35355338
        %v2299 = vmul.f32 %v1495, 0.35355338
        %v2300 = vmul.f32 %v1544, 0.35355338
        %v2301 = vmul.f32 %v1593, 0.35355338
        %v2302 = vmul.f32 %v1642, 0.35355338
        %v2303 = vmul.f32 %v1691, 0.35355338
        %v2304 = vmul.f32 %v1740, 0.35355338
        %v2305 = vmul.f32 %v1789, 0.35355338
        %v2306 = vmul.f32 %v1838, 0.35355338
        %v2307 = vmul.f32 %v1887, 0.35355338
        %v2308 = vmul.f32 %v1936, 0.35355338
        %v2309 = vmul.f32 %v1985, 0.35355338
        %v2310 = vmul.f32 %v2034, 0.35355338
        %v2311 = vmul.f32 %v2083, 0.35355338
        %v2312 = vmul.f32 %v2132, 0.35355338
        %v2313 = vmul.f32 %v2181, 0.35355338
        %v2314 = vmul.f32 %v2230, 0.35355338
        %v2315 = vmul.f32 %v2279, 0.35355338
        %v2317 = vlaneseq
        %v2318 = vshrl.u32 %v2317, 7
        %v2319 = vsub.s32 0, %v2318
        %v2320 = vrot.slane %v362, %v2319
        %v2322 = vadd.f32 %v2284, %v2320
        %v2323 = vadd.f32 %v2285, %v2320
        %v2324 = vadd.f32 %v2286, %v2320
        %v2325 = vadd.f32 %v2287, %v2320
        %v2326 = vadd.f32 %v2288, %v2320
        %v2327 = vadd.f32 %v2289, %v2320
        %v2328 = vadd.f32 %v2290, %v2320
        %v2329 = vadd.f32 %v2291, %v2320
        %v2330 = vadd.f32 %v2292, %v2320
        %v2331 = vadd.f32 %v2293, %v2320
        %v2332 = vadd.f32 %v2294, %v2320
        %v2333 = vadd.f32 %v2295, %v2320
        %v2334 = vadd.f32 %v2296, %v2320
        %v2335 = vadd.f32 %v2297, %v2320
        %v2336 = vadd.f32 %v2298, %v2320
        %v2337 = vadd.f32 %v2299, %v2320
        %v2338 = vadd.f32 %v2300, %v2320
        %v2339 = vadd.f32 %v2301, %v2320
        %v2340 = vadd.f32 %v2302, %v2320
        %v2341 = vadd.f32 %v2303, %v2320
        %v2342 = vadd.f32 %v2304, %v2320
        %v2343 = vadd.f32 %v2305, %v2320
        %v2344 = vadd.f32 %v2306, %v2320
        %v2345 = vadd.f32 %v2307, %v2320
        %v2346 = vadd.f32 %v2308, %v2320
        %v2347 = vadd.f32 %v2309, %v2320
        %v2348 = vadd.f32 %v2310, %v2320
        %v2349 = vadd.f32 %v2311, %v2320
        %v2350 = vadd.f32 %v2312, %v2320
        %v2351 = vadd.f32 %v2313, %v2320
        %v2352 = vadd.f32 %v2314, %v2320
        %v2353 = vadd.f32 %v2315, %v2320
        %v2354 = vsel %vm718, %v2322, -inf
        %2355 = vmax.xlane.f32.xlu0 %v2354
        %v2356 = vpop.xlane.xlu0 %2355
        %v2357 = vsel %vm718, %v2323, -inf
        %2358 = vmax.xlane.f32.xlu0 %v2357
        %v2359 = vpop.xlane.xlu0 %2358
        %v2360 = vsel %vm718, %v2324, -inf
        %2361 = vmax.xlane.f32.xlu0 %v2360
        %v2362 = vpop.xlane.xlu0 %2361
        %v2363 = vsel %vm718, %v2325, -inf
        %2364 = vmax.xlane.f32.xlu0 %v2363
        %v2365 = vpop.xlane.xlu0 %2364
        %v2366 = vsel %vm718, %v2326, -inf
        %2367 = vmax.xlane.f32.xlu0 %v2366
        %v2368 = vpop.xlane.xlu0 %2367
        %v2369 = vsel %vm718, %v2327, -inf
        %2370 = vmax.xlane.f32.xlu0 %v2369
        %v2371 = vpop.xlane.xlu0 %2370
        %v2372 = vsel %vm718, %v2328, -inf
        %2373 = vmax.xlane.f32.xlu0 %v2372
        %v2374 = vpop.xlane.xlu0 %2373
        %v2375 = vsel %vm718, %v2329, -inf
        %2376 = vmax.xlane.f32.xlu0 %v2375
        %v2377 = vpop.xlane.xlu0 %2376
        %v2378 = vsel %vm718, %v2330, -inf
        %2379 = vmax.xlane.f32.xlu0 %v2378
        %v2380 = vpop.xlane.xlu0 %2379
        %v2381 = vsel %vm718, %v2331, -inf
        %2382 = vmax.xlane.f32.xlu0 %v2381
        %v2383 = vpop.xlane.xlu0 %2382
        %v2384 = vsel %vm718, %v2332, -inf
        %2385 = vmax.xlane.f32.xlu0 %v2384
        %v2386 = vpop.xlane.xlu0 %2385
        %v2387 = vsel %vm718, %v2333, -inf
        %2388 = vmax.xlane.f32.xlu0 %v2387
        %v2389 = vpop.xlane.xlu0 %2388
        %v2390 = vsel %vm718, %v2334, -inf
        %2391 = vmax.xlane.f32.xlu0 %v2390
        %v2392 = vpop.xlane.xlu0 %2391
        %v2393 = vsel %vm718, %v2335, -inf
        %2394 = vmax.xlane.f32.xlu0 %v2393
        %v2395 = vpop.xlane.xlu0 %2394
        %v2396 = vsel %vm718, %v2336, -inf
        %2397 = vmax.xlane.f32.xlu0 %v2396
        %v2398 = vpop.xlane.xlu0 %2397
        %v2399 = vsel %vm718, %v2337, -inf
        %2400 = vmax.xlane.f32.xlu0 %v2399
        %v2401 = vpop.xlane.xlu0 %2400
        %v2402 = vsel %vm718, %v2338, -inf
        %2403 = vmax.xlane.f32.xlu0 %v2402
        %v2404 = vpop.xlane.xlu0 %2403
        %v2405 = vsel %vm718, %v2339, -inf
        %2406 = vmax.xlane.f32.xlu0 %v2405
        %v2407 = vpop.xlane.xlu0 %2406
        %v2408 = vsel %vm718, %v2340, -inf
        %2409 = vmax.xlane.f32.xlu0 %v2408
        %v2410 = vpop.xlane.xlu0 %2409
        %v2411 = vsel %vm718, %v2341, -inf
        %2412 = vmax.xlane.f32.xlu0 %v2411
        %v2413 = vpop.xlane.xlu0 %2412
        %v2414 = vsel %vm718, %v2342, -inf
        %2415 = vmax.xlane.f32.xlu0 %v2414
        %v2416 = vpop.xlane.xlu0 %2415
        %v2417 = vsel %vm718, %v2343, -inf
        %2418 = vmax.xlane.f32.xlu0 %v2417
        %v2419 = vpop.xlane.xlu0 %2418
        %v2420 = vsel %vm718, %v2344, -inf
        %2421 = vmax.xlane.f32.xlu0 %v2420
        %v2422 = vpop.xlane.xlu0 %2421
        %v2423 = vsel %vm718, %v2345, -inf
        %2424 = vmax.xlane.f32.xlu0 %v2423
        %v2425 = vpop.xlane.xlu0 %2424
        %v2426 = vsel %vm718, %v2346, -inf
        %2427 = vmax.xlane.f32.xlu0 %v2426
        %v2428 = vpop.xlane.xlu0 %2427
        %v2429 = vsel %vm718, %v2347, -inf
        %2430 = vmax.xlane.f32.xlu0 %v2429
        %v2431 = vpop.xlane.xlu0 %2430
        %v2432 = vsel %vm718, %v2348, -inf
        %2433 = vmax.xlane.f32.xlu0 %v2432
        %v2434 = vpop.xlane.xlu0 %2433
        %v2435 = vsel %vm718, %v2349, -inf
        %2436 = vmax.xlane.f32.xlu0 %v2435
        %v2437 = vpop.xlane.xlu0 %2436
        %v2438 = vsel %vm718, %v2350, -inf
        %2439 = vmax.xlane.f32.xlu0 %v2438
        %v2440 = vpop.xlane.xlu0 %2439
        %v2441 = vsel %vm718, %v2351, -inf
        %2442 = vmax.xlane.f32.xlu0 %v2441
        %v2443 = vpop.xlane.xlu0 %2442
        %v2444 = vsel %vm718, %v2352, -inf
        %2445 = vmax.xlane.f32.xlu0 %v2444
        %v2446 = vpop.xlane.xlu0 %2445
        %v2447 = vsel %vm718, %v2353, -inf
        %2448 = vmax.xlane.f32.xlu0 %v2447
        %v2449 = vpop.xlane.xlu0 %2448
        %v2450 = vsub.f32 %v2322, %v2356
        %v2451 = vsub.f32 %v2323, %v2359
        %v2452 = vsub.f32 %v2324, %v2362
        %v2453 = vsub.f32 %v2325, %v2365
        %v2454 = vsub.f32 %v2326, %v2368
        %v2455 = vsub.f32 %v2327, %v2371
        %v2456 = vsub.f32 %v2328, %v2374
        %v2457 = vsub.f32 %v2329, %v2377
        %v2458 = vsub.f32 %v2330, %v2380
        %v2459 = vsub.f32 %v2331, %v2383
        %v2460 = vsub.f32 %v2332, %v2386
        %v2461 = vsub.f32 %v2333, %v2389
        %v2462 = vsub.f32 %v2334, %v2392
        %v2463 = vsub.f32 %v2335, %v2395
        %v2464 = vsub.f32 %v2336, %v2398
        %v2465 = vsub.f32 %v2337, %v2401
        %v2466 = vsub.f32 %v2338, %v2404
        %v2467 = vsub.f32 %v2339, %v2407
        %v2468 = vsub.f32 %v2340, %v2410
        %v2469 = vsub.f32 %v2341, %v2413
        %v2470 = vsub.f32 %v2342, %v2416
        %v2471 = vsub.f32 %v2343, %v2419
        %v2472 = vsub.f32 %v2344, %v2422
        %v2473 = vsub.f32 %v2345, %v2425
        %v2474 = vsub.f32 %v2346, %v2428
        %v2475 = vsub.f32 %v2347, %v2431
        %v2476 = vsub.f32 %v2348, %v2434
        %v2477 = vsub.f32 %v2349, %v2437
        %v2478 = vsub.f32 %v2350, %v2440
        %v2479 = vsub.f32 %v2351, %v2443
        %v2480 = vsub.f32 %v2352, %v2446
        %v2481 = vsub.f32 %v2353, %v2449
        %v2482 = vmul.f32 %v2450, 1.442695
        %v2483 = vpow.pop %v2482
        %v2484 = vmul.f32 %v2451, 1.442695
        %v2485 = vpow.pop %v2484
        %v2486 = vmul.f32 %v2452, 1.442695
        %v2487 = vpow.pop %v2486
        %v2488 = vmul.f32 %v2453, 1.442695
        %v2489 = vpow.pop %v2488
        %v2490 = vmul.f32 %v2454, 1.442695
        %v2491 = vpow.pop %v2490
        %v2492 = vmul.f32 %v2455, 1.442695
        %v2493 = vpow.pop %v2492
        %v2494 = vmul.f32 %v2456, 1.442695
        %v2495 = vpow.pop %v2494
        %v2496 = vmul.f32 %v2457, 1.442695
        %v2497 = vpow.pop %v2496
        %v2498 = vmul.f32 %v2458, 1.442695
        %v2499 = vpow.pop %v2498
        %v2500 = vmul.f32 %v2459, 1.442695
        %v2501 = vpow.pop %v2500
        %v2502 = vmul.f32 %v2460, 1.442695
        %v2503 = vpow.pop %v2502
        %v2504 = vmul.f32 %v2461, 1.442695
        %v2505 = vpow.pop %v2504
        %v2506 = vmul.f32 %v2462, 1.442695
        %v2507 = vpow.pop %v2506
        %v2508 = vmul.f32 %v2463, 1.442695
        %v2509 = vpow.pop %v2508
        %v2510 = vmul.f32 %v2464, 1.442695
        %v2511 = vpow.pop %v2510
        %v2512 = vmul.f32 %v2465, 1.442695
        %v2513 = vpow.pop %v2512
        %v2514 = vmul.f32 %v2466, 1.442695
        %v2515 = vpow.pop %v2514
        %v2516 = vmul.f32 %v2467, 1.442695
        %v2517 = vpow.pop %v2516
        %v2518 = vmul.f32 %v2468, 1.442695
        %v2519 = vpow.pop %v2518
        %v2520 = vmul.f32 %v2469, 1.442695
        %v2521 = vpow.pop %v2520
        %v2522 = vmul.f32 %v2470, 1.442695
        %v2523 = vpow.pop %v2522
        %v2524 = vmul.f32 %v2471, 1.442695
        %v2525 = vpow.pop %v2524
        %v2526 = vmul.f32 %v2472, 1.442695
        %v2527 = vpow.pop %v2526
        %v2528 = vmul.f32 %v2473, 1.442695
        %v2529 = vpow.pop %v2528
        %v2530 = vmul.f32 %v2474, 1.442695
        %v2531 = vpow.pop %v2530
        %v2532 = vmul.f32 %v2475, 1.442695
        %v2533 = vpow.pop %v2532
        %v2534 = vmul.f32 %v2476, 1.442695
        %v2535 = vpow.pop %v2534
        %v2536 = vmul.f32 %v2477, 1.442695
        %v2537 = vpow.pop %v2536
        %v2538 = vmul.f32 %v2478, 1.442695
        %v2539 = vpow.pop %v2538
        %v2540 = vmul.f32 %v2479, 1.442695
        %v2541 = vpow.pop %v2540
        %v2542 = vmul.f32 %v2480, 1.442695
        %v2543 = vpow.pop %v2542
        %v2544 = vmul.f32 %v2481, 1.442695
        %v2545 = vpow.pop %v2544
        %v2546 = vsel %vm718, %v2483, 0.0
        %2547 = vadd.xlane.f32.xlu0 %v2546
        %v2548 = vpop.xlane.xlu0 %2547
        %v2549 = vsel %vm718, %v2485, 0.0
        %2550 = vadd.xlane.f32.xlu0 %v2549
        %v2551 = vpop.xlane.xlu0 %2550
        %v2552 = vsel %vm718, %v2487, 0.0
        %2553 = vadd.xlane.f32.xlu0 %v2552
        %v2554 = vpop.xlane.xlu0 %2553
        %v2555 = vsel %vm718, %v2489, 0.0
        %2556 = vadd.xlane.f32.xlu0 %v2555
        %v2557 = vpop.xlane.xlu0 %2556
        %v2558 = vsel %vm718, %v2491, 0.0
        %2559 = vadd.xlane.f32.xlu0 %v2558
        %v2560 = vpop.xlane.xlu0 %2559
        %v2561 = vsel %vm718, %v2493, 0.0
        %2562 = vadd.xlane.f32.xlu0 %v2561
        %v2563 = vpop.xlane.xlu0 %2562
        %v2564 = vsel %vm718, %v2495, 0.0
        %2565 = vadd.xlane.f32.xlu0 %v2564
        %v2566 = vpop.xlane.xlu0 %2565
        %v2567 = vsel %vm718, %v2497, 0.0
        %2568 = vadd.xlane.f32.xlu0 %v2567
        %v2569 = vpop.xlane.xlu0 %2568
        %v2570 = vsel %vm718, %v2499, 0.0
        %2571 = vadd.xlane.f32.xlu0 %v2570
        %v2572 = vpop.xlane.xlu0 %2571
        %v2573 = vsel %vm718, %v2501, 0.0
        %2574 = vadd.xlane.f32.xlu0 %v2573
        %v2575 = vpop.xlane.xlu0 %2574
        %v2576 = vsel %vm718, %v2503, 0.0
        %2577 = vadd.xlane.f32.xlu0 %v2576
        %v2578 = vpop.xlane.xlu0 %2577
        %v2579 = vsel %vm718, %v2505, 0.0
        %2580 = vadd.xlane.f32.xlu0 %v2579
        %v2581 = vpop.xlane.xlu0 %2580
        %v2582 = vsel %vm718, %v2507, 0.0
        %2583 = vadd.xlane.f32.xlu0 %v2582
        %v2584 = vpop.xlane.xlu0 %2583
        %v2585 = vsel %vm718, %v2509, 0.0
        %2586 = vadd.xlane.f32.xlu0 %v2585
        %v2587 = vpop.xlane.xlu0 %2586
        %v2588 = vsel %vm718, %v2511, 0.0
        %2589 = vadd.xlane.f32.xlu0 %v2588
        %v2590 = vpop.xlane.xlu0 %2589
        %v2591 = vsel %vm718, %v2513, 0.0
        %2592 = vadd.xlane.f32.xlu0 %v2591
        %v2593 = vpop.xlane.xlu0 %2592
        %v2594 = vsel %vm718, %v2515, 0.0
        %2595 = vadd.xlane.f32.xlu0 %v2594
        %v2596 = vpop.xlane.xlu0 %2595
        %v2597 = vsel %vm718, %v2517, 0.0
        %2598 = vadd.xlane.f32.xlu0 %v2597
        %v2599 = vpop.xlane.xlu0 %2598
        %v2600 = vsel %vm718, %v2519, 0.0
        %2601 = vadd.xlane.f32.xlu0 %v2600
        %v2602 = vpop.xlane.xlu0 %2601
        %v2603 = vsel %vm718, %v2521, 0.0
        %2604 = vadd.xlane.f32.xlu0 %v2603
        %v2605 = vpop.xlane.xlu0 %2604
        %v2606 = vsel %vm718, %v2523, 0.0
        %2607 = vadd.xlane.f32.xlu0 %v2606
        %v2608 = vpop.xlane.xlu0 %2607
        %v2609 = vsel %vm718, %v2525, 0.0
        %2610 = vadd.xlane.f32.xlu0 %v2609
        %v2611 = vpop.xlane.xlu0 %2610
        %v2612 = vsel %vm718, %v2527, 0.0
        %2613 = vadd.xlane.f32.xlu0 %v2612
        %v2614 = vpop.xlane.xlu0 %2613
        %v2615 = vsel %vm718, %v2529, 0.0
        %2616 = vadd.xlane.f32.xlu0 %v2615
        %v2617 = vpop.xlane.xlu0 %2616
        %v2618 = vsel %vm718, %v2531, 0.0
        %2619 = vadd.xlane.f32.xlu0 %v2618
        %v2620 = vpop.xlane.xlu0 %2619
        %v2621 = vsel %vm718, %v2533, 0.0
        %2622 = vadd.xlane.f32.xlu0 %v2621
        %v2623 = vpop.xlane.xlu0 %2622
        %v2624 = vsel %vm718, %v2535, 0.0
        %2625 = vadd.xlane.f32.xlu0 %v2624
        %v2626 = vpop.xlane.xlu0 %2625
        %v2627 = vsel %vm718, %v2537, 0.0
        %2628 = vadd.xlane.f32.xlu0 %v2627
        %v2629 = vpop.xlane.xlu0 %2628
        %v2630 = vsel %vm718, %v2539, 0.0
        %2631 = vadd.xlane.f32.xlu0 %v2630
        %v2632 = vpop.xlane.xlu0 %2631
        %v2633 = vsel %vm718, %v2541, 0.0
        %2634 = vadd.xlane.f32.xlu0 %v2633
        %v2635 = vpop.xlane.xlu0 %2634
        %v2636 = vsel %vm718, %v2543, 0.0
        %2637 = vadd.xlane.f32.xlu0 %v2636
        %v2638 = vpop.xlane.xlu0 %2637
        %v2639 = vsel %vm718, %v2545, 0.0
        %2640 = vadd.xlane.f32.xlu0 %v2639
        %v2641 = vpop.xlane.xlu0 %2640
        %v2642 = vrcp.pop %v2548
        %v2643 = vrcp.pop %v2551
        %v2644 = vrcp.pop %v2554
        %v2645 = vrcp.pop %v2557
        %v2646 = vrcp.pop %v2560
        %v2647 = vrcp.pop %v2563
        %v2648 = vrcp.pop %v2566
        %v2649 = vrcp.pop %v2569
        %v2650 = vrcp.pop %v2572
        %v2651 = vrcp.pop %v2575
        %v2652 = vrcp.pop %v2578
        %v2653 = vrcp.pop %v2581
        %v2654 = vrcp.pop %v2584
        %v2655 = vrcp.pop %v2587
        %v2656 = vrcp.pop %v2590
        %v2657 = vrcp.pop %v2593
        %v2658 = vrcp.pop %v2596
        %v2659 = vrcp.pop %v2599
        %v2660 = vrcp.pop %v2602
        %v2661 = vrcp.pop %v2605
        %v2662 = vrcp.pop %v2608
        %v2663 = vrcp.pop %v2611
        %v2664 = vrcp.pop %v2614
        %v2665 = vrcp.pop %v2617
        %v2666 = vrcp.pop %v2620
        %v2667 = vrcp.pop %v2623
        %v2668 = vrcp.pop %v2626
        %v2669 = vrcp.pop %v2629
        %v2670 = vrcp.pop %v2632
        %v2671 = vrcp.pop %v2635
        %v2672 = vrcp.pop %v2638
        %v2673 = vrcp.pop %v2641
        %v2674 = vmul.f32 %v2483, %v2642
        %v2675 = vmul.f32 %v2485, %v2643
        %v2676 = vmul.f32 %v2487, %v2644
        %v2677 = vmul.f32 %v2489, %v2645
        %v2678 = vmul.f32 %v2491, %v2646
        %v2679 = vmul.f32 %v2493, %v2647
        %v2680 = vmul.f32 %v2495, %v2648
        %v2681 = vmul.f32 %v2497, %v2649
        %v2682 = vmul.f32 %v2499, %v2650
        %v2683 = vmul.f32 %v2501, %v2651
        %v2684 = vmul.f32 %v2503, %v2652
        %v2685 = vmul.f32 %v2505, %v2653
        %v2686 = vmul.f32 %v2507, %v2654
        %v2687 = vmul.f32 %v2509, %v2655
        %v2688 = vmul.f32 %v2511, %v2656
        %v2689 = vmul.f32 %v2513, %v2657
        %v2690 = vmul.f32 %v2515, %v2658
        %v2691 = vmul.f32 %v2517, %v2659
        %v2692 = vmul.f32 %v2519, %v2660
        %v2693 = vmul.f32 %v2521, %v2661
        %v2694 = vmul.f32 %v2523, %v2662
        %v2695 = vmul.f32 %v2525, %v2663
        %v2696 = vmul.f32 %v2527, %v2664
        %v2697 = vmul.f32 %v2529, %v2665
        %v2698 = vmul.f32 %v2531, %v2666
        %v2699 = vmul.f32 %v2533, %v2667
        %v2700 = vmul.f32 %v2535, %v2668
        %v2701 = vmul.f32 %v2537, %v2669
        %v2702 = vmul.f32 %v2539, %v2670
        %v2703 = vmul.f32 %v2541, %v2671
        %v2704 = vmul.f32 %v2543, %v2672
        %v2705 = vmul.f32 %v2545, %v2673
        %v2706 = vpack.c.bf16 %v2674, %v2674
        %v2707 = vpack.c.bf16 %v2675, %v2675
        %v2708 = vpack.c.bf16 %v2676, %v2676
        %v2709 = vpack.c.bf16 %v2677, %v2677
        %v2710 = vpack.c.bf16 %v2678, %v2678
        %v2711 = vpack.c.bf16 %v2679, %v2679
        %v2712 = vpack.c.bf16 %v2680, %v2680
        %v2713 = vpack.c.bf16 %v2681, %v2681
        %v2714 = vpack.c.bf16 %v2682, %v2682
        %v2715 = vpack.c.bf16 %v2683, %v2683
        %v2716 = vpack.c.bf16 %v2684, %v2684
        %v2717 = vpack.c.bf16 %v2685, %v2685
        %v2718 = vpack.c.bf16 %v2686, %v2686
        %v2719 = vpack.c.bf16 %v2687, %v2687
        %v2720 = vpack.c.bf16 %v2688, %v2688
        %v2721 = vpack.c.bf16 %v2689, %v2689
        %v2722 = vpack.c.bf16 %v2690, %v2690
        %v2723 = vpack.c.bf16 %v2691, %v2691
        %v2724 = vpack.c.bf16 %v2692, %v2692
        %v2725 = vpack.c.bf16 %v2693, %v2693
        %v2726 = vpack.c.bf16 %v2694, %v2694
        %v2727 = vpack.c.bf16 %v2695, %v2695
        %v2728 = vpack.c.bf16 %v2696, %v2696
        %v2729 = vpack.c.bf16 %v2697, %v2697
        %v2730 = vpack.c.bf16 %v2698, %v2698
        %v2731 = vpack.c.bf16 %v2699, %v2699
        %v2732 = vpack.c.bf16 %v2700, %v2700
        %v2733 = vpack.c.bf16 %v2701, %v2701
        %v2734 = vpack.c.bf16 %v2702, %v2702
        %v2735 = vpack.c.bf16 %v2703, %v2703
        %v2736 = vpack.c.bf16 %v2704, %v2704
        %v2737 = vpack.c.bf16 %v2705, %v2705
        %2738 = vrot.lane.b32.xlu0 %v683, 64
        %v2739 = vpop.permute.xlu0 %2738
        %v2741 = vsel %vm718, %v2706, 0
        %vm2743 = vcmask 1043456
        %v2745 = vsel %vm2743, %v2739, 0
        %2747 = vmatprep.subr.bf16.mxu0 0
        %2748 = vmatpush1.bf16.msra.mxu0 %v2745
        %2749 = vmatprep.subr.bf16.mxu0 0
        %2750 = vmatpush1.bf16.msra.mxu0 0
        %2751 = vmatprep.subr.bf16.mxu0 0
        %2752 = vmatpush1.bf16.msra.mxu0 0
        %2753 = vmatprep.subr.bf16.mxu0 0
        %2754 = vmatpush1.bf16.msra.mxu0 0
        %2755 = vmatprep.subr.bf16.mxu0 0
        %2756 = vmatpush1.bf16.msra.mxu0 0
        %2757 = vmatprep.subr.bf16.mxu0 0
        %2758 = vmatpush1.bf16.msra.mxu0 0
        %2759 = vmatprep.subr.bf16.mxu0 0
        %2760 = vmatpush1.bf16.msra.mxu0 0
        %2761 = vmatprep.subr.bf16.mxu0 0
        %2762 = vmatpush1.bf16.msra.mxu0 0
        %2763 = vmatprep.subr.bf16.mxu0 0
        %2764 = vmatpush1.bf16.msra.mxu0 0
        %2765 = vmatprep.subr.bf16.mxu0 0
        %2766 = vmatpush1.bf16.msra.mxu0 0
        %2767 = vmatprep.subr.bf16.mxu0 0
        %2768 = vmatpush1.bf16.msra.mxu0 0
        %2769 = vmatprep.subr.bf16.mxu0 0
        %2770 = vmatpush1.bf16.msra.mxu0 0
        %2771 = vmatprep.subr.bf16.mxu0 0
        %2772 = vmatpush1.bf16.msra.mxu0 0
        %2773 = vmatprep.subr.bf16.mxu0 0
        %2774 = vmatpush1.bf16.msra.mxu0 0
        %2775 = vmatprep.subr.bf16.mxu0 0
        %2776 = vmatpush1.bf16.msra.mxu0 0
        %2777 = vmatprep.subr.bf16.mxu0 0
        %2778 = vmatpush1.bf16.msra.mxu0 0
        %2779 = vmatprep.mubr.bf16.mxu0 0
        %2780 = vmatmul.mubr.bf16.gmra.mrb[0].mxu0 %v2741
        %v2781 = vpop.f32.mrb[0].mxu0
        %v2782 = vadd.f32 0.0, %v2781
        %v2783 = vpop.f32.mrb[0].mxu0
        %v2784 = vpop.f32.mrb[0].mxu0
        %v2785 = vpop.f32.mrb[0].mxu0
        %2786 = vdwg.mxu0
        %2787 = vrot.lane.b32.xlu0 %v684, 64
        %v2788 = vpop.permute.xlu0 %2787
        %v2790 = vsel %vm718, %v2707, 0
        %v2793 = vsel %vm2743, %v2788, 0
        %2795 = vmatprep.subr.bf16.mxu0 0
        %2796 = vmatpush1.bf16.msra.mxu0 %v2793
        %2797 = vmatprep.subr.bf16.mxu0 0
        %2798 = vmatpush1.bf16.msra.mxu0 0
        %2799 = vmatprep.subr.bf16.mxu0 0
        %2800 = vmatpush1.bf16.msra.mxu0 0
        %2801 = vmatprep.subr.bf16.mxu0 0
        %2802 = vmatpush1.bf16.msra.mxu0 0
        %2803 = vmatprep.subr.bf16.mxu0 0
        %2804 = vmatpush1.bf16.msra.mxu0 0
        %2805 = vmatprep.subr.bf16.mxu0 0
        %2806 = vmatpush1.bf16.msra.mxu0 0
        %2807 = vmatprep.subr.bf16.mxu0 0
        %2808 = vmatpush1.bf16.msra.mxu0 0
        %2809 = vmatprep.subr.bf16.mxu0 0
        %2810 = vmatpush1.bf16.msra.mxu0 0
        %2811 = vmatprep.subr.bf16.mxu0 0
        %2812 = vmatpush1.bf16.msra.mxu0 0
        %2813 = vmatprep.subr.bf16.mxu0 0
        %2814 = vmatpush1.bf16.msra.mxu0 0
        %2815 = vmatprep.subr.bf16.mxu0 0
        %2816 = vmatpush1.bf16.msra.mxu0 0
        %2817 = vmatprep.subr.bf16.mxu0 0
        %2818 = vmatpush1.bf16.msra.mxu0 0
        %2819 = vmatprep.subr.bf16.mxu0 0
        %2820 = vmatpush1.bf16.msra.mxu0 0
        %2821 = vmatprep.subr.bf16.mxu0 0
        %2822 = vmatpush1.bf16.msra.mxu0 0
        %2823 = vmatprep.subr.bf16.mxu0 0
        %2824 = vmatpush1.bf16.msra.mxu0 0
        %2825 = vmatprep.subr.bf16.mxu0 0
        %2826 = vmatpush1.bf16.msra.mxu0 0
        %2827 = vmatprep.mubr.bf16.mxu0 0
        %2828 = vmatmul.mubr.bf16.gmra.mrb[0].mxu0 %v2790
        %v2829 = vpop.f32.mrb[0].mxu0
        %v2830 = vadd.f32 0.0, %v2829
        %v2831 = vpop.f32.mrb[0].mxu0
        %v2832 = vpop.f32.mrb[0].mxu0
        %v2833 = vpop.f32.mrb[0].mxu0
        %2834 = vdwg.mxu0
        %2835 = vrot.lane.b32.xlu0 %v685, 64
        %v2836 = vpop.permute.xlu0 %2835
        %v2838 = vsel %vm718, %v2708, 0
        %v2841 = vsel %vm2743, %v2836, 0
        %2843 = vmatprep.subr.bf16.mxu0 0
        %2844 = vmatpush1.bf16.msra.mxu0 %v2841
        %2845 = vmatprep.subr.bf16.mxu0 0
        %2846 = vmatpush1.bf16.msra.mxu0 0
        %2847 = vmatprep.subr.bf16.mxu0 0
        %2848 = vmatpush1.bf16.msra.mxu0 0
        %2849 = vmatprep.subr.bf16.mxu0 0
        %2850 = vmatpush1.bf16.msra.mxu0 0
        %2851 = vmatprep.subr.bf16.mxu0 0
        %2852 = vmatpush1.bf16.msra.mxu0 0
        %2853 = vmatprep.subr.bf16.mxu0 0
        %2854 = vmatpush1.bf16.msra.mxu0 0
        %2855 = vmatprep.subr.bf16.mxu0 0
        %2856 = vmatpush1.bf16.msra.mxu0 0
        %2857 = vmatprep.subr.bf16.mxu0 0
        %2858 = vmatpush1.bf16.msra.mxu0 0
        %2859 = vmatprep.subr.bf16.mxu0 0
        %2860 = vmatpush1.bf16.msra.mxu0 0
        %2861 = vmatprep.subr.bf16.mxu0 0
        %2862 = vmatpush1.bf16.msra.mxu0 0
        %2863 = vmatprep.subr.bf16.mxu0 0
        %2864 = vmatpush1.bf16.msra.mxu0 0
        %2865 = vmatprep.subr.bf16.mxu0 0
        %2866 = vmatpush1.bf16.msra.mxu0 0
        %2867 = vmatprep.subr.bf16.mxu0 0
        %2868 = vmatpush1.bf16.msra.mxu0 0
        %2869 = vmatprep.subr.bf16.mxu0 0
        %2870 = vmatpush1.bf16.msra.mxu0 0
        %2871 = vmatprep.subr.bf16.mxu0 0
        %2872 = vmatpush1.bf16.msra.mxu0 0
        %2873 = vmatprep.subr.bf16.mxu0 0
        %2874 = vmatpush1.bf16.msra.mxu0 0
        %2875 = vmatprep.mubr.bf16.mxu0 0
        %2876 = vmatmul.mubr.bf16.gmra.mrb[0].mxu0 %v2838
        %v2877 = vpop.f32.mrb[0].mxu0
        %v2878 = vadd.f32 0.0, %v2877
        %v2879 = vpop.f32.mrb[0].mxu0
        %v2880 = vpop.f32.mrb[0].mxu0
        %v2881 = vpop.f32.mrb[0].mxu0
        %2882 = vdwg.mxu0
        %2883 = vrot.lane.b32.xlu0 %v686, 64
        %v2884 = vpop.permute.xlu0 %2883
        %v2886 = vsel %vm718, %v2709, 0
        %v2889 = vsel %vm2743, %v2884, 0
        %2891 = vmatprep.subr.bf16.mxu0 0
        %2892 = vmatpush1.bf16.msra.mxu0 %v2889
        %2893 = vmatprep.subr.bf16.mxu0 0
        %2894 = vmatpush1.bf16.msra.mxu0 0
        %2895 = vmatprep.subr.bf16.mxu0 0
        %2896 = vmatpush1.bf16.msra.mxu0 0
        %2897 = vmatprep.subr.bf16.mxu0 0
        %2898 = vmatpush1.bf16.msra.mxu0 0
        %2899 = vmatprep.subr.bf16.mxu0 0
        %2900 = vmatpush1.bf16.msra.mxu0 0
        %2901 = vmatprep.subr.bf16.mxu0 0
        %2902 = vmatpush1.bf16.msra.mxu0 0
        %2903 = vmatprep.subr.bf16.mxu0 0
        %2904 = vmatpush1.bf16.msra.mxu0 0
        %2905 = vmatprep.subr.bf16.mxu0 0
        %2906 = vmatpush1.bf16.msra.mxu0 0
        %2907 = vmatprep.subr.bf16.mxu0 0
        %2908 = vmatpush1.bf16.msra.mxu0 0
        %2909 = vmatprep.subr.bf16.mxu0 0
        %2910 = vmatpush1.bf16.msra.mxu0 0
        %2911 = vmatprep.subr.bf16.mxu0 0
        %2912 = vmatpush1.bf16.msra.mxu0 0
        %2913 = vmatprep.subr.bf16.mxu0 0
        %2914 = vmatpush1.bf16.msra.mxu0 0
        %2915 = vmatprep.subr.bf16.mxu0 0
        %2916 = vmatpush1.bf16.msra.mxu0 0
        %2917 = vmatprep.subr.bf16.mxu0 0
        %2918 = vmatpush1.bf16.msra.mxu0 0
        %2919 = vmatprep.subr.bf16.mxu0 0
        %2920 = vmatpush1.bf16.msra.mxu0 0
        %2921 = vmatprep.subr.bf16.mxu0 0
        %2922 = vmatpush1.bf16.msra.mxu0 0
        %2923 = vmatprep.mubr.bf16.mxu0 0
        %2924 = vmatmul.mubr.bf16.gmra.mrb[0].mxu0 %v2886
        %v2925 = vpop.f32.mrb[0].mxu0
        %v2926 = vadd.f32 0.0, %v2925
        %v2927 = vpop.f32.mrb[0].mxu0
        %v2928 = vpop.f32.mrb[0].mxu0
        %v2929 = vpop.f32.mrb[0].mxu0
        %2930 = vdwg.mxu0
        %2931 = vrot.lane.b32.xlu0 %v687, 64
        %v2932 = vpop.permute.xlu0 %2931
        %v2934 = vsel %vm718, %v2710, 0
        %v2937 = vsel %vm2743, %v2932, 0
        %2939 = vmatprep.subr.bf16.mxu0 0
        %2940 = vmatpush1.bf16.msra.mxu0 %v2937
        %2941 = vmatprep.subr.bf16.mxu0 0
        %2942 = vmatpush1.bf16.msra.mxu0 0
        %2943 = vmatprep.subr.bf16.mxu0 0
        %2944 = vmatpush1.bf16.msra.mxu0 0
        %2945 = vmatprep.subr.bf16.mxu0 0
        %2946 = vmatpush1.bf16.msra.mxu0 0
        %2947 = vmatprep.subr.bf16.mxu0 0
        %2948 = vmatpush1.bf16.msra.mxu0 0
        %2949 = vmatprep.subr.bf16.mxu0 0
        %2950 = vmatpush1.bf16.msra.mxu0 0
        %2951 = vmatprep.subr.bf16.mxu0 0
        %2952 = vmatpush1.bf16.msra.mxu0 0
        %2953 = vmatprep.subr.bf16.mxu0 0
        %2954 = vmatpush1.bf16.msra.mxu0 0
        %2955 = vmatprep.subr.bf16.mxu0 0
        %2956 = vmatpush1.bf16.msra.mxu0 0
        %2957 = vmatprep.subr.bf16.mxu0 0
        %2958 = vmatpush1.bf16.msra.mxu0 0
        %2959 = vmatprep.subr.bf16.mxu0 0
        %2960 = vmatpush1.bf16.msra.mxu0 0
        %2961 = vmatprep.subr.bf16.mxu0 0
        %2962 = vmatpush1.bf16.msra.mxu0 0
        %2963 = vmatprep.subr.bf16.mxu0 0
        %2964 = vmatpush1.bf16.msra.mxu0 0
        %2965 = vmatprep.subr.bf16.mxu0 0
        %2966 = vmatpush1.bf16.msra.mxu0 0
        %2967 = vmatprep.subr.bf16.mxu0 0
        %2968 = vmatpush1.bf16.msra.mxu0 0
        %2969 = vmatprep.subr.bf16.mxu0 0
        %2970 = vmatpush1.bf16.msra.mxu0 0
        %2971 = vmatprep.mubr.bf16.mxu0 0
        %2972 = vmatmul.mubr.bf16.gmra.mrb[0].mxu0 %v2934
        %v2973 = vpop.f32.mrb[0].mxu0
        %v2974 = vadd.f32 0.0, %v2973
        %v2975 = vpop.f32.mrb[0].mxu0
        %v2976 = vpop.f32.mrb[0].mxu0
        %v2977 = vpop.f32.mrb[0].mxu0
        %2978 = vdwg.mxu0
        %2979 = vrot.lane.b32.xlu0 %v688, 64
        %v2980 = vpop.permute.xlu0 %2979
        %v2982 = vsel %vm718, %v2711, 0
        %v2985 = vsel %vm2743, %v2980, 0
        %2987 = vmatprep.subr.bf16.mxu0 0
        %2988 = vmatpush1.bf16.msra.mxu0 %v2985
        %2989 = vmatprep.subr.bf16.mxu0 0
        %2990 = vmatpush1.bf16.msra.mxu0 0
        %2991 = vmatprep.subr.bf16.mxu0 0
        %2992 = vmatpush1.bf16.msra.mxu0 0
        %2993 = vmatprep.subr.bf16.mxu0 0
        %2994 = vmatpush1.bf16.msra.mxu0 0
        %2995 = vmatprep.subr.bf16.mxu0 0
        %2996 = vmatpush1.bf16.msra.mxu0 0
        %2997 = vmatprep.subr.bf16.mxu0 0
        %2998 = vmatpush1.bf16.msra.mxu0 0
        %2999 = vmatprep.subr.bf16.mxu0 0
        %3000 = vmatpush1.bf16.msra.mxu0 0
        %3001 = vmatprep.subr.bf16.mxu0 0
        %3002 = vmatpush1.bf16.msra.mxu0 0
        %3003 = vmatprep.subr.bf16.mxu0 0
        %3004 = vmatpush1.bf16.msra.mxu0 0
        %3005 = vmatprep.subr.bf16.mxu0 0
        %3006 = vmatpush1.bf16.msra.mxu0 0
        %3007 = vmatprep.subr.bf16.mxu0 0
        %3008 = vmatpush1.bf16.msra.mxu0 0
        %3009 = vmatprep.subr.bf16.mxu0 0
        %3010 = vmatpush1.bf16.msra.mxu0 0
        %3011 = vmatprep.subr.bf16.mxu0 0
        %3012 = vmatpush1.bf16.msra.mxu0 0
        %3013 = vmatprep.subr.bf16.mxu0 0
        %3014 = vmatpush1.bf16.msra.mxu0 0
        %3015 = vmatprep.subr.bf16.mxu0 0
        %3016 = vmatpush1.bf16.msra.mxu0 0
        %3017 = vmatprep.subr.bf16.mxu0 0
        %3018 = vmatpush1.bf16.msra.mxu0 0
        %3019 = vmatprep.mubr.bf16.mxu0 0
        %3020 = vmatmul.mubr.bf16.gmra.mrb[0].mxu0 %v2982
        %v3021 = vpop.f32.mrb[0].mxu0
        %v3022 = vadd.f32 0.0, %v3021
        %v3023 = vpop.f32.mrb[0].mxu0
        %v3024 = vpop.f32.mrb[0].mxu0
        %v3025 = vpop.f32.mrb[0].mxu0
        %3026 = vdwg.mxu0
        %3027 = vrot.lane.b32.xlu0 %v689, 64
        %v3028 = vpop.permute.xlu0 %3027
        %v3030 = vsel %vm718, %v2712, 0
        %v3033 = vsel %vm2743, %v3028, 0
        %3035 = vmatprep.subr.bf16.mxu0 0
        %3036 = vmatpush1.bf16.msra.mxu0 %v3033
        %3037 = vmatprep.subr.bf16.mxu0 0
        %3038 = vmatpush1.bf16.msra.mxu0 0
        %3039 = vmatprep.subr.bf16.mxu0 0
        %3040 = vmatpush1.bf16.msra.mxu0 0
        %3041 = vmatprep.subr.bf16.mxu0 0
        %3042 = vmatpush1.bf16.msra.mxu0 0
        %3043 = vmatprep.subr.bf16.mxu0 0
        %3044 = vmatpush1.bf16.msra.mxu0 0
        %3045 = vmatprep.subr.bf16.mxu0 0
        %3046 = vmatpush1.bf16.msra.mxu0 0
        %3047 = vmatprep.subr.bf16.mxu0 0
        %3048 = vmatpush1.bf16.msra.mxu0 0
        %3049 = vmatprep.subr.bf16.mxu0 0
        %3050 = vmatpush1.bf16.msra.mxu0 0
        %3051 = vmatprep.subr.bf16.mxu0 0
        %3052 = vmatpush1.bf16.msra.mxu0 0
        %3053 = vmatprep.subr.bf16.mxu0 0
        %3054 = vmatpush1.bf16.msra.mxu0 0
        %3055 = vmatprep.subr.bf16.mxu0 0
        %3056 = vmatpush1.bf16.msra.mxu0 0
        %3057 = vmatprep.subr.bf16.mxu0 0
        %3058 = vmatpush1.bf16.msra.mxu0 0
        %3059 = vmatprep.subr.bf16.mxu0 0
        %3060 = vmatpush1.bf16.msra.mxu0 0
        %3061 = vmatprep.subr.bf16.mxu0 0
        %3062 = vmatpush1.bf16.msra.mxu0 0
        %3063 = vmatprep.subr.bf16.mxu0 0
        %3064 = vmatpush1.bf16.msra.mxu0 0
        %3065 = vmatprep.subr.bf16.mxu0 0
        %3066 = vmatpush1.bf16.msra.mxu0 0
        %3067 = vmatprep.mubr.bf16.mxu0 0
        %3068 = vmatmul.mubr.bf16.gmra.mrb[0].mxu0 %v3030
        %v3069 = vpop.f32.mrb[0].mxu0
        %v3070 = vadd.f32 0.0, %v3069
        %v3071 = vpop.f32.mrb[0].mxu0
        %v3072 = vpop.f32.mrb[0].mxu0
        %v3073 = vpop.f32.mrb[0].mxu0
        %3074 = vdwg.mxu0
        %3075 = vrot.lane.b32.xlu0 %v690, 64
        %v3076 = vpop.permute.xlu0 %3075
        %v3078 = vsel %vm718, %v2713, 0
        %v3081 = vsel %vm2743, %v3076, 0
        %3083 = vmatprep.subr.bf16.mxu0 0
        %3084 = vmatpush1.bf16.msra.mxu0 %v3081
        %3085 = vmatprep.subr.bf16.mxu0 0
        %3086 = vmatpush1.bf16.msra.mxu0 0
        %3087 = vmatprep.subr.bf16.mxu0 0
        %3088 = vmatpush1.bf16.msra.mxu0 0
        %3089 = vmatprep.subr.bf16.mxu0 0
        %3090 = vmatpush1.bf16.msra.mxu0 0
        %3091 = vmatprep.subr.bf16.mxu0 0
        %3092 = vmatpush1.bf16.msra.mxu0 0
        %3093 = vmatprep.subr.bf16.mxu0 0
        %3094 = vmatpush1.bf16.msra.mxu0 0
        %3095 = vmatprep.subr.bf16.mxu0 0
        %3096 = vmatpush1.bf16.msra.mxu0 0
        %3097 = vmatprep.subr.bf16.mxu0 0
        %3098 = vmatpush1.bf16.msra.mxu0 0
        %3099 = vmatprep.subr.bf16.mxu0 0
        %3100 = vmatpush1.bf16.msra.mxu0 0
        %3101 = vmatprep.subr.bf16.mxu0 0
        %3102 = vmatpush1.bf16.msra.mxu0 0
        %3103 = vmatprep.subr.bf16.mxu0 0
        %3104 = vmatpush1.bf16.msra.mxu0 0
        %3105 = vmatprep.subr.bf16.mxu0 0
        %3106 = vmatpush1.bf16.msra.mxu0 0
        %3107 = vmatprep.subr.bf16.mxu0 0
        %3108 = vmatpush1.bf16.msra.mxu0 0
        %3109 = vmatprep.subr.bf16.mxu0 0
        %3110 = vmatpush1.bf16.msra.mxu0 0
        %3111 = vmatprep.subr.bf16.mxu0 0
        %3112 = vmatpush1.bf16.msra.mxu0 0
        %3113 = vmatprep.subr.bf16.mxu0 0
        %3114 = vmatpush1.bf16.msra.mxu0 0
        %3115 = vmatprep.mubr.bf16.mxu0 0
        %3116 = vmatmul.mubr.bf16.gmra.mrb[0].mxu0 %v3078
        %v3117 = vpop.f32.mrb[0].mxu0
        %v3118 = vadd.f32 0.0, %v3117
        %v3119 = vpop.f32.mrb[0].mxu0
        %v3120 = vpop.f32.mrb[0].mxu0
        %v3121 = vpop.f32.mrb[0].mxu0
        %3122 = vdwg.mxu0
        %3123 = vrot.lane.b32.xlu0 %v691, 64
        %v3124 = vpop.permute.xlu0 %3123
        %v3126 = vsel %vm718, %v2714, 0
        %v3129 = vsel %vm2743, %v3124, 0
        %3131 = vmatprep.subr.bf16.mxu0 0
        %3132 = vmatpush1.bf16.msra.mxu0 %v3129
        %3133 = vmatprep.subr.bf16.mxu0 0
        %3134 = vmatpush1.bf16.msra.mxu0 0
        %3135 = vmatprep.subr.bf16.mxu0 0
        %3136 = vmatpush1.bf16.msra.mxu0 0
        %3137 = vmatprep.subr.bf16.mxu0 0
        %3138 = vmatpush1.bf16.msra.mxu0 0
        %3139 = vmatprep.subr.bf16.mxu0 0
        %3140 = vmatpush1.bf16.msra.mxu0 0
        %3141 = vmatprep.subr.bf16.mxu0 0
        %3142 = vmatpush1.bf16.msra.mxu0 0
        %3143 = vmatprep.subr.bf16.mxu0 0
        %3144 = vmatpush1.bf16.msra.mxu0 0
        %3145 = vmatprep.subr.bf16.mxu0 0
        %3146 = vmatpush1.bf16.msra.mxu0 0
        %3147 = vmatprep.subr.bf16.mxu0 0
        %3148 = vmatpush1.bf16.msra.mxu0 0
        %3149 = vmatprep.subr.bf16.mxu0 0
        %3150 = vmatpush1.bf16.msra.mxu0 0
        %3151 = vmatprep.subr.bf16.mxu0 0
        %3152 = vmatpush1.bf16.msra.mxu0 0
        %3153 = vmatprep.subr.bf16.mxu0 0
        %3154 = vmatpush1.bf16.msra.mxu0 0
        %3155 = vmatprep.subr.bf16.mxu0 0
        %3156 = vmatpush1.bf16.msra.mxu0 0
        %3157 = vmatprep.subr.bf16.mxu0 0
        %3158 = vmatpush1.bf16.msra.mxu0 0
        %3159 = vmatprep.subr.bf16.mxu0 0
        %3160 = vmatpush1.bf16.msra.mxu0 0
        %3161 = vmatprep.subr.bf16.mxu0 0
        %3162 = vmatpush1.bf16.msra.mxu0 0
        %3163 = vmatprep.mubr.bf16.mxu0 0
        %3164 = vmatmul.mubr.bf16.gmra.mrb[0].mxu0 %v3126
        %v3165 = vpop.f32.mrb[0].mxu0
        %v3166 = vadd.f32 0.0, %v3165
        %v3167 = vpop.f32.mrb[0].mxu0
        %v3168 = vpop.f32.mrb[0].mxu0
        %v3169 = vpop.f32.mrb[0].mxu0
        %3170 = vdwg.mxu0
        %3171 = vrot.lane.b32.xlu0 %v692, 64
        %v3172 = vpop.permute.xlu0 %3171
        %v3174 = vsel %vm718, %v2715, 0
        %v3177 = vsel %vm2743, %v3172, 0
        %3179 = vmatprep.subr.bf16.mxu0 0
        %3180 = vmatpush1.bf16.msra.mxu0 %v3177
        %3181 = vmatprep.subr.bf16.mxu0 0
        %3182 = vmatpush1.bf16.msra.mxu0 0
        %3183 = vmatprep.subr.bf16.mxu0 0
        %3184 = vmatpush1.bf16.msra.mxu0 0
        %3185 = vmatprep.subr.bf16.mxu0 0
        %3186 = vmatpush1.bf16.msra.mxu0 0
        %3187 = vmatprep.subr.bf16.mxu0 0
        %3188 = vmatpush1.bf16.msra.mxu0 0
        %3189 = vmatprep.subr.bf16.mxu0 0
        %3190 = vmatpush1.bf16.msra.mxu0 0
        %3191 = vmatprep.subr.bf16.mxu0 0
        %3192 = vmatpush1.bf16.msra.mxu0 0
        %3193 = vmatprep.subr.bf16.mxu0 0
        %3194 = vmatpush1.bf16.msra.mxu0 0
        %3195 = vmatprep.subr.bf16.mxu0 0
        %3196 = vmatpush1.bf16.msra.mxu0 0
        %3197 = vmatprep.subr.bf16.mxu0 0
        %3198 = vmatpush1.bf16.msra.mxu0 0
        %3199 = vmatprep.subr.bf16.mxu0 0
        %3200 = vmatpush1.bf16.msra.mxu0 0
        %3201 = vmatprep.subr.bf16.mxu0 0
        %3202 = vmatpush1.bf16.msra.mxu0 0
        %3203 = vmatprep.subr.bf16.mxu0 0
        %3204 = vmatpush1.bf16.msra.mxu0 0
        %3205 = vmatprep.subr.bf16.mxu0 0
        %3206 = vmatpush1.bf16.msra.mxu0 0
        %3207 = vmatprep.subr.bf16.mxu0 0
        %3208 = vmatpush1.bf16.msra.mxu0 0
        %3209 = vmatprep.subr.bf16.mxu0 0
        %3210 = vmatpush1.bf16.msra.mxu0 0
        %3211 = vmatprep.mubr.bf16.mxu0 0
        %3212 = vmatmul.mubr.bf16.gmra.mrb[0].mxu0 %v3174
        %v3213 = vpop.f32.mrb[0].mxu0
        %v3214 = vadd.f32 0.0, %v3213
        %v3215 = vpop.f32.mrb[0].mxu0
        %v3216 = vpop.f32.mrb[0].mxu0
        %v3217 = vpop.f32.mrb[0].mxu0
        %3218 = vdwg.mxu0
        %3219 = vrot.lane.b32.xlu0 %v693, 64
        %v3220 = vpop.permute.xlu0 %3219
        %v3222 = vsel %vm718, %v2716, 0
        %v3225 = vsel %vm2743, %v3220, 0
        %3227 = vmatprep.subr.bf16.mxu0 0
        %3228 = vmatpush1.bf16.msra.mxu0 %v3225
        %3229 = vmatprep.subr.bf16.mxu0 0
        %3230 = vmatpush1.bf16.msra.mxu0 0
        %3231 = vmatprep.subr.bf16.mxu0 0
        %3232 = vmatpush1.bf16.msra.mxu0 0
        %3233 = vmatprep.subr.bf16.mxu0 0
        %3234 = vmatpush1.bf16.msra.mxu0 0
        %3235 = vmatprep.subr.bf16.mxu0 0
        %3236 = vmatpush1.bf16.msra.mxu0 0
        %3237 = vmatprep.subr.bf16.mxu0 0
        %3238 = vmatpush1.bf16.msra.mxu0 0
        %3239 = vmatprep.subr.bf16.mxu0 0
        %3240 = vmatpush1.bf16.msra.mxu0 0
        %3241 = vmatprep.subr.bf16.mxu0 0
        %3242 = vmatpush1.bf16.msra.mxu0 0
        %3243 = vmatprep.subr.bf16.mxu0 0
        %3244 = vmatpush1.bf16.msra.mxu0 0
        %3245 = vmatprep.subr.bf16.mxu0 0
        %3246 = vmatpush1.bf16.msra.mxu0 0
        %3247 = vmatprep.subr.bf16.mxu0 0
        %3248 = vmatpush1.bf16.msra.mxu0 0
        %3249 = vmatprep.subr.bf16.mxu0 0
        %3250 = vmatpush1.bf16.msra.mxu0 0
        %3251 = vmatprep.subr.bf16.mxu0 0
        %3252 = vmatpush1.bf16.msra.mxu0 0
        %3253 = vmatprep.subr.bf16.mxu0 0
        %3254 = vmatpush1.bf16.msra.mxu0 0
        %3255 = vmatprep.subr.bf16.mxu0 0
        %3256 = vmatpush1.bf16.msra.mxu0 0
        %3257 = vmatprep.subr.bf16.mxu0 0
        %3258 = vmatpush1.bf16.msra.mxu0 0
        %3259 = vmatprep.mubr.bf16.mxu0 0
        %3260 = vmatmul.mubr.bf16.gmra.mrb[0].mxu0 %v3222
        %v3261 = vpop.f32.mrb[0].mxu0
        %v3262 = vadd.f32 0.0, %v3261
        %v3263 = vpop.f32.mrb[0].mxu0
        %v3264 = vpop.f32.mrb[0].mxu0
        %v3265 = vpop.f32.mrb[0].mxu0
        %3266 = vdwg.mxu0
        %3267 = vrot.lane.b32.xlu0 %v694, 64
        %v3268 = vpop.permute.xlu0 %3267
        %v3270 = vsel %vm718, %v2717, 0
        %v3273 = vsel %vm2743, %v3268, 0
        %3275 = vmatprep.subr.bf16.mxu0 0
        %3276 = vmatpush1.bf16.msra.mxu0 %v3273
        %3277 = vmatprep.subr.bf16.mxu0 0
        %3278 = vmatpush1.bf16.msra.mxu0 0
        %3279 = vmatprep.subr.bf16.mxu0 0
        %3280 = vmatpush1.bf16.msra.mxu0 0
        %3281 = vmatprep.subr.bf16.mxu0 0
        %3282 = vmatpush1.bf16.msra.mxu0 0
        %3283 = vmatprep.subr.bf16.mxu0 0
        %3284 = vmatpush1.bf16.msra.mxu0 0
        %3285 = vmatprep.subr.bf16.mxu0 0
        %3286 = vmatpush1.bf16.msra.mxu0 0
        %3287 = vmatprep.subr.bf16.mxu0 0
        %3288 = vmatpush1.bf16.msra.mxu0 0
        %3289 = vmatprep.subr.bf16.mxu0 0
        %3290 = vmatpush1.bf16.msra.mxu0 0
        %3291 = vmatprep.subr.bf16.mxu0 0
        %3292 = vmatpush1.bf16.msra.mxu0 0
        %3293 = vmatprep.subr.bf16.mxu0 0
        %3294 = vmatpush1.bf16.msra.mxu0 0
        %3295 = vmatprep.subr.bf16.mxu0 0
        %3296 = vmatpush1.bf16.msra.mxu0 0
        %3297 = vmatprep.subr.bf16.mxu0 0
        %3298 = vmatpush1.bf16.msra.mxu0 0
        %3299 = vmatprep.subr.bf16.mxu0 0
        %3300 = vmatpush1.bf16.msra.mxu0 0
        %3301 = vmatprep.subr.bf16.mxu0 0
        %3302 = vmatpush1.bf16.msra.mxu0 0
        %3303 = vmatprep.subr.bf16.mxu0 0
        %3304 = vmatpush1.bf16.msra.mxu0 0
        %3305 = vmatprep.subr.bf16.mxu0 0
        %3306 = vmatpush1.bf16.msra.mxu0 0
        %3307 = vmatprep.mubr.bf16.mxu0 0
        %3308 = vmatmul.mubr.bf16.gmra.mrb[0].mxu0 %v3270
        %v3309 = vpop.f32.mrb[0].mxu0
        %v3310 = vadd.f32 0.0, %v3309
        %v3311 = vpop.f32.mrb[0].mxu0
        %v3312 = vpop.f32.mrb[0].mxu0
        %v3313 = vpop.f32.mrb[0].mxu0
        %3314 = vdwg.mxu0
        %3315 = vrot.lane.b32.xlu0 %v695, 64
        %v3316 = vpop.permute.xlu0 %3315
        %v3318 = vsel %vm718, %v2718, 0
        %v3321 = vsel %vm2743, %v3316, 0
        %3323 = vmatprep.subr.bf16.mxu0 0
        %3324 = vmatpush1.bf16.msra.mxu0 %v3321
        %3325 = vmatprep.subr.bf16.mxu0 0
        %3326 = vmatpush1.bf16.msra.mxu0 0
        %3327 = vmatprep.subr.bf16.mxu0 0
        %3328 = vmatpush1.bf16.msra.mxu0 0
        %3329 = vmatprep.subr.bf16.mxu0 0
        %3330 = vmatpush1.bf16.msra.mxu0 0
        %3331 = vmatprep.subr.bf16.mxu0 0
        %3332 = vmatpush1.bf16.msra.mxu0 0
        %3333 = vmatprep.subr.bf16.mxu0 0
        %3334 = vmatpush1.bf16.msra.mxu0 0
        %3335 = vmatprep.subr.bf16.mxu0 0
        %3336 = vmatpush1.bf16.msra.mxu0 0
        %3337 = vmatprep.subr.bf16.mxu0 0
        %3338 = vmatpush1.bf16.msra.mxu0 0
        %3339 = vmatprep.subr.bf16.mxu0 0
        %3340 = vmatpush1.bf16.msra.mxu0 0
        %3341 = vmatprep.subr.bf16.mxu0 0
        %3342 = vmatpush1.bf16.msra.mxu0 0
        %3343 = vmatprep.subr.bf16.mxu0 0
        %3344 = vmatpush1.bf16.msra.mxu0 0
        %3345 = vmatprep.subr.bf16.mxu0 0
        %3346 = vmatpush1.bf16.msra.mxu0 0
        %3347 = vmatprep.subr.bf16.mxu0 0
        %3348 = vmatpush1.bf16.msra.mxu0 0
        %3349 = vmatprep.subr.bf16.mxu0 0
        %3350 = vmatpush1.bf16.msra.mxu0 0
        %3351 = vmatprep.subr.bf16.mxu0 0
        %3352 = vmatpush1.bf16.msra.mxu0 0
        %3353 = vmatprep.subr.bf16.mxu0 0
        %3354 = vmatpush1.bf16.msra.mxu0 0
        %3355 = vmatprep.mubr.bf16.mxu0 0
        %3356 = vmatmul.mubr.bf16.gmra.mrb[0].mxu0 %v3318
        %v3357 = vpop.f32.mrb[0].mxu0
        %v3358 = vadd.f32 0.0, %v3357
        %v3359 = vpop.f32.mrb[0].mxu0
        %v3360 = vpop.f32.mrb[0].mxu0
        %v3361 = vpop.f32.mrb[0].mxu0
        %3362 = vdwg.mxu0
        %3363 = vrot.lane.b32.xlu0 %v696, 64
        %v3364 = vpop.permute.xlu0 %3363
        %v3366 = vsel %vm718, %v2719, 0
        %v3369 = vsel %vm2743, %v3364, 0
        %3371 = vmatprep.subr.bf16.mxu0 0
        %3372 = vmatpush1.bf16.msra.mxu0 %v3369
        %3373 = vmatprep.subr.bf16.mxu0 0
        %3374 = vmatpush1.bf16.msra.mxu0 0
        %3375 = vmatprep.subr.bf16.mxu0 0
        %3376 = vmatpush1.bf16.msra.mxu0 0
        %3377 = vmatprep.subr.bf16.mxu0 0
        %3378 = vmatpush1.bf16.msra.mxu0 0
        %3379 = vmatprep.subr.bf16.mxu0 0
        %3380 = vmatpush1.bf16.msra.mxu0 0
        %3381 = vmatprep.subr.bf16.mxu0 0
        %3382 = vmatpush1.bf16.msra.mxu0 0
        %3383 = vmatprep.subr.bf16.mxu0 0
        %3384 = vmatpush1.bf16.msra.mxu0 0
        %3385 = vmatprep.subr.bf16.mxu0 0
        %3386 = vmatpush1.bf16.msra.mxu0 0
        %3387 = vmatprep.subr.bf16.mxu0 0
        %3388 = vmatpush1.bf16.msra.mxu0 0
        %3389 = vmatprep.subr.bf16.mxu0 0
        %3390 = vmatpush1.bf16.msra.mxu0 0
        %3391 = vmatprep.subr.bf16.mxu0 0
        %3392 = vmatpush1.bf16.msra.mxu0 0
        %3393 = vmatprep.subr.bf16.mxu0 0
        %3394 = vmatpush1.bf16.msra.mxu0 0
        %3395 = vmatprep.subr.bf16.mxu0 0
        %3396 = vmatpush1.bf16.msra.mxu0 0
        %3397 = vmatprep.subr.bf16.mxu0 0
        %3398 = vmatpush1.bf16.msra.mxu0 0
        %3399 = vmatprep.subr.bf16.mxu0 0
        %3400 = vmatpush1.bf16.msra.mxu0 0
        %3401 = vmatprep.subr.bf16.mxu0 0
        %3402 = vmatpush1.bf16.msra.mxu0 0
        %3403 = vmatprep.mubr.bf16.mxu0 0
        %3404 = vmatmul.mubr.bf16.gmra.mrb[0].mxu0 %v3366
        %v3405 = vpop.f32.mrb[0].mxu0
        %v3406 = vadd.f32 0.0, %v3405
        %v3407 = vpop.f32.mrb[0].mxu0
        %v3408 = vpop.f32.mrb[0].mxu0
        %v3409 = vpop.f32.mrb[0].mxu0
        %3410 = vdwg.mxu0
        %3411 = vrot.lane.b32.xlu0 %v697, 64
        %v3412 = vpop.permute.xlu0 %3411
        %v3414 = vsel %vm718, %v2720, 0
        %v3417 = vsel %vm2743, %v3412, 0
        %3419 = vmatprep.subr.bf16.mxu0 0
        %3420 = vmatpush1.bf16.msra.mxu0 %v3417
        %3421 = vmatprep.subr.bf16.mxu0 0
        %3422 = vmatpush1.bf16.msra.mxu0 0
        %3423 = vmatprep.subr.bf16.mxu0 0
        %3424 = vmatpush1.bf16.msra.mxu0 0
        %3425 = vmatprep.subr.bf16.mxu0 0
        %3426 = vmatpush1.bf16.msra.mxu0 0
        %3427 = vmatprep.subr.bf16.mxu0 0
        %3428 = vmatpush1.bf16.msra.mxu0 0
        %3429 = vmatprep.subr.bf16.mxu0 0
        %3430 = vmatpush1.bf16.msra.mxu0 0
        %3431 = vmatprep.subr.bf16.mxu0 0
        %3432 = vmatpush1.bf16.msra.mxu0 0
        %3433 = vmatprep.subr.bf16.mxu0 0
        %3434 = vmatpush1.bf16.msra.mxu0 0
        %3435 = vmatprep.subr.bf16.mxu0 0
        %3436 = vmatpush1.bf16.msra.mxu0 0
        %3437 = vmatprep.subr.bf16.mxu0 0
        %3438 = vmatpush1.bf16.msra.mxu0 0
        %3439 = vmatprep.subr.bf16.mxu0 0
        %3440 = vmatpush1.bf16.msra.mxu0 0
        %3441 = vmatprep.subr.bf16.mxu0 0
        %3442 = vmatpush1.bf16.msra.mxu0 0
        %3443 = vmatprep.subr.bf16.mxu0 0
        %3444 = vmatpush1.bf16.msra.mxu0 0
        %3445 = vmatprep.subr.bf16.mxu0 0
        %3446 = vmatpush1.bf16.msra.mxu0 0
        %3447 = vmatprep.subr.bf16.mxu0 0
        %3448 = vmatpush1.bf16.msra.mxu0 0
        %3449 = vmatprep.subr.bf16.mxu0 0
        %3450 = vmatpush1.bf16.msra.mxu0 0
        %3451 = vmatprep.mubr.bf16.mxu0 0
        %3452 = vmatmul.mubr.bf16.gmra.mrb[0].mxu0 %v3414
        %v3453 = vpop.f32.mrb[0].mxu0
        %v3454 = vadd.f32 0.0, %v3453
        %v3455 = vpop.f32.mrb[0].mxu0
        %v3456 = vpop.f32.mrb[0].mxu0
        %v3457 = vpop.f32.mrb[0].mxu0
        %3458 = vdwg.mxu0
        %3459 = vrot.lane.b32.xlu0 %v698, 64
        %v3460 = vpop.permute.xlu0 %3459
        %v3462 = vsel %vm718, %v2721, 0
        %v3465 = vsel %vm2743, %v3460, 0
        %3467 = vmatprep.subr.bf16.mxu0 0
        %3468 = vmatpush1.bf16.msra.mxu0 %v3465
        %3469 = vmatprep.subr.bf16.mxu0 0
        %3470 = vmatpush1.bf16.msra.mxu0 0
        %3471 = vmatprep.subr.bf16.mxu0 0
        %3472 = vmatpush1.bf16.msra.mxu0 0
        %3473 = vmatprep.subr.bf16.mxu0 0
        %3474 = vmatpush1.bf16.msra.mxu0 0
        %3475 = vmatprep.subr.bf16.mxu0 0
        %3476 = vmatpush1.bf16.msra.mxu0 0
        %3477 = vmatprep.subr.bf16.mxu0 0
        %3478 = vmatpush1.bf16.msra.mxu0 0
        %3479 = vmatprep.subr.bf16.mxu0 0
        %3480 = vmatpush1.bf16.msra.mxu0 0
        %3481 = vmatprep.subr.bf16.mxu0 0
        %3482 = vmatpush1.bf16.msra.mxu0 0
        %3483 = vmatprep.subr.bf16.mxu0 0
        %3484 = vmatpush1.bf16.msra.mxu0 0
        %3485 = vmatprep.subr.bf16.mxu0 0
        %3486 = vmatpush1.bf16.msra.mxu0 0
        %3487 = vmatprep.subr.bf16.mxu0 0
        %3488 = vmatpush1.bf16.msra.mxu0 0
        %3489 = vmatprep.subr.bf16.mxu0 0
        %3490 = vmatpush1.bf16.msra.mxu0 0
        %3491 = vmatprep.subr.bf16.mxu0 0
        %3492 = vmatpush1.bf16.msra.mxu0 0
        %3493 = vmatprep.subr.bf16.mxu0 0
        %3494 = vmatpush1.bf16.msra.mxu0 0
        %3495 = vmatprep.subr.bf16.mxu0 0
        %3496 = vmatpush1.bf16.msra.mxu0 0
        %3497 = vmatprep.subr.bf16.mxu0 0
        %3498 = vmatpush1.bf16.msra.mxu0 0
        %3499 = vmatprep.mubr.bf16.mxu0 0
        %3500 = vmatmul.mubr.bf16.gmra.mrb[0].mxu0 %v3462
        %v3501 = vpop.f32.mrb[0].mxu0
        %v3502 = vadd.f32 0.0, %v3501
        %v3503 = vpop.f32.mrb[0].mxu0
        %v3504 = vpop.f32.mrb[0].mxu0
        %v3505 = vpop.f32.mrb[0].mxu0
        %3506 = vdwg.mxu0
        %3507 = vrot.lane.b32.xlu0 %v699, 64
        %v3508 = vpop.permute.xlu0 %3507
        %v3510 = vsel %vm718, %v2722, 0
        %v3513 = vsel %vm2743, %v3508, 0
        %3515 = vmatprep.subr.bf16.mxu0 0
        %3516 = vmatpush1.bf16.msra.mxu0 %v3513
        %3517 = vmatprep.subr.bf16.mxu0 0
        %3518 = vmatpush1.bf16.msra.mxu0 0
        %3519 = vmatprep.subr.bf16.mxu0 0
        %3520 = vmatpush1.bf16.msra.mxu0 0
        %3521 = vmatprep.subr.bf16.mxu0 0
        %3522 = vmatpush1.bf16.msra.mxu0 0
        %3523 = vmatprep.subr.bf16.mxu0 0
        %3524 = vmatpush1.bf16.msra.mxu0 0
        %3525 = vmatprep.subr.bf16.mxu0 0
        %3526 = vmatpush1.bf16.msra.mxu0 0
        %3527 = vmatprep.subr.bf16.mxu0 0
        %3528 = vmatpush1.bf16.msra.mxu0 0
        %3529 = vmatprep.subr.bf16.mxu0 0
        %3530 = vmatpush1.bf16.msra.mxu0 0
        %3531 = vmatprep.subr.bf16.mxu0 0
        %3532 = vmatpush1.bf16.msra.mxu0 0
        %3533 = vmatprep.subr.bf16.mxu0 0
        %3534 = vmatpush1.bf16.msra.mxu0 0
        %3535 = vmatprep.subr.bf16.mxu0 0
        %3536 = vmatpush1.bf16.msra.mxu0 0
        %3537 = vmatprep.subr.bf16.mxu0 0
        %3538 = vmatpush1.bf16.msra.mxu0 0
        %3539 = vmatprep.subr.bf16.mxu0 0
        %3540 = vmatpush1.bf16.msra.mxu0 0
        %3541 = vmatprep.subr.bf16.mxu0 0
        %3542 = vmatpush1.bf16.msra.mxu0 0
        %3543 = vmatprep.subr.bf16.mxu0 0
        %3544 = vmatpush1.bf16.msra.mxu0 0
        %3545 = vmatprep.subr.bf16.mxu0 0
        %3546 = vmatpush1.bf16.msra.mxu0 0
        %3547 = vmatprep.mubr.bf16.mxu0 0
        %3548 = vmatmul.mubr.bf16.gmra.mrb[0].mxu0 %v3510
        %v3549 = vpop.f32.mrb[0].mxu0
        %v3550 = vadd.f32 0.0, %v3549
        %v3551 = vpop.f32.mrb[0].mxu0
        %v3552 = vpop.f32.mrb[0].mxu0
        %v3553 = vpop.f32.mrb[0].mxu0
        %3554 = vdwg.mxu0
        %3555 = vrot.lane.b32.xlu0 %v700, 64
        %v3556 = vpop.permute.xlu0 %3555
        %v3558 = vsel %vm718, %v2723, 0
        %v3561 = vsel %vm2743, %v3556, 0
        %3563 = vmatprep.subr.bf16.mxu0 0
        %3564 = vmatpush1.bf16.msra.mxu0 %v3561
        %3565 = vmatprep.subr.bf16.mxu0 0
        %3566 = vmatpush1.bf16.msra.mxu0 0
        %3567 = vmatprep.subr.bf16.mxu0 0
        %3568 = vmatpush1.bf16.msra.mxu0 0
        %3569 = vmatprep.subr.bf16.mxu0 0
        %3570 = vmatpush1.bf16.msra.mxu0 0
        %3571 = vmatprep.subr.bf16.mxu0 0
        %3572 = vmatpush1.bf16.msra.mxu0 0
        %3573 = vmatprep.subr.bf16.mxu0 0
        %3574 = vmatpush1.bf16.msra.mxu0 0
        %3575 = vmatprep.subr.bf16.mxu0 0
        %3576 = vmatpush1.bf16.msra.mxu0 0
        %3577 = vmatprep.subr.bf16.mxu0 0
        %3578 = vmatpush1.bf16.msra.mxu0 0
        %3579 = vmatprep.subr.bf16.mxu0 0
        %3580 = vmatpush1.bf16.msra.mxu0 0
        %3581 = vmatprep.subr.bf16.mxu0 0
        %3582 = vmatpush1.bf16.msra.mxu0 0
        %3583 = vmatprep.subr.bf16.mxu0 0
        %3584 = vmatpush1.bf16.msra.mxu0 0
        %3585 = vmatprep.subr.bf16.mxu0 0
        %3586 = vmatpush1.bf16.msra.mxu0 0
        %3587 = vmatprep.subr.bf16.mxu0 0
        %3588 = vmatpush1.bf16.msra.mxu0 0
        %3589 = vmatprep.subr.bf16.mxu0 0
        %3590 = vmatpush1.bf16.msra.mxu0 0
        %3591 = vmatprep.subr.bf16.mxu0 0
        %3592 = vmatpush1.bf16.msra.mxu0 0
        %3593 = vmatprep.subr.bf16.mxu0 0
        %3594 = vmatpush1.bf16.msra.mxu0 0
        %3595 = vmatprep.mubr.bf16.mxu0 0
        %3596 = vmatmul.mubr.bf16.gmra.mrb[0].mxu0 %v3558
        %v3597 = vpop.f32.mrb[0].mxu0
        %v3598 = vadd.f32 0.0, %v3597
        %v3599 = vpop.f32.mrb[0].mxu0
        %v3600 = vpop.f32.mrb[0].mxu0
        %v3601 = vpop.f32.mrb[0].mxu0
        %3602 = vdwg.mxu0
        %3603 = vrot.lane.b32.xlu0 %v701, 64
        %v3604 = vpop.permute.xlu0 %3603
        %v3606 = vsel %vm718, %v2724, 0
        %v3609 = vsel %vm2743, %v3604, 0
        %3611 = vmatprep.subr.bf16.mxu0 0
        %3612 = vmatpush1.bf16.msra.mxu0 %v3609
        %3613 = vmatprep.subr.bf16.mxu0 0
        %3614 = vmatpush1.bf16.msra.mxu0 0
        %3615 = vmatprep.subr.bf16.mxu0 0
        %3616 = vmatpush1.bf16.msra.mxu0 0
        %3617 = vmatprep.subr.bf16.mxu0 0
        %3618 = vmatpush1.bf16.msra.mxu0 0
        %3619 = vmatprep.subr.bf16.mxu0 0
        %3620 = vmatpush1.bf16.msra.mxu0 0
        %3621 = vmatprep.subr.bf16.mxu0 0
        %3622 = vmatpush1.bf16.msra.mxu0 0
        %3623 = vmatprep.subr.bf16.mxu0 0
        %3624 = vmatpush1.bf16.msra.mxu0 0
        %3625 = vmatprep.subr.bf16.mxu0 0
        %3626 = vmatpush1.bf16.msra.mxu0 0
        %3627 = vmatprep.subr.bf16.mxu0 0
        %3628 = vmatpush1.bf16.msra.mxu0 0
        %3629 = vmatprep.subr.bf16.mxu0 0
        %3630 = vmatpush1.bf16.msra.mxu0 0
        %3631 = vmatprep.subr.bf16.mxu0 0
        %3632 = vmatpush1.bf16.msra.mxu0 0
        %3633 = vmatprep.subr.bf16.mxu0 0
        %3634 = vmatpush1.bf16.msra.mxu0 0
        %3635 = vmatprep.subr.bf16.mxu0 0
        %3636 = vmatpush1.bf16.msra.mxu0 0
        %3637 = vmatprep.subr.bf16.mxu0 0
        %3638 = vmatpush1.bf16.msra.mxu0 0
        %3639 = vmatprep.subr.bf16.mxu0 0
        %3640 = vmatpush1.bf16.msra.mxu0 0
        %3641 = vmatprep.subr.bf16.mxu0 0
        %3642 = vmatpush1.bf16.msra.mxu0 0
        %3643 = vmatprep.mubr.bf16.mxu0 0
        %3644 = vmatmul.mubr.bf16.gmra.mrb[0].mxu0 %v3606
        %v3645 = vpop.f32.mrb[0].mxu0
        %v3646 = vadd.f32 0.0, %v3645
        %v3647 = vpop.f32.mrb[0].mxu0
        %v3648 = vpop.f32.mrb[0].mxu0
        %v3649 = vpop.f32.mrb[0].mxu0
        %3650 = vdwg.mxu0
        %3651 = vrot.lane.b32.xlu0 %v702, 64
        %v3652 = vpop.permute.xlu0 %3651
        %v3654 = vsel %vm718, %v2725, 0
        %v3657 = vsel %vm2743, %v3652, 0
        %3659 = vmatprep.subr.bf16.mxu0 0
        %3660 = vmatpush1.bf16.msra.mxu0 %v3657
        %3661 = vmatprep.subr.bf16.mxu0 0
        %3662 = vmatpush1.bf16.msra.mxu0 0
        %3663 = vmatprep.subr.bf16.mxu0 0
        %3664 = vmatpush1.bf16.msra.mxu0 0
        %3665 = vmatprep.subr.bf16.mxu0 0
        %3666 = vmatpush1.bf16.msra.mxu0 0
        %3667 = vmatprep.subr.bf16.mxu0 0
        %3668 = vmatpush1.bf16.msra.mxu0 0
        %3669 = vmatprep.subr.bf16.mxu0 0
        %3670 = vmatpush1.bf16.msra.mxu0 0
        %3671 = vmatprep.subr.bf16.mxu0 0
        %3672 = vmatpush1.bf16.msra.mxu0 0
        %3673 = vmatprep.subr.bf16.mxu0 0
        %3674 = vmatpush1.bf16.msra.mxu0 0
        %3675 = vmatprep.subr.bf16.mxu0 0
        %3676 = vmatpush1.bf16.msra.mxu0 0
        %3677 = vmatprep.subr.bf16.mxu0 0
        %3678 = vmatpush1.bf16.msra.mxu0 0
        %3679 = vmatprep.subr.bf16.mxu0 0
        %3680 = vmatpush1.bf16.msra.mxu0 0
        %3681 = vmatprep.subr.bf16.mxu0 0
        %3682 = vmatpush1.bf16.msra.mxu0 0
        %3683 = vmatprep.subr.bf16.mxu0 0
        %3684 = vmatpush1.bf16.msra.mxu0 0
        %3685 = vmatprep.subr.bf16.mxu0 0
        %3686 = vmatpush1.bf16.msra.mxu0 0
        %3687 = vmatprep.subr.bf16.mxu0 0
        %3688 = vmatpush1.bf16.msra.mxu0 0
        %3689 = vmatprep.subr.bf16.mxu0 0
        %3690 = vmatpush1.bf16.msra.mxu0 0
        %3691 = vmatprep.mubr.bf16.mxu0 0
        %3692 = vmatmul.mubr.bf16.gmra.mrb[0].mxu0 %v3654
        %v3693 = vpop.f32.mrb[0].mxu0
        %v3694 = vadd.f32 0.0, %v3693
        %v3695 = vpop.f32.mrb[0].mxu0
        %v3696 = vpop.f32.mrb[0].mxu0
        %v3697 = vpop.f32.mrb[0].mxu0
        %3698 = vdwg.mxu0
        %3699 = vrot.lane.b32.xlu0 %v703, 64
        %v3700 = vpop.permute.xlu0 %3699
        %v3702 = vsel %vm718, %v2726, 0
        %v3705 = vsel %vm2743, %v3700, 0
        %3707 = vmatprep.subr.bf16.mxu0 0
        %3708 = vmatpush1.bf16.msra.mxu0 %v3705
        %3709 = vmatprep.subr.bf16.mxu0 0
        %3710 = vmatpush1.bf16.msra.mxu0 0
        %3711 = vmatprep.subr.bf16.mxu0 0
        %3712 = vmatpush1.bf16.msra.mxu0 0
        %3713 = vmatprep.subr.bf16.mxu0 0
        %3714 = vmatpush1.bf16.msra.mxu0 0
        %3715 = vmatprep.subr.bf16.mxu0 0
        %3716 = vmatpush1.bf16.msra.mxu0 0
        %3717 = vmatprep.subr.bf16.mxu0 0
        %3718 = vmatpush1.bf16.msra.mxu0 0
        %3719 = vmatprep.subr.bf16.mxu0 0
        %3720 = vmatpush1.bf16.msra.mxu0 0
        %3721 = vmatprep.subr.bf16.mxu0 0
        %3722 = vmatpush1.bf16.msra.mxu0 0
        %3723 = vmatprep.subr.bf16.mxu0 0
        %3724 = vmatpush1.bf16.msra.mxu0 0
        %3725 = vmatprep.subr.bf16.mxu0 0
        %3726 = vmatpush1.bf16.msra.mxu0 0
        %3727 = vmatprep.subr.bf16.mxu0 0
        %3728 = vmatpush1.bf16.msra.mxu0 0
        %3729 = vmatprep.subr.bf16.mxu0 0
        %3730 = vmatpush1.bf16.msra.mxu0 0
        %3731 = vmatprep.subr.bf16.mxu0 0
        %3732 = vmatpush1.bf16.msra.mxu0 0
        %3733 = vmatprep.subr.bf16.mxu0 0
        %3734 = vmatpush1.bf16.msra.mxu0 0
        %3735 = vmatprep.subr.bf16.mxu0 0
        %3736 = vmatpush1.bf16.msra.mxu0 0
        %3737 = vmatprep.subr.bf16.mxu0 0
        %3738 = vmatpush1.bf16.msra.mxu0 0
        %3739 = vmatprep.mubr.bf16.mxu0 0
        %3740 = vmatmul.mubr.bf16.gmra.mrb[0].mxu0 %v3702
        %v3741 = vpop.f32.mrb[0].mxu0
        %v3742 = vadd.f32 0.0, %v3741
        %v3743 = vpop.f32.mrb[0].mxu0
        %v3744 = vpop.f32.mrb[0].mxu0
        %v3745 = vpop.f32.mrb[0].mxu0
        %3746 = vdwg.mxu0
        %3747 = vrot.lane.b32.xlu0 %v704, 64
        %v3748 = vpop.permute.xlu0 %3747
        %v3750 = vsel %vm718, %v2727, 0
        %v3753 = vsel %vm2743, %v3748, 0
        %3755 = vmatprep.subr.bf16.mxu0 0
        %3756 = vmatpush1.bf16.msra.mxu0 %v3753
        %3757 = vmatprep.subr.bf16.mxu0 0
        %3758 = vmatpush1.bf16.msra.mxu0 0
        %3759 = vmatprep.subr.bf16.mxu0 0
        %3760 = vmatpush1.bf16.msra.mxu0 0
        %3761 = vmatprep.subr.bf16.mxu0 0
        %3762 = vmatpush1.bf16.msra.mxu0 0
        %3763 = vmatprep.subr.bf16.mxu0 0
        %3764 = vmatpush1.bf16.msra.mxu0 0
        %3765 = vmatprep.subr.bf16.mxu0 0
        %3766 = vmatpush1.bf16.msra.mxu0 0
        %3767 = vmatprep.subr.bf16.mxu0 0
        %3768 = vmatpush1.bf16.msra.mxu0 0
        %3769 = vmatprep.subr.bf16.mxu0 0
        %3770 = vmatpush1.bf16.msra.mxu0 0
        %3771 = vmatprep.subr.bf16.mxu0 0
        %3772 = vmatpush1.bf16.msra.mxu0 0
        %3773 = vmatprep.subr.bf16.mxu0 0
        %3774 = vmatpush1.bf16.msra.mxu0 0
        %3775 = vmatprep.subr.bf16.mxu0 0
        %3776 = vmatpush1.bf16.msra.mxu0 0
        %3777 = vmatprep.subr.bf16.mxu0 0
        %3778 = vmatpush1.bf16.msra.mxu0 0
        %3779 = vmatprep.subr.bf16.mxu0 0
        %3780 = vmatpush1.bf16.msra.mxu0 0
        %3781 = vmatprep.subr.bf16.mxu0 0
        %3782 = vmatpush1.bf16.msra.mxu0 0
        %3783 = vmatprep.subr.bf16.mxu0 0
        %3784 = vmatpush1.bf16.msra.mxu0 0
        %3785 = vmatprep.subr.bf16.mxu0 0
        %3786 = vmatpush1.bf16.msra.mxu0 0
        %3787 = vmatprep.mubr.bf16.mxu0 0
        %3788 = vmatmul.mubr.bf16.gmra.mrb[0].mxu0 %v3750
        %v3789 = vpop.f32.mrb[0].mxu0
        %v3790 = vadd.f32 0.0, %v3789
        %v3791 = vpop.f32.mrb[0].mxu0
        %v3792 = vpop.f32.mrb[0].mxu0
        %v3793 = vpop.f32.mrb[0].mxu0
        %3794 = vdwg.mxu0
        %3795 = vrot.lane.b32.xlu0 %v705, 64
        %v3796 = vpop.permute.xlu0 %3795
        %v3798 = vsel %vm718, %v2728, 0
        %v3801 = vsel %vm2743, %v3796, 0
        %3803 = vmatprep.subr.bf16.mxu0 0
        %3804 = vmatpush1.bf16.msra.mxu0 %v3801
        %3805 = vmatprep.subr.bf16.mxu0 0
        %3806 = vmatpush1.bf16.msra.mxu0 0
        %3807 = vmatprep.subr.bf16.mxu0 0
        %3808 = vmatpush1.bf16.msra.mxu0 0
        %3809 = vmatprep.subr.bf16.mxu0 0
        %3810 = vmatpush1.bf16.msra.mxu0 0
        %3811 = vmatprep.subr.bf16.mxu0 0
        %3812 = vmatpush1.bf16.msra.mxu0 0
        %3813 = vmatprep.subr.bf16.mxu0 0
        %3814 = vmatpush1.bf16.msra.mxu0 0
        %3815 = vmatprep.subr.bf16.mxu0 0
        %3816 = vmatpush1.bf16.msra.mxu0 0
        %3817 = vmatprep.subr.bf16.mxu0 0
        %3818 = vmatpush1.bf16.msra.mxu0 0
        %3819 = vmatprep.subr.bf16.mxu0 0
        %3820 = vmatpush1.bf16.msra.mxu0 0
        %3821 = vmatprep.subr.bf16.mxu0 0
        %3822 = vmatpush1.bf16.msra.mxu0 0
        %3823 = vmatprep.subr.bf16.mxu0 0
        %3824 = vmatpush1.bf16.msra.mxu0 0
        %3825 = vmatprep.subr.bf16.mxu0 0
        %3826 = vmatpush1.bf16.msra.mxu0 0
        %3827 = vmatprep.subr.bf16.mxu0 0
        %3828 = vmatpush1.bf16.msra.mxu0 0
        %3829 = vmatprep.subr.bf16.mxu0 0
        %3830 = vmatpush1.bf16.msra.mxu0 0
        %3831 = vmatprep.subr.bf16.mxu0 0
        %3832 = vmatpush1.bf16.msra.mxu0 0
        %3833 = vmatprep.subr.bf16.mxu0 0
        %3834 = vmatpush1.bf16.msra.mxu0 0
        %3835 = vmatprep.mubr.bf16.mxu0 0
        %3836 = vmatmul.mubr.bf16.gmra.mrb[0].mxu0 %v3798
        %v3837 = vpop.f32.mrb[0].mxu0
        %v3838 = vadd.f32 0.0, %v3837
        %v3839 = vpop.f32.mrb[0].mxu0
        %v3840 = vpop.f32.mrb[0].mxu0
        %v3841 = vpop.f32.mrb[0].mxu0
        %3842 = vdwg.mxu0
        %3843 = vrot.lane.b32.xlu0 %v706, 64
        %v3844 = vpop.permute.xlu0 %3843
        %v3846 = vsel %vm718, %v2729, 0
        %v3849 = vsel %vm2743, %v3844, 0
        %3851 = vmatprep.subr.bf16.mxu0 0
        %3852 = vmatpush1.bf16.msra.mxu0 %v3849
        %3853 = vmatprep.subr.bf16.mxu0 0
        %3854 = vmatpush1.bf16.msra.mxu0 0
        %3855 = vmatprep.subr.bf16.mxu0 0
        %3856 = vmatpush1.bf16.msra.mxu0 0
        %3857 = vmatprep.subr.bf16.mxu0 0
        %3858 = vmatpush1.bf16.msra.mxu0 0
        %3859 = vmatprep.subr.bf16.mxu0 0
        %3860 = vmatpush1.bf16.msra.mxu0 0
        %3861 = vmatprep.subr.bf16.mxu0 0
        %3862 = vmatpush1.bf16.msra.mxu0 0
        %3863 = vmatprep.subr.bf16.mxu0 0
        %3864 = vmatpush1.bf16.msra.mxu0 0
        %3865 = vmatprep.subr.bf16.mxu0 0
        %3866 = vmatpush1.bf16.msra.mxu0 0
        %3867 = vmatprep.subr.bf16.mxu0 0
        %3868 = vmatpush1.bf16.msra.mxu0 0
        %3869 = vmatprep.subr.bf16.mxu0 0
        %3870 = vmatpush1.bf16.msra.mxu0 0
        %3871 = vmatprep.subr.bf16.mxu0 0
        %3872 = vmatpush1.bf16.msra.mxu0 0
        %3873 = vmatprep.subr.bf16.mxu0 0
        %3874 = vmatpush1.bf16.msra.mxu0 0
        %3875 = vmatprep.subr.bf16.mxu0 0
        %3876 = vmatpush1.bf16.msra.mxu0 0
        %3877 = vmatprep.subr.bf16.mxu0 0
        %3878 = vmatpush1.bf16.msra.mxu0 0
        %3879 = vmatprep.subr.bf16.mxu0 0
        %3880 = vmatpush1.bf16.msra.mxu0 0
        %3881 = vmatprep.subr.bf16.mxu0 0
        %3882 = vmatpush1.bf16.msra.mxu0 0
        %3883 = vmatprep.mubr.bf16.mxu0 0
        %3884 = vmatmul.mubr.bf16.gmra.mrb[0].mxu0 %v3846
        %v3885 = vpop.f32.mrb[0].mxu0
        %v3886 = vadd.f32 0.0, %v3885
        %v3887 = vpop.f32.mrb[0].mxu0
        %v3888 = vpop.f32.mrb[0].mxu0
        %v3889 = vpop.f32.mrb[0].mxu0
        %3890 = vdwg.mxu0
        %3891 = vrot.lane.b32.xlu0 %v707, 64
        %v3892 = vpop.permute.xlu0 %3891
        %v3894 = vsel %vm718, %v2730, 0
        %v3897 = vsel %vm2743, %v3892, 0
        %3899 = vmatprep.subr.bf16.mxu0 0
        %3900 = vmatpush1.bf16.msra.mxu0 %v3897
        %3901 = vmatprep.subr.bf16.mxu0 0
        %3902 = vmatpush1.bf16.msra.mxu0 0
        %3903 = vmatprep.subr.bf16.mxu0 0
        %3904 = vmatpush1.bf16.msra.mxu0 0
        %3905 = vmatprep.subr.bf16.mxu0 0
        %3906 = vmatpush1.bf16.msra.mxu0 0
        %3907 = vmatprep.subr.bf16.mxu0 0
        %3908 = vmatpush1.bf16.msra.mxu0 0
        %3909 = vmatprep.subr.bf16.mxu0 0
        %3910 = vmatpush1.bf16.msra.mxu0 0
        %3911 = vmatprep.subr.bf16.mxu0 0
        %3912 = vmatpush1.bf16.msra.mxu0 0
        %3913 = vmatprep.subr.bf16.mxu0 0
        %3914 = vmatpush1.bf16.msra.mxu0 0
        %3915 = vmatprep.subr.bf16.mxu0 0
        %3916 = vmatpush1.bf16.msra.mxu0 0
        %3917 = vmatprep.subr.bf16.mxu0 0
        %3918 = vmatpush1.bf16.msra.mxu0 0
        %3919 = vmatprep.subr.bf16.mxu0 0
        %3920 = vmatpush1.bf16.msra.mxu0 0
        %3921 = vmatprep.subr.bf16.mxu0 0
        %3922 = vmatpush1.bf16.msra.mxu0 0
        %3923 = vmatprep.subr.bf16.mxu0 0
        %3924 = vmatpush1.bf16.msra.mxu0 0
        %3925 = vmatprep.subr.bf16.mxu0 0
        %3926 = vmatpush1.bf16.msra.mxu0 0
        %3927 = vmatprep.subr.bf16.mxu0 0
        %3928 = vmatpush1.bf16.msra.mxu0 0
        %3929 = vmatprep.subr.bf16.mxu0 0
        %3930 = vmatpush1.bf16.msra.mxu0 0
        %3931 = vmatprep.mubr.bf16.mxu0 0
        %3932 = vmatmul.mubr.bf16.gmra.mrb[0].mxu0 %v3894
        %v3933 = vpop.f32.mrb[0].mxu0
        %v3934 = vadd.f32 0.0, %v3933
        %v3935 = vpop.f32.mrb[0].mxu0
        %v3936 = vpop.f32.mrb[0].mxu0
        %v3937 = vpop.f32.mrb[0].mxu0
        %3938 = vdwg.mxu0
        %3939 = vrot.lane.b32.xlu0 %v708, 64
        %v3940 = vpop.permute.xlu0 %3939
        %v3942 = vsel %vm718, %v2731, 0
        %v3945 = vsel %vm2743, %v3940, 0
        %3947 = vmatprep.subr.bf16.mxu0 0
        %3948 = vmatpush1.bf16.msra.mxu0 %v3945
        %3949 = vmatprep.subr.bf16.mxu0 0
        %3950 = vmatpush1.bf16.msra.mxu0 0
        %3951 = vmatprep.subr.bf16.mxu0 0
        %3952 = vmatpush1.bf16.msra.mxu0 0
        %3953 = vmatprep.subr.bf16.mxu0 0
        %3954 = vmatpush1.bf16.msra.mxu0 0
        %3955 = vmatprep.subr.bf16.mxu0 0
        %3956 = vmatpush1.bf16.msra.mxu0 0
        %3957 = vmatprep.subr.bf16.mxu0 0
        %3958 = vmatpush1.bf16.msra.mxu0 0
        %3959 = vmatprep.subr.bf16.mxu0 0
        %3960 = vmatpush1.bf16.msra.mxu0 0
        %3961 = vmatprep.subr.bf16.mxu0 0
        %3962 = vmatpush1.bf16.msra.mxu0 0
        %3963 = vmatprep.subr.bf16.mxu0 0
        %3964 = vmatpush1.bf16.msra.mxu0 0
        %3965 = vmatprep.subr.bf16.mxu0 0
        %3966 = vmatpush1.bf16.msra.mxu0 0
        %3967 = vmatprep.subr.bf16.mxu0 0
        %3968 = vmatpush1.bf16.msra.mxu0 0
        %3969 = vmatprep.subr.bf16.mxu0 0
        %3970 = vmatpush1.bf16.msra.mxu0 0
        %3971 = vmatprep.subr.bf16.mxu0 0
        %3972 = vmatpush1.bf16.msra.mxu0 0
        %3973 = vmatprep.subr.bf16.mxu0 0
        %3974 = vmatpush1.bf16.msra.mxu0 0
        %3975 = vmatprep.subr.bf16.mxu0 0
        %3976 = vmatpush1.bf16.msra.mxu0 0
        %3977 = vmatprep.subr.bf16.mxu0 0
        %3978 = vmatpush1.bf16.msra.mxu0 0
        %3979 = vmatprep.mubr.bf16.mxu0 0
        %3980 = vmatmul.mubr.bf16.gmra.mrb[0].mxu0 %v3942
        %v3981 = vpop.f32.mrb[0].mxu0
        %v3982 = vadd.f32 0.0, %v3981
        %v3983 = vpop.f32.mrb[0].mxu0
        %v3984 = vpop.f32.mrb[0].mxu0
        %v3985 = vpop.f32.mrb[0].mxu0
        %3986 = vdwg.mxu0
        %3987 = vrot.lane.b32.xlu0 %v709, 64
        %v3988 = vpop.permute.xlu0 %3987
        %v3990 = vsel %vm718, %v2732, 0
        %v3993 = vsel %vm2743, %v3988, 0
        %3995 = vmatprep.subr.bf16.mxu0 0
        %3996 = vmatpush1.bf16.msra.mxu0 %v3993
        %3997 = vmatprep.subr.bf16.mxu0 0
        %3998 = vmatpush1.bf16.msra.mxu0 0
        %3999 = vmatprep.subr.bf16.mxu0 0
        %4000 = vmatpush1.bf16.msra.mxu0 0
        %4001 = vmatprep.subr.bf16.mxu0 0
        %4002 = vmatpush1.bf16.msra.mxu0 0
        %4003 = vmatprep.subr.bf16.mxu0 0
        %4004 = vmatpush1.bf16.msra.mxu0 0
        %4005 = vmatprep.subr.bf16.mxu0 0
        %4006 = vmatpush1.bf16.msra.mxu0 0
        %4007 = vmatprep.subr.bf16.mxu0 0
        %4008 = vmatpush1.bf16.msra.mxu0 0
        %4009 = vmatprep.subr.bf16.mxu0 0
        %4010 = vmatpush1.bf16.msra.mxu0 0
        %4011 = vmatprep.subr.bf16.mxu0 0
        %4012 = vmatpush1.bf16.msra.mxu0 0
        %4013 = vmatprep.subr.bf16.mxu0 0
        %4014 = vmatpush1.bf16.msra.mxu0 0
        %4015 = vmatprep.subr.bf16.mxu0 0
        %4016 = vmatpush1.bf16.msra.mxu0 0
        %4017 = vmatprep.subr.bf16.mxu0 0
        %4018 = vmatpush1.bf16.msra.mxu0 0
        %4019 = vmatprep.subr.bf16.mxu0 0
        %4020 = vmatpush1.bf16.msra.mxu0 0
        %4021 = vmatprep.subr.bf16.mxu0 0
        %4022 = vmatpush1.bf16.msra.mxu0 0
        %4023 = vmatprep.subr.bf16.mxu0 0
        %4024 = vmatpush1.bf16.msra.mxu0 0
        %4025 = vmatprep.subr.bf16.mxu0 0
        %4026 = vmatpush1.bf16.msra.mxu0 0
        %4027 = vmatprep.mubr.bf16.mxu0 0
        %4028 = vmatmul.mubr.bf16.gmra.mrb[0].mxu0 %v3990
        %v4029 = vpop.f32.mrb[0].mxu0
        %v4030 = vadd.f32 0.0, %v4029
        %v4031 = vpop.f32.mrb[0].mxu0
        %v4032 = vpop.f32.mrb[0].mxu0
        %v4033 = vpop.f32.mrb[0].mxu0
        %4034 = vdwg.mxu0
        %4035 = vrot.lane.b32.xlu0 %v710, 64
        %v4036 = vpop.permute.xlu0 %4035
        %v4038 = vsel %vm718, %v2733, 0
        %v4041 = vsel %vm2743, %v4036, 0
        %4043 = vmatprep.subr.bf16.mxu0 0
        %4044 = vmatpush1.bf16.msra.mxu0 %v4041
        %4045 = vmatprep.subr.bf16.mxu0 0
        %4046 = vmatpush1.bf16.msra.mxu0 0
        %4047 = vmatprep.subr.bf16.mxu0 0
        %4048 = vmatpush1.bf16.msra.mxu0 0
        %4049 = vmatprep.subr.bf16.mxu0 0
        %4050 = vmatpush1.bf16.msra.mxu0 0
        %4051 = vmatprep.subr.bf16.mxu0 0
        %4052 = vmatpush1.bf16.msra.mxu0 0
        %4053 = vmatprep.subr.bf16.mxu0 0
        %4054 = vmatpush1.bf16.msra.mxu0 0
        %4055 = vmatprep.subr.bf16.mxu0 0
        %4056 = vmatpush1.bf16.msra.mxu0 0
        %4057 = vmatprep.subr.bf16.mxu0 0
        %4058 = vmatpush1.bf16.msra.mxu0 0
        %4059 = vmatprep.subr.bf16.mxu0 0
        %4060 = vmatpush1.bf16.msra.mxu0 0
        %4061 = vmatprep.subr.bf16.mxu0 0
        %4062 = vmatpush1.bf16.msra.mxu0 0
        %4063 = vmatprep.subr.bf16.mxu0 0
        %4064 = vmatpush1.bf16.msra.mxu0 0
        %4065 = vmatprep.subr.bf16.mxu0 0
        %4066 = vmatpush1.bf16.msra.mxu0 0
        %4067 = vmatprep.subr.bf16.mxu0 0
        %4068 = vmatpush1.bf16.msra.mxu0 0
        %4069 = vmatprep.subr.bf16.mxu0 0
        %4070 = vmatpush1.bf16.msra.mxu0 0
        %4071 = vmatprep.subr.bf16.mxu0 0
        %4072 = vmatpush1.bf16.msra.mxu0 0
        %4073 = vmatprep.subr.bf16.mxu0 0
        %4074 = vmatpush1.bf16.msra.mxu0 0
        %4075 = vmatprep.mubr.bf16.mxu0 0
        %4076 = vmatmul.mubr.bf16.gmra.mrb[0].mxu0 %v4038
        %v4077 = vpop.f32.mrb[0].mxu0
        %v4078 = vadd.f32 0.0, %v4077
        %v4079 = vpop.f32.mrb[0].mxu0
        %v4080 = vpop.f32.mrb[0].mxu0
        %v4081 = vpop.f32.mrb[0].mxu0
        %4082 = vdwg.mxu0
        %4083 = vrot.lane.b32.xlu0 %v711, 64
        %v4084 = vpop.permute.xlu0 %4083
        %v4086 = vsel %vm718, %v2734, 0
        %v4089 = vsel %vm2743, %v4084, 0
        %4091 = vmatprep.subr.bf16.mxu0 0
        %4092 = vmatpush1.bf16.msra.mxu0 %v4089
        %4093 = vmatprep.subr.bf16.mxu0 0
        %4094 = vmatpush1.bf16.msra.mxu0 0
        %4095 = vmatprep.subr.bf16.mxu0 0
        %4096 = vmatpush1.bf16.msra.mxu0 0
        %4097 = vmatprep.subr.bf16.mxu0 0
        %4098 = vmatpush1.bf16.msra.mxu0 0
        %4099 = vmatprep.subr.bf16.mxu0 0
        %4100 = vmatpush1.bf16.msra.mxu0 0
        %4101 = vmatprep.subr.bf16.mxu0 0
        %4102 = vmatpush1.bf16.msra.mxu0 0
        %4103 = vmatprep.subr.bf16.mxu0 0
        %4104 = vmatpush1.bf16.msra.mxu0 0
        %4105 = vmatprep.subr.bf16.mxu0 0
        %4106 = vmatpush1.bf16.msra.mxu0 0
        %4107 = vmatprep.subr.bf16.mxu0 0
        %4108 = vmatpush1.bf16.msra.mxu0 0
        %4109 = vmatprep.subr.bf16.mxu0 0
        %4110 = vmatpush1.bf16.msra.mxu0 0
        %4111 = vmatprep.subr.bf16.mxu0 0
        %4112 = vmatpush1.bf16.msra.mxu0 0
        %4113 = vmatprep.subr.bf16.mxu0 0
        %4114 = vmatpush1.bf16.msra.mxu0 0
        %4115 = vmatprep.subr.bf16.mxu0 0
        %4116 = vmatpush1.bf16.msra.mxu0 0
        %4117 = vmatprep.subr.bf16.mxu0 0
        %4118 = vmatpush1.bf16.msra.mxu0 0
        %4119 = vmatprep.subr.bf16.mxu0 0
        %4120 = vmatpush1.bf16.msra.mxu0 0
        %4121 = vmatprep.subr.bf16.mxu0 0
        %4122 = vmatpush1.bf16.msra.mxu0 0
        %4123 = vmatprep.mubr.bf16.mxu0 0
        %4124 = vmatmul.mubr.bf16.gmra.mrb[0].mxu0 %v4086
        %v4125 = vpop.f32.mrb[0].mxu0
        %v4126 = vadd.f32 0.0, %v4125
        %v4127 = vpop.f32.mrb[0].mxu0
        %v4128 = vpop.f32.mrb[0].mxu0
        %v4129 = vpop.f32.mrb[0].mxu0
        %4130 = vdwg.mxu0
        %4131 = vrot.lane.b32.xlu0 %v712, 64
        %v4132 = vpop.permute.xlu0 %4131
        %v4134 = vsel %vm718, %v2735, 0
        %v4137 = vsel %vm2743, %v4132, 0
        %4139 = vmatprep.subr.bf16.mxu0 0
        %4140 = vmatpush1.bf16.msra.mxu0 %v4137
        %4141 = vmatprep.subr.bf16.mxu0 0
        %4142 = vmatpush1.bf16.msra.mxu0 0
        %4143 = vmatprep.subr.bf16.mxu0 0
        %4144 = vmatpush1.bf16.msra.mxu0 0
        %4145 = vmatprep.subr.bf16.mxu0 0
        %4146 = vmatpush1.bf16.msra.mxu0 0
        %4147 = vmatprep.subr.bf16.mxu0 0
        %4148 = vmatpush1.bf16.msra.mxu0 0
        %4149 = vmatprep.subr.bf16.mxu0 0
        %4150 = vmatpush1.bf16.msra.mxu0 0
        %4151 = vmatprep.subr.bf16.mxu0 0
        %4152 = vmatpush1.bf16.msra.mxu0 0
        %4153 = vmatprep.subr.bf16.mxu0 0
        %4154 = vmatpush1.bf16.msra.mxu0 0
        %4155 = vmatprep.subr.bf16.mxu0 0
        %4156 = vmatpush1.bf16.msra.mxu0 0
        %4157 = vmatprep.subr.bf16.mxu0 0
        %4158 = vmatpush1.bf16.msra.mxu0 0
        %4159 = vmatprep.subr.bf16.mxu0 0
        %4160 = vmatpush1.bf16.msra.mxu0 0
        %4161 = vmatprep.subr.bf16.mxu0 0
        %4162 = vmatpush1.bf16.msra.mxu0 0
        %4163 = vmatprep.subr.bf16.mxu0 0
        %4164 = vmatpush1.bf16.msra.mxu0 0
        %4165 = vmatprep.subr.bf16.mxu0 0
        %4166 = vmatpush1.bf16.msra.mxu0 0
        %4167 = vmatprep.subr.bf16.mxu0 0
        %4168 = vmatpush1.bf16.msra.mxu0 0
        %4169 = vmatprep.subr.bf16.mxu0 0
        %4170 = vmatpush1.bf16.msra.mxu0 0
        %4171 = vmatprep.mubr.bf16.mxu0 0
        %4172 = vmatmul.mubr.bf16.gmra.mrb[0].mxu0 %v4134
        %v4173 = vpop.f32.mrb[0].mxu0
        %v4174 = vadd.f32 0.0, %v4173
        %v4175 = vpop.f32.mrb[0].mxu0
        %v4176 = vpop.f32.mrb[0].mxu0
        %v4177 = vpop.f32.mrb[0].mxu0
        %4178 = vdwg.mxu0
        %4179 = vrot.lane.b32.xlu0 %v713, 64
        %v4180 = vpop.permute.xlu0 %4179
        %v4182 = vsel %vm718, %v2736, 0
        %v4185 = vsel %vm2743, %v4180, 0
        %4187 = vmatprep.subr.bf16.mxu0 0
        %4188 = vmatpush1.bf16.msra.mxu0 %v4185
        %4189 = vmatprep.subr.bf16.mxu0 0
        %4190 = vmatpush1.bf16.msra.mxu0 0
        %4191 = vmatprep.subr.bf16.mxu0 0
        %4192 = vmatpush1.bf16.msra.mxu0 0
        %4193 = vmatprep.subr.bf16.mxu0 0
        %4194 = vmatpush1.bf16.msra.mxu0 0
        %4195 = vmatprep.subr.bf16.mxu0 0
        %4196 = vmatpush1.bf16.msra.mxu0 0
        %4197 = vmatprep.subr.bf16.mxu0 0
        %4198 = vmatpush1.bf16.msra.mxu0 0
        %4199 = vmatprep.subr.bf16.mxu0 0
        %4200 = vmatpush1.bf16.msra.mxu0 0
        %4201 = vmatprep.subr.bf16.mxu0 0
        %4202 = vmatpush1.bf16.msra.mxu0 0
        %4203 = vmatprep.subr.bf16.mxu0 0
        %4204 = vmatpush1.bf16.msra.mxu0 0
        %4205 = vmatprep.subr.bf16.mxu0 0
        %4206 = vmatpush1.bf16.msra.mxu0 0
        %4207 = vmatprep.subr.bf16.mxu0 0
        %4208 = vmatpush1.bf16.msra.mxu0 0
        %4209 = vmatprep.subr.bf16.mxu0 0
        %4210 = vmatpush1.bf16.msra.mxu0 0
        %4211 = vmatprep.subr.bf16.mxu0 0
        %4212 = vmatpush1.bf16.msra.mxu0 0
        %4213 = vmatprep.subr.bf16.mxu0 0
        %4214 = vmatpush1.bf16.msra.mxu0 0
        %4215 = vmatprep.subr.bf16.mxu0 0
        %4216 = vmatpush1.bf16.msra.mxu0 0
        %4217 = vmatprep.subr.bf16.mxu0 0
        %4218 = vmatpush1.bf16.msra.mxu0 0
        %4219 = vmatprep.mubr.bf16.mxu0 0
        %4220 = vmatmul.mubr.bf16.gmra.mrb[0].mxu0 %v4182
        %v4221 = vpop.f32.mrb[0].mxu0
        %v4222 = vadd.f32 0.0, %v4221
        %v4223 = vpop.f32.mrb[0].mxu0
        %v4224 = vpop.f32.mrb[0].mxu0
        %v4225 = vpop.f32.mrb[0].mxu0
        %4226 = vdwg.mxu0
        %4227 = vrot.lane.b32.xlu0 %v714, 64
        %v4228 = vpop.permute.xlu0 %4227
        %v4230 = vsel %vm718, %v2737, 0
        %v4233 = vsel %vm2743, %v4228, 0
        %4235 = vmatprep.subr.bf16.mxu0 0
        %4236 = vmatpush1.bf16.msra.mxu0 %v4233
        %4237 = vmatprep.subr.bf16.mxu0 0
        %4238 = vmatpush1.bf16.msra.mxu0 0
        %4239 = vmatprep.subr.bf16.mxu0 0
        %4240 = vmatpush1.bf16.msra.mxu0 0
        %4241 = vmatprep.subr.bf16.mxu0 0
        %4242 = vmatpush1.bf16.msra.mxu0 0
        %4243 = vmatprep.subr.bf16.mxu0 0
        %4244 = vmatpush1.bf16.msra.mxu0 0
        %4245 = vmatprep.subr.bf16.mxu0 0
        %4246 = vmatpush1.bf16.msra.mxu0 0
        %4247 = vmatprep.subr.bf16.mxu0 0
        %4248 = vmatpush1.bf16.msra.mxu0 0
        %4249 = vmatprep.subr.bf16.mxu0 0
        %4250 = vmatpush1.bf16.msra.mxu0 0
        %4251 = vmatprep.subr.bf16.mxu0 0
        %4252 = vmatpush1.bf16.msra.mxu0 0
        %4253 = vmatprep.subr.bf16.mxu0 0
        %4254 = vmatpush1.bf16.msra.mxu0 0
        %4255 = vmatprep.subr.bf16.mxu0 0
        %4256 = vmatpush1.bf16.msra.mxu0 0
        %4257 = vmatprep.subr.bf16.mxu0 0
        %4258 = vmatpush1.bf16.msra.mxu0 0
        %4259 = vmatprep.subr.bf16.mxu0 0
        %4260 = vmatpush1.bf16.msra.mxu0 0
        %4261 = vmatprep.subr.bf16.mxu0 0
        %4262 = vmatpush1.bf16.msra.mxu0 0
        %4263 = vmatprep.subr.bf16.mxu0 0
        %4264 = vmatpush1.bf16.msra.mxu0 0
        %4265 = vmatprep.subr.bf16.mxu0 0
        %4266 = vmatpush1.bf16.msra.mxu0 0
        %4267 = vmatprep.mubr.bf16.mxu0 0
        %4268 = vmatmul.mubr.bf16.gmra.mrb[0].mxu0 %v4230
        %v4269 = vpop.f32.mrb[0].mxu0
        %v4270 = vadd.f32 0.0, %v4269
        %v4271 = vpop.f32.mrb[0].mxu0
        %v4272 = vpop.f32.mrb[0].mxu0
        %v4273 = vpop.f32.mrb[0].mxu0
        %4274 = vdwg.mxu0
        %4283 = vrot.lane.b32.xlu0 %v3166, 8
        %v4284 = vpop.permute.xlu0 %4283
        %4285 = vrot.lane.b32.xlu0 %v3214, 8
        %v4286 = vpop.permute.xlu0 %4285
        %4287 = vrot.lane.b32.xlu0 %v3262, 8
        %v4288 = vpop.permute.xlu0 %4287
        %4289 = vrot.lane.b32.xlu0 %v3310, 8
        %v4290 = vpop.permute.xlu0 %4289
        %4291 = vrot.lane.b32.xlu0 %v3358, 8
        %v4292 = vpop.permute.xlu0 %4291
        %4293 = vrot.lane.b32.xlu0 %v3406, 8
        %v4294 = vpop.permute.xlu0 %4293
        %4295 = vrot.lane.b32.xlu0 %v3454, 8
        %v4296 = vpop.permute.xlu0 %4295
        %4297 = vrot.lane.b32.xlu0 %v3502, 8
        %v4298 = vpop.permute.xlu0 %4297
        %4315 = vrot.lane.b32.xlu0 %v3550, 16
        %v4316 = vpop.permute.xlu0 %4315
        %4317 = vrot.lane.b32.xlu0 %v3598, 16
        %v4318 = vpop.permute.xlu0 %4317
        %4319 = vrot.lane.b32.xlu0 %v3646, 16
        %v4320 = vpop.permute.xlu0 %4319
        %4321 = vrot.lane.b32.xlu0 %v3694, 16
        %v4322 = vpop.permute.xlu0 %4321
        %4323 = vrot.lane.b32.xlu0 %v3742, 16
        %v4324 = vpop.permute.xlu0 %4323
        %4325 = vrot.lane.b32.xlu0 %v3790, 16
        %v4326 = vpop.permute.xlu0 %4325
        %4327 = vrot.lane.b32.xlu0 %v3838, 16
        %v4328 = vpop.permute.xlu0 %4327
        %4329 = vrot.lane.b32.xlu0 %v3886, 16
        %v4330 = vpop.permute.xlu0 %4329
        %4347 = vrot.lane.b32.xlu0 %v3934, 24
        %v4348 = vpop.permute.xlu0 %4347
        %4349 = vrot.lane.b32.xlu0 %v3982, 24
        %v4350 = vpop.permute.xlu0 %4349
        %4351 = vrot.lane.b32.xlu0 %v4030, 24
        %v4352 = vpop.permute.xlu0 %4351
        %4353 = vrot.lane.b32.xlu0 %v4078, 24
        %v4354 = vpop.permute.xlu0 %4353
        %4355 = vrot.lane.b32.xlu0 %v4126, 24
        %v4356 = vpop.permute.xlu0 %4355
        %4357 = vrot.lane.b32.xlu0 %v4174, 24
        %v4358 = vpop.permute.xlu0 %4357
        %4359 = vrot.lane.b32.xlu0 %v4222, 24
        %v4360 = vpop.permute.xlu0 %4359
        %4361 = vrot.lane.b32.xlu0 %v4270, 24
        %v4362 = vpop.permute.xlu0 %4361
        %v4371 = vsel %vm718, %v2782, %v4284
        %v4372 = vsel %vm718, %v2830, %v4286
        %v4373 = vsel %vm718, %v2878, %v4288
        %v4374 = vsel %vm718, %v2926, %v4290
        %v4375 = vsel %vm718, %v2974, %v4292
        %v4376 = vsel %vm718, %v3022, %v4294
        %v4377 = vsel %vm718, %v3070, %v4296
        %v4378 = vsel %vm718, %v3118, %v4298
        %vm4379 = vcmask 130048
        %v4380 = vsel %vm4379, %v4371, %v4316
        %v4381 = vsel %vm4379, %v4372, %v4318
        %v4382 = vsel %vm4379, %v4373, %v4320
        %v4383 = vsel %vm4379, %v4374, %v4322
        %v4384 = vsel %vm4379, %v4375, %v4324
        %v4385 = vsel %vm4379, %v4376, %v4326
        %v4386 = vsel %vm4379, %v4377, %v4328
        %v4387 = vsel %vm4379, %v4378, %v4330
        %vm4388 = vcmask 195584
        %v4389 = vsel %vm4388, %v4380, %v4348
        %v4390 = vsel %vm4388, %v4381, %v4350
        %v4391 = vsel %vm4388, %v4382, %v4352
        %v4392 = vsel %vm4388, %v4383, %v4354
        %v4393 = vsel %vm4388, %v4384, %v4356
        %v4394 = vsel %vm4388, %v4385, %v4358
        %v4395 = vsel %vm4388, %v4386, %v4360
        %v4396 = vsel %vm4388, %v4387, %v4362
        %v4397 = vld [vmem:[%s6] sm:$0xf]
        %v4398 = vld [vmem:[%s6 + $0x4] sm:$0xf]
        %v4399 = vld [vmem:[%s6 + $0x8] sm:$0xf]
        %v4400 = vld [vmem:[%s6 + $0xc] sm:$0xf]
        %v4401 = vld [vmem:[%s7] sm:$0x1]
        %v4402 = vpack.c.bf16 %v4390, %v4389
        %v4403 = vpack.c.bf16 %v4392, %v4391
        %v4404 = vpack.c.bf16 %v4394, %v4393
        %v4405 = vpack.c.bf16 %v4396, %v4395
        %v4407 = vlaneseq
        %v4408 = vshrl.u32 %v4407, 7
        %v4409 = vsub.s32 0, %v4408
        %v4410 = vrot.slane %v4401, %v4409
        %v4416 = vunpack.c.l.b16 %v4397
        %v4417 = vunpack.c.l.b16 %v4398
        %v4418 = vunpack.c.l.b16 %v4399
        %v4419 = vunpack.c.l.b16 %v4400
        %v4420 = vpack.c.b16 %v4417, %v4416
        %v4421 = vpack.c.b16 %v4419, %v4418
        %v4425 = vsel %vm365, %v4402, 0
        %v4428 = vsel %vm365, %v4403, 0
        %v4431 = vsel %vm365, %v4404, 0
        %v4434 = vsel %vm365, %v4405, 0
        %4436 = vmatprep.subr.bf16.mxu0 0
        %4437 = vmatpush1.bf16.msra.mxu0 %v4420
        %4438 = vmatprep.subr.bf16.mxu0 0
        %4439 = vmatpush1.bf16.msra.mxu0 %v4421
        %4440 = vmatprep.subr.bf16.mxu0 0
        %4441 = vmatpush1.bf16.msra.mxu0 0
        %4442 = vmatprep.subr.bf16.mxu0 0
        %4443 = vmatpush1.bf16.msra.mxu0 0
        %4444 = vmatprep.subr.bf16.mxu0 0
        %4445 = vmatpush1.bf16.msra.mxu0 0
        %4446 = vmatprep.subr.bf16.mxu0 0
        %4447 = vmatpush1.bf16.msra.mxu0 0
        %4448 = vmatprep.subr.bf16.mxu0 0
        %4449 = vmatpush1.bf16.msra.mxu0 0
        %4450 = vmatprep.subr.bf16.mxu0 0
        %4451 = vmatpush1.bf16.msra.mxu0 0
        %4452 = vmatprep.subr.bf16.mxu0 0
        %4453 = vmatpush1.bf16.msra.mxu0 0
        %4454 = vmatprep.subr.bf16.mxu0 0
        %4455 = vmatpush1.bf16.msra.mxu0 0
        %4456 = vmatprep.subr.bf16.mxu0 0
        %4457 = vmatpush1.bf16.msra.mxu0 0
        %4458 = vmatprep.subr.bf16.mxu0 0
        %4459 = vmatpush1.bf16.msra.mxu0 0
        %4460 = vmatprep.subr.bf16.mxu0 0
        %4461 = vmatpush1.bf16.msra.mxu0 0
        %4462 = vmatprep.subr.bf16.mxu0 0
        %4463 = vmatpush1.bf16.msra.mxu0 0
        %4464 = vmatprep.subr.bf16.mxu0 0
        %4465 = vmatpush1.bf16.msra.mxu0 0
        %4466 = vmatprep.subr.bf16.mxu0 0
        %4467 = vmatpush1.bf16.msra.mxu0 0
        %4468 = vmatprep.mubr.bf16.mxu0 0
        %4469 = vmatmul.mubr.bf16.gmra.mrb[0].mxu0 %v4425
        %v4470 = vpop.f32.mrb[0].mxu0
        %v4471 = vadd.f32 %v4410, %v4470
        %v4472 = vpop.f32.mrb[0].mxu0
        %v4473 = vpop.f32.mrb[0].mxu0
        %v4474 = vadd.f32 %v4410, %v4473
        %v4475 = vpop.f32.mrb[0].mxu0
        %4476 = vmatprep.mubr.bf16.mxu0 0
        %4477 = vmatmul.mubr.bf16.gmra.mrb[0].mxu0 %v4428
        %v4478 = vpop.f32.mrb[0].mxu0
        %v4479 = vadd.f32 %v4410, %v4478
        %v4480 = vpop.f32.mrb[0].mxu0
        %v4481 = vpop.f32.mrb[0].mxu0
        %v4482 = vadd.f32 %v4410, %v4481
        %v4483 = vpop.f32.mrb[0].mxu0
        %4484 = vmatprep.mubr.bf16.mxu0 0
        %4485 = vmatmul.mubr.bf16.gmra.mrb[0].mxu0 %v4431
        %v4486 = vpop.f32.mrb[0].mxu0
        %v4487 = vadd.f32 %v4410, %v4486
        %v4488 = vpop.f32.mrb[0].mxu0
        %v4489 = vpop.f32.mrb[0].mxu0
        %v4490 = vadd.f32 %v4410, %v4489
        %v4491 = vpop.f32.mrb[0].mxu0
        %4492 = vmatprep.mubr.bf16.mxu0 0
        %4493 = vmatmul.mubr.bf16.gmra.mrb[0].mxu0 %v4434
        %v4494 = vpop.f32.mrb[0].mxu0
        %v4495 = vadd.f32 %v4410, %v4494
        %v4496 = vpop.f32.mrb[0].mxu0
        %v4497 = vpop.f32.mrb[0].mxu0
        %v4498 = vadd.f32 %v4410, %v4497
        %v4499 = vpop.f32.mrb[0].mxu0
        %4500 = vdwg.mxu0
        %v4501 = vadd.f32 %v354, %v4471
        %v4502 = vadd.f32 %v355, %v4474
        %v4503 = vadd.f32 %v356, %v4479
        %v4504 = vadd.f32 %v357, %v4482
        %v4505 = vadd.f32 %v358, %v4487
        %v4506 = vadd.f32 %v359, %v4490
        %v4507 = vadd.f32 %v360, %v4495
        %v4508 = vadd.f32 %v361, %v4498
        %4509 = vst.msk [vmem:[%s349] sm:$0xff] %vm365, %v4501
        %4510 = vst.msk [vmem:[%s349 + $0x8] sm:$0xff] %vm365, %v4502
        %4511 = vst.msk [vmem:[%s349 + $0x10] sm:$0xff] %vm365, %v4503
        %4512 = vst.msk [vmem:[%s349 + $0x18] sm:$0xff] %vm365, %v4504
        %4513 = vst.msk [vmem:[%s349 + $0x20] sm:$0xff] %vm365, %v4505
        %4514 = vst.msk [vmem:[%s349 + $0x28] sm:$0xff] %vm365, %v4506
        %4515 = vst.msk [vmem:[%s349 + $0x30] sm:$0xff] %vm365, %v4507
        %4516 = vst.msk [vmem:[%s349 + $0x38] sm:$0xff] %vm365, %v4508
        %s4517 = sand.u32 %s212, 1
        %s4518 = scalar_lea.sflag [#allocation4], %s4517
        %s4519 = sand.u32 %s212, 1
        %s4520 = smul.addr %s4519, 64
        %s4521 = scalar_lea.vmem [#allocation7], %s4520
        // Predicated region
        $region61: #{tpu_custom_call.1} parent=51 // pred_check
          %p4522 = pneg %p222
        $region62: #{tpu_custom_call.1} parent=51 // pred_check_branch
          %4524 = sbr.rel (%p4522) target = $region64
        $region63: #{tpu_custom_call.1} parent=51 // pred_region
          %s4526 = ssub.s32 1024, 1024
          %4527 = vsyncadd %s4518, %s4526
          %s4528 = smul.addr %s26, 8
          %s4529 = smul.addr %s4528, 128
          %s4530 = scalar_lea.hbm %s8, %s4529
          %s4531 = sshll.u32 %s4521, 4
          %s4532 = int_to_ptr.vmem [resolvable:$true] %s4531
          %4537 = dma.vmem_to_hbm [thread:$0]  %s4532, 1024, %s4530, %s4518, 128, 128, 8
        $region64: #{tpu_custom_call.1} parent=51 // pred_fallthru
          _
      $region52: #{tpu_custom_call.1} parent=5 // pred_fallthru
        _
      %p4538 = scmp.le.s32.totalorder 2, %s21
      // Predicated region
      $region65: #{tpu_custom_call.1} parent=5 // pred_check
        %p4539 = pneg %p4538
      $region66: #{tpu_custom_call.1} parent=5 // pred_check_branch
        %4541 = sbr.rel (%p4539) target = $region68
      $region67: #{tpu_custom_call.1} parent=5 // pred_region
        %s4542 = ssub.s32 %s21, 2
        // Predicated region
        $region69: #{tpu_custom_call.1} parent=67 // pred_check
          %p4543 = pneg %p228
        $region70: #{tpu_custom_call.1} parent=67 // pred_check_branch
          %4545 = sbr.rel (%p4543) target = $region72
        $region71: #{tpu_custom_call.1} parent=67 // pred_region
          %s4546 = sand.u32 %s213, 1
          %s4547 = scalar_lea.sflag [#allocation4], %s4546
          %s4548 = sand.u32 %s213, 1
          %s4549 = smul.addr %s4548, 64
          %s4550 = scalar_lea.vmem [#allocation7], %s4549
          %4551 = dma.done %s4547, 1024
        $region72: #{tpu_custom_call.1} parent=67 // pred_fallthru
          _
      $region68: #{tpu_custom_call.1} parent=5 // pred_fallthru
        _
    $region6: #{tpu_custom_call.1} parent=1 // loop_footer
      %s25 = sadd.s32 1, %s21
    $region7: #{tpu_custom_call.1} parent=1 // loop_footer_branch
      %20 = sbr.rel target = $region3
    $region8: #{tpu_custom_call.1} parent=1 // loop_exit
      _
    %4552 = vsyncpa [#allocation3], 1
    %s4553 = scalar_lea.sflag [#allocation3], 1
    %4554 = vsyncpa %s4553, 1
    %4555 = vsyncpa [#allocation6], 1
    %4556 = vsyncpa [#allocation4], 1
    %s4557 = scalar_lea.sflag [#allocation4], 1
    %4558 = vsyncpa %s4557, 1

</llo_original>
